<compile_context>
chip_gen: v6e
topology: v6e:2x2x1
jax: 0.10.0
libtpu: 0.0.40
codegen_flags: <defaults>
</compile_context>

<pallas_src>
import jax
import jax.numpy as jnp
from jax.experimental import pallas as pl
from jax.experimental.pallas import tpu as pltpu


# ----------------------------- math helpers ----------------------------------

def _silu(x):
    return x * jax.nn.sigmoid(x)


def _ln(x, w, b, eps=1e-5):            # PyTorch LayerNorm (eval), default eps
    mu = jnp.mean(x, axis=-1, keepdims=True)
    d = x - mu
    var = jnp.mean(d * d, axis=-1, keepdims=True)
    return d * jax.lax.rsqrt(var + eps) * w + b


def _dot(a, b):                         # fp32 MXU matmul
    return jnp.dot(a, b, preferred_element_type=jnp.float32)


def _bdot(a_bf16, x):                   # bf16 MXU matmul, fp32 accumulation
    return jnp.dot(a_bf16, x.astype(jnp.bfloat16),
                   preferred_element_type=jnp.float32)


# ----------------------------- slab layout ------------------------------------

def _round8(r):
    return ((r + 7) // 8) * 8


def _make_layout(entries):
    """entries: [(name, rows)] -> (offsets {name: (start, rows)}, padded rows)."""
    offs, r = {}, 0
    for name, rows in entries:
        offs[name] = (r, rows)
        r += _round8(rows)
    return offs, r


def _slab_layouts(hidden):
    H, m = hidden, hidden // 2
    offs_a, ra = _make_layout([
        ('e1_w1x', H), ('e1_w1y', H), ('e1_w1d', 1), ('e1_b1', 1),
        ('nm_w1x', H), ('nm_w1m', m), ('nm_b1', 1),
        ('f_w1', H), ('f_b1', 1)])                       # cols = 2H
    offs_b, rb = _make_layout([
        ('e1_w2', 2 * H), ('e1_b2', 1), ('en1_w', 1), ('en1_b', 1)])  # cols = m
    offs_c, rc = _make_layout([
        ('nm_w2', 2 * H), ('nm_b2', 1), ('nn1_w', 1), ('nn1_b', 1),
        ('nn2_w', 1), ('nn2_b', 1), ('f_w2', 2 * H), ('f_b2', 1),
        ('en2_b', 1)])                                    # cols = H
    offs_l1, rl1 = _make_layout([('w1a', H), ('w1b', H), ('b1', 1)])   # cols = 2H
    offs_l2, rl2 = _make_layout([('w2', 2 * H), ('b2', 1)])            # cols = H
    return ((offs_a, ra, 2 * H), (offs_b, rb, m), (offs_c, rc, H),
            (offs_l1, rl1, 2 * H), (offs_l2, rl2, H))


def _pack_slab(entries, offs, rows_total, cols):
    slab = jnp.zeros((rows_total, cols), jnp.float32)
    for name, arr in entries.items():
        arr = jnp.asarray(arr, jnp.float32)
        if arr.ndim == 1:
            arr = arr[None, :]
        r0, r = offs[name]
        slab = slab.at[r0:r0 + r, :].set(arr)
    return slab


def _sl(ref, offs, name):
    r0, rows = offs[name]
    return ref[r0:r0 + rows, :]


# ------------------------------ fused kernel ----------------------------------

def _make_kernel(layouts):
    (offs_a, _, _), (offs_b, _, _), (offs_c, _, _), (offs_l1, _, _), \
        (offs_l2, _, _) = layouts

    def kernel(node_ref, pos_in_ref, ea_ref,
               gs_ref, gd_ref, dg_ref, aag_ref, invdeg_ref, lpos_ref,
               gl_ref, aal_ref,
               a_ref, b_ref, c_ref, l1_ref, l2_ref,
               o_ref, h_ref, pos_ref):
        layer = pl.program_id(0)

        # Load the carried state once at the first layer.
        @pl.when(layer == 0)
        def _():
            h_ref[...] = node_ref[...]
            pos_ref[...] = pos_in_ref[...]

        h = h_ref[...]                    # [N, H]  fp32
        pos = pos_ref[...]                # [N, 3]  fp32
        inv_deg = invdeg_ref[...]         # [N, 1]  fp32

        # ----- static-offset slices into the per-layer weight slabs -----
        e1_w1x = _sl(a_ref, offs_a, 'e1_w1x'); e1_w1y = _sl(a_ref, offs_a, 'e1_w1y')
        e1_w1d = _sl(a_ref, offs_a, 'e1_w1d'); e1_b1 = _sl(a_ref, offs_a, 'e1_b1')
        nm_w1x = _sl(a_ref, offs_a, 'nm_w1x'); nm_w1m = _sl(a_ref, offs_a, 'nm_w1m')
        nm_b1 = _sl(a_ref, offs_a, 'nm_b1')
        f_w1 = _sl(a_ref, offs_a, 'f_w1'); f_b1 = _sl(a_ref, offs_a, 'f_b1')

        e1_w2 = _sl(b_ref, offs_b, 'e1_w2'); e1_b2 = _sl(b_ref, offs_b, 'e1_b2')
        en1_w = _sl(b_ref, offs_b, 'en1_w'); en1_b = _sl(b_ref, offs_b, 'en1_b')

        nm_w2 = _sl(c_ref, offs_c, 'nm_w2'); nm_b2 = _sl(c_ref, offs_c, 'nm_b2')
        nn1_w = _sl(c_ref, offs_c, 'nn1_w'); nn1_b = _sl(c_ref, offs_c, 'nn1_b')
        nn2_w = _sl(c_ref, offs_c, 'nn2_w'); nn2_b = _sl(c_ref, offs_c, 'nn2_b')
        f_w2 = _sl(c_ref, offs_c, 'f_w2'); f_b2 = _sl(c_ref, offs_c, 'f_b2')
        en2_b = _sl(c_ref, offs_c, 'en2_b')[:, :1]        # (1, 1) LayerNorm(1) bias

        lw1a = _sl(l1_ref, offs_l1, 'w1a'); lw1b = _sl(l1_ref, offs_l1, 'w1b')
        lb1 = _sl(l1_ref, offs_l1, 'b1')
        lw2 = _sl(l2_ref, offs_l2, 'w2'); lb2 = _sl(l2_ref, offs_l2, 'b2')

        # -------------------- EGNN_sparse (global edges) -----------------
        # vec = pos[src] - pos[dst] via the single precomputed +/-1 matrix.
        vec = _bdot(dg_ref[...], pos)                            # [Eg, 3]
        dist = jnp.sum(vec * vec, axis=-1, keepdims=True)        # [Eg, 1]

        # edge_mlp1 on cat([x_i, x_j, dist]) via row-split weights
        # (project first, gather the projected matrices with bf16 one-hots).
        xi = _bdot(gd_ref[...], _dot(h, e1_w1x))                 # [Eg, 2H]
        xj = _bdot(gs_ref[...], _dot(h, e1_w1y))                 # [Eg, 2H]
        t = _silu(xi + xj + dist * e1_w1d + e1_b1)
        m1 = _silu(_dot(t, e1_w2) + e1_b2)                       # [Eg, m]
        m1 = _ln(m1, en1_w, en1_b)

        # scatter-mean over targets: 0/1 add-matrix in bf16, fp32 1/deg scale.
        m1_i = _bdot(aag_ref[...], m1) * inv_deg                 # [N, m]

        # edge_mlp2 path: edge_norm2 == LayerNorm(1) => output == its bias,
        # so m2_ij = (pos_i - pos_j) * bias and the whole message+aggregate
        # collapses to one precomputed [N, N] operator.
        pos_new = pos + en2_b * _dot(lpos_ref[...], pos)         # [N, 3]

        xn = _ln(h, nn1_w, nn1_b)
        u = _silu(_dot(xn, nm_w1x) + _dot(m1_i, nm_w1m) + nm_b1)
        u = _dot(u, nm_w2) + nm_b2
        u = _ln(u, nn2_w, nn2_b)
        h1 = h + u

        # ------------------------ GINEConv (local edges) -----------------
        # edge_cat(ear, eap) is h-independent -> precomputed in the wrapper.
        ea = ea_ref[...]                                          # [El, H]
        msg = _silu(_bdot(gl_ref[...], h) * ea)                   # swish(x_j * attr)
        agg = _bdot(aal_ref[...], msg) + h                        # add-agg + (1+eps)*x
        h2 = _dot(_silu(_dot(agg, f_w1) + f_b1), f_w2) + f_b2     # fin MLP

        # ------------------------ shared lincat ---------------------------
        dh = _silu(_dot(h1, lw1a) + _dot(h2, lw1b) + lb1)
        dh = _dot(dh, lw2) + lb2
        h_new = h + dh

        h_ref[...] = h_new
        pos_ref[...] = pos_new
        o_ref[...] = h_new

    return kernel


# ------------------------------ Parameters -------------------------------------

def _linear(key, din, dout):
    kw, kb = jax.random.split(key)
    bound = 1.0 / (din ** 0.5)
    w = jax.random.uniform(kw, (din, dout), jnp.float32, -bound, bound)
    b = jax.random.uniform(kb, (1, dout), jnp.float32, -bound, bound)
    return w, b


def _mlp2_params(key, din, dh, dout):
    k1, k2 = jax.random.split(key)
    w1, b1 = _linear(k1, din, dh)
    w2, b2 = _linear(k2, dh, dout)
    return (w1, b1, w2, b2)


def _ln_params(d):
    return (jnp.ones((1, d), jnp.float32), jnp.zeros((1, d), jnp.float32))


def init_params(key, hidden, num_convs):
    m_dim = hidden // 2
    keys = jax.random.split(key, 4 * num_convs + 1)
    layers = []
    for i in range(num_convs):
        k_e1, k_e2, k_nm, k_gin = keys[4 * i:4 * i + 4]
        k_gc, k_gf = jax.random.split(k_gin)
        egnn = {
            'edge_mlp1': _mlp2_params(k_e1, 2 * hidden + 1, 2 * hidden, m_dim),
            # edge_mlp2 kept for parameter parity but provably dead in eval:
            # its output is erased by edge_norm2 = LayerNorm(1).
            'edge_mlp2': _mlp2_params(k_e2, 2 * hidden + 1, 2 * hidden, 1),
            'edge_norm1': _ln_params(m_dim),
            'edge_norm2': _ln_params(1),
            'node_norm1': _ln_params(hidden),
            'node_norm2': _ln_params(hidden),
            'node_mlp': _mlp2_params(k_nm, hidden + m_dim, 2 * hidden, hidden),
        }
        gin = {
            'edge_cat': _mlp2_params(k_gc, 2 * hidden, 2 * hidden, hidden),
            'fin': _mlp2_params(k_gf, hidden, 2 * hidden, hidden),
        }
        layers.append({'egnn': egnn, 'gin': gin})
    lincat = _mlp2_params(keys[-1], 2 * hidden, 2 * hidden, hidden)  # shared
    return {'layers': layers, 'lincat': lincat}


# ------------------------- wrapper-side precompute -----------------------------

def _build_weight_slabs(params, hidden):
    H, m = hidden, hidden // 2
    layouts = _slab_layouts(hidden)
    (offs_a, ra, ca), (offs_b, rb, cb), (offs_c, rc, cc), \
        (offs_l1, rl1, cl1), (offs_l2, rl2, cl2) = layouts

    slabs_a, slabs_b, slabs_c = [], [], []
    for lp in params['layers']:
        e, g = lp['egnn'], lp['gin']
        w1, b1, w2, b2 = e['edge_mlp1']
        nw1, nb1, nw2, nb2 = e['node_mlp']
        fw1, fb1, fw2, fb2 = g['fin']
        slabs_a.append(_pack_slab({
            'e1_w1x': w1[:H], 'e1_w1y': w1[H:2 * H],
            'e1_w1d': w1[2 * H:2 * H + 1], 'e1_b1': b1,
            'nm_w1x': nw1[:H], 'nm_w1m': nw1[H:H + m], 'nm_b1': nb1,
            'f_w1': fw1, 'f_b1': fb1}, offs_a, ra, ca))
        slabs_b.append(_pack_slab({
            'e1_w2': w2, 'e1_b2': b2,
            'en1_w': e['edge_norm1'][0], 'en1_b': e['edge_norm1'][1]},
            offs_b, rb, cb))
        slabs_c.append(_pack_slab({
            'nm_w2': nw2, 'nm_b2': nb2,
            'nn1_w': e['node_norm1'][0], 'nn1_b': e['node_norm1'][1],
            'nn2_w': e['node_norm2'][0], 'nn2_b': e['node_norm2'][1],
            'f_w2': fw2, 'f_b2': fb2,
            'en2_b': jnp.broadcast_to(e['edge_norm2'][1], (1, H))},
            offs_c, rc, cc))

    lw1, lb1, lw2, lb2 = params['lincat']
    lin1 = _pack_slab({'w1a': lw1[:H], 'w1b': lw1[H:], 'b1': lb1},
                      offs_l1, rl1, cl1)
    lin2 = _pack_slab({'w2': lw2, 'b2': lb2}, offs_l2, rl2, cl2)

    return (jnp.stack(slabs_a), jnp.stack(slabs_b), jnp.stack(slabs_c),
            lin1, lin2, layouts)


def _precompute_edge_cat(params, edge_attr_r, edge_attr_p, hidden):
    """GIN edge_cat depends only on the (fixed) edge attrs -> hoisted."""
    H = hidden
    outs = []
    for lp in params['layers']:
        cw1, cb1, cw2, cb2 = lp['gin']['edge_cat']
        t = _silu(edge_attr_r @ cw1[:H] + edge_attr_p @ cw1[H:] + cb1)
        outs.append(t @ cw2 + cb2)
    return jnp.stack(outs)                                   # [L, El, H]


def _one_hot(idx, n):
    return (jnp.arange(n, dtype=idx.dtype)[None, :] == idx[:, None]).astype(jnp.float32)


def _build_structure(edge_index_global, edge_index_local, n):
    gs = _one_hot(edge_index_global[0], n)      # [Eg, N] source gather (j)
    gd = _one_hot(edge_index_global[1], n)      # [Eg, N] target gather (i)
    dg = gs - gd                                # pos[src]-pos[dst] operator
    deg = jnp.sum(gd, axis=0)
    inv_deg = (1.0 / jnp.maximum(deg, 1.0))[:, None]           # [N, 1] fp32
    lpos = (gd.T @ (gd - gs)) * inv_deg                         # [N, N] fp32
    gl = _one_hot(edge_index_local[0], n)       # [El, N] source gather
    aal = _one_hot(edge_index_local[1], n).T    # [N, El] scatter-add
    bf = jnp.bfloat16                            # 0/1 and +/-1 exact in bf16
    return (gs.astype(bf), gd.astype(bf), dg.astype(bf), gd.T.astype(bf),
            inv_deg, lpos, gl.astype(bf), aal.astype(bf))


# -------------------------------- Forward --------------------------------------

def encoder_forward(params, node, edge_index_local, edge_attr_r, edge_attr_p,
                    edge_index_global, pos):
    n, hidden = node.shape
    num_layers = len(params['layers'])

    (gs, gd, dg, aag, inv_deg, lpos, gl, aal) = _build_structure(
        edge_index_global, edge_index_local, n)
    slab_a, slab_b, slab_c, lin1, lin2, layouts = _build_weight_slabs(params, hidden)
    ea_all = _precompute_edge_cat(params, edge_attr_r, edge_attr_p, hidden)

    kernel = _make_kernel(layouts)

    def full(shape):
        nd = len(shape)
        return pl.BlockSpec(shape, lambda l: (0,) * nd)

    def stacked(shape):                 # leading layer axis, squeezed in-kernel
        nd = len(shape)
        return pl.BlockSpec((None,) + tuple(shape), lambda l: (l,) + (0,) * nd)

    in_specs = [
        full(node.shape), full(pos.shape), stacked(ea_all.shape[1:]),
        full(gs.shape), full(gd.shape), full(dg.shape), full(aag.shape),
        full(inv_deg.shape), full(lpos.shape), full(gl.shape), full(aal.shape),
        stacked(slab_a.shape[1:]), stacked(slab_b.shape[1:]),
        stacked(slab_c.shape[1:]), full(lin1.shape), full(lin2.shape),
    ]

    return pl.pallas_call(
        kernel,
        grid=(num_layers,),
        in_specs=in_specs,
        out_specs=pl.BlockSpec((n, hidden), lambda l: (0, 0)),
        out_shape=jax.ShapeDtypeStruct((n, hidden), jnp.float32),
        scratch_shapes=[pltpu.VMEM((n, hidden), jnp.float32),   # h carry
                        pltpu.VMEM((n, 3), jnp.float32)],       # pos carry
        input_output_aliases={0: 0},
        compiler_params=pltpu.CompilerParams(
            dimension_semantics=("arbitrary",),
            vmem_limit_bytes=64 * 1024 * 1024),
    )(node, pos, ea_all, gs, gd, dg, aag, inv_deg, lpos, gl, aal,
      slab_a, slab_b, slab_c, lin1, lin2)


# -------------------------------- Driver ---------------------------------------

if __name__ == "__main__":
    N, HIDDEN, NUM_CONVS = 16, 32, 2
    E_GLOBAL, E_LOCAL = 48, 24

    key = jax.random.PRNGKey(0)
    ks = jax.random.split(key, 8)
    node = jax.random.normal(ks[0], (N, HIDDEN), jnp.float32)
    pos = jax.random.normal(ks[1], (N, 3), jnp.float32)
    edge_index_global = jax.random.randint(ks[2], (2, E_GLOBAL), 0, N, jnp.int32)
    edge_index_local = jax.random.randint(ks[3], (2, E_LOCAL), 0, N, jnp.int32)
    edge_attr_r = jax.random.normal(ks[4], (E_LOCAL, HIDDEN), jnp.float32)
    edge_attr_p = jax.random.normal(ks[5], (E_LOCAL, HIDDEN), jnp.float32)

    params = init_params(ks[6], HIDDEN, NUM_CONVS)

    fwd = jax.jit(encoder_forward)
    h_out = fwd(params, node, edge_index_local, edge_attr_r, edge_attr_p,
                edge_index_global, pos)
    jax.block_until_ready(h_out)

    assert h_out.shape == (N, HIDDEN)
    assert bool(jnp.all(jnp.isfinite(h_out)))
    print("KERNEL_OK")
</pallas_src>

<mosaic_0001>
module attributes {stable_mosaic.version = 11 : i64} {
  func.func @kernel(%arg0: i32, %arg1: memref<16x32xf32, #tpu.memory_space<vmem>>, %arg2: memref<16x3xf32, #tpu.memory_space<vmem>>, %arg3: memref<1x24x32xf32, #tpu.memory_space<vmem>>, %arg4: memref<48x16xbf16, #tpu.memory_space<vmem>>, %arg5: memref<48x16xbf16, #tpu.memory_space<vmem>>, %arg6: memref<48x16xbf16, #tpu.memory_space<vmem>>, %arg7: memref<16x48xbf16, #tpu.memory_space<vmem>>, %arg8: memref<16x1xf32, #tpu.memory_space<vmem>>, %arg9: memref<16x16xf32, #tpu.memory_space<vmem>>, %arg10: memref<24x16xbf16, #tpu.memory_space<vmem>>, %arg11: memref<16x24xbf16, #tpu.memory_space<vmem>>, %arg12: memref<1x176x64xf32, #tpu.memory_space<vmem>>, %arg13: memref<1x88x16xf32, #tpu.memory_space<vmem>>, %arg14: memref<1x184x32xf32, #tpu.memory_space<vmem>>, %arg15: memref<72x64xf32, #tpu.memory_space<vmem>>, %arg16: memref<72x32xf32, #tpu.memory_space<vmem>>, %arg17: memref<16x32xf32, #tpu.memory_space<vmem>>, %arg18: memref<16x32xf32, #tpu.memory_space<vmem>>, %arg19: memref<16x3xf32, #tpu.memory_space<vmem>>) attributes {dimension_semantics = [#tpu.dimension_semantics<arbitrary>], iteration_bounds = array<i64: 2>, scalar_prefetch = 0 : i64, scratch_operands = 2 : i64, tpu.core_type = #tpu.core_type<tc>, window_params = [{pipeline_mode = #tpu.pipeline_mode<synchronous>, transform_indices = @transform_0, window_bounds = array<i64: 16, 32>}, {pipeline_mode = #tpu.pipeline_mode<synchronous>, transform_indices = @transform_1, window_bounds = array<i64: 16, 3>}, {transform_indices = @transform_2, window_bounds = array<i64: 1, 24, 32>}, {pipeline_mode = #tpu.pipeline_mode<synchronous>, transform_indices = @transform_3, window_bounds = array<i64: 48, 16>}, {pipeline_mode = #tpu.pipeline_mode<synchronous>, transform_indices = @transform_4, window_bounds = array<i64: 48, 16>}, {pipeline_mode = #tpu.pipeline_mode<synchronous>, transform_indices = @transform_5, window_bounds = array<i64: 48, 16>}, {pipeline_mode = #tpu.pipeline_mode<synchronous>, transform_indices = @transform_6, window_bounds = array<i64: 16, 48>}, {pipeline_mode = #tpu.pipeline_mode<synchronous>, transform_indices = @transform_7, window_bounds = array<i64: 16, 1>}, {pipeline_mode = #tpu.pipeline_mode<synchronous>, transform_indices = @transform_8, window_bounds = array<i64: 16, 16>}, {pipeline_mode = #tpu.pipeline_mode<synchronous>, transform_indices = @transform_9, window_bounds = array<i64: 24, 16>}, {pipeline_mode = #tpu.pipeline_mode<synchronous>, transform_indices = @transform_10, window_bounds = array<i64: 16, 24>}, {transform_indices = @transform_11, window_bounds = array<i64: 1, 176, 64>}, {transform_indices = @transform_12, window_bounds = array<i64: 1, 88, 16>}, {transform_indices = @transform_13, window_bounds = array<i64: 1, 184, 32>}, {pipeline_mode = #tpu.pipeline_mode<synchronous>, transform_indices = @transform_14, window_bounds = array<i64: 72, 64>}, {pipeline_mode = #tpu.pipeline_mode<synchronous>, transform_indices = @transform_15, window_bounds = array<i64: 72, 32>}, {pipeline_mode = #tpu.pipeline_mode<synchronous>, transform_indices = @transform_16, window_bounds = array<i64: 16, 32>}]} {
    %c0_i32 = arith.constant 0 : i32
    %0 = arith.cmpi eq, %arg0, %c0_i32 : i32
    %1 = arith.extui %0 : i1 to i32
    %c0_i32_0 = arith.constant 0 : i32
    %2 = arith.cmpi ne, %1, %c0_i32_0 : i32
    scf.if %2 {
      %c0_132 = arith.constant 0 : index
      %c0_133 = arith.constant 0 : index
      %223 = vector.load %arg1[%c0_132, %c0_133] : memref<16x32xf32, #tpu.memory_space<vmem>>, vector<16x32xf32>
      %c0_134 = arith.constant 0 : index
      %c0_135 = arith.constant 0 : index
      %224 = vector.load %arg18[%c0_134, %c0_135] : memref<16x32xf32, #tpu.memory_space<vmem>>, vector<16x32xf32>
      tpu.vector_store %arg18[%c0_134, %c0_135], %223 {strides = array<i32>} : memref<16x32xf32, #tpu.memory_space<vmem>>, vector<16x32xf32>,
      %c0_136 = arith.constant 0 : index
      %c0_137 = arith.constant 0 : index
      %225 = vector.load %arg2[%c0_136, %c0_137] : memref<16x3xf32, #tpu.memory_space<vmem>>, vector<16x3xf32>
      %c0_138 = arith.constant 0 : index
      %c0_139 = arith.constant 0 : index
      %226 = vector.load %arg19[%c0_138, %c0_139] : memref<16x3xf32, #tpu.memory_space<vmem>>, vector<16x3xf32>
      tpu.vector_store %arg19[%c0_138, %c0_139], %225 {strides = array<i32>} : memref<16x3xf32, #tpu.memory_space<vmem>>, vector<16x3xf32>,
    } else {
    }
    %c0 = arith.constant 0 : index
    %c0_1 = arith.constant 0 : index
    %3 = vector.load %arg18[%c0, %c0_1] : memref<16x32xf32, #tpu.memory_space<vmem>>, vector<16x32xf32>
    %c0_2 = arith.constant 0 : index
    %c0_3 = arith.constant 0 : index
    %4 = vector.load %arg19[%c0_2, %c0_3] : memref<16x3xf32, #tpu.memory_space<vmem>>, vector<16x3xf32>
    %c0_4 = arith.constant 0 : index
    %c0_5 = arith.constant 0 : index
    %5 = vector.load %arg8[%c0_4, %c0_5] : memref<16x1xf32, #tpu.memory_space<vmem>>, vector<16x1xf32>
    %c0_6 = arith.constant 0 : index
    %c0_7 = arith.constant 0 : index
    %c0_8 = arith.constant 0 : index
    %6 = vector.load %arg12[%c0_6, %c0_7, %c0_8] : memref<1x176x64xf32, #tpu.memory_space<vmem>>, vector<1x32x64xf32>
    %7 = vector.shape_cast %6 : vector<1x32x64xf32> to vector<32x64xf32>
    %c0_9 = arith.constant 0 : index
    %c32 = arith.constant 32 : index
    %c0_10 = arith.constant 0 : index
    %8 = vector.load %arg12[%c0_9, %c32, %c0_10] : memref<1x176x64xf32, #tpu.memory_space<vmem>>, vector<1x32x64xf32>
    %9 = vector.shape_cast %8 : vector<1x32x64xf32> to vector<32x64xf32>
    %c0_11 = arith.constant 0 : index
    %c64 = arith.constant 64 : index
    %c0_12 = arith.constant 0 : index
    %10 = vector.load %arg12[%c0_11, %c64, %c0_12] : memref<1x176x64xf32, #tpu.memory_space<vmem>>, vector<1x1x64xf32>
    %11 = vector.shape_cast %10 : vector<1x1x64xf32> to vector<1x64xf32>
    %c0_13 = arith.constant 0 : index
    %c72 = arith.constant 72 : index
    %c0_14 = arith.constant 0 : index
    %12 = vector.load %arg12[%c0_13, %c72, %c0_14] : memref<1x176x64xf32, #tpu.memory_space<vmem>>, vector<1x1x64xf32>
    %13 = vector.shape_cast %12 : vector<1x1x64xf32> to vector<1x64xf32>
    %c0_15 = arith.constant 0 : index
    %c80 = arith.constant 80 : index
    %c0_16 = arith.constant 0 : index
    %14 = vector.load %arg12[%c0_15, %c80, %c0_16] : memref<1x176x64xf32, #tpu.memory_space<vmem>>, vector<1x32x64xf32>
    %15 = vector.shape_cast %14 : vector<1x32x64xf32> to vector<32x64xf32>
    %c0_17 = arith.constant 0 : index
    %c112 = arith.constant 112 : index
    %c0_18 = arith.constant 0 : index
    %16 = vector.load %arg12[%c0_17, %c112, %c0_18] : memref<1x176x64xf32, #tpu.memory_space<vmem>>, vector<1x16x64xf32>
    %17 = vector.shape_cast %16 : vector<1x16x64xf32> to vector<16x64xf32>
    %c0_19 = arith.constant 0 : index
    %c128 = arith.constant 128 : index
    %c0_20 = arith.constant 0 : index
    %18 = vector.load %arg12[%c0_19, %c128, %c0_20] : memref<1x176x64xf32, #tpu.memory_space<vmem>>, vector<1x1x64xf32>
    %19 = vector.shape_cast %18 : vector<1x1x64xf32> to vector<1x64xf32>
    %c0_21 = arith.constant 0 : index
    %c136 = arith.constant 136 : index
    %c0_22 = arith.constant 0 : index
    %20 = vector.load %arg12[%c0_21, %c136, %c0_22] : memref<1x176x64xf32, #tpu.memory_space<vmem>>, vector<1x32x64xf32>
    %21 = vector.shape_cast %20 : vector<1x32x64xf32> to vector<32x64xf32>
    %c0_23 = arith.constant 0 : index
    %c168 = arith.constant 168 : index
    %c0_24 = arith.constant 0 : index
    %22 = vector.load %arg12[%c0_23, %c168, %c0_24] : memref<1x176x64xf32, #tpu.memory_space<vmem>>, vector<1x1x64xf32>
    %23 = vector.shape_cast %22 : vector<1x1x64xf32> to vector<1x64xf32>
    %c0_25 = arith.constant 0 : index
    %c0_26 = arith.constant 0 : index
    %c0_27 = arith.constant 0 : index
    %24 = vector.load %arg13[%c0_25, %c0_26, %c0_27] : memref<1x88x16xf32, #tpu.memory_space<vmem>>, vector<1x64x16xf32>
    %25 = vector.shape_cast %24 : vector<1x64x16xf32> to vector<64x16xf32>
    %c0_28 = arith.constant 0 : index
    %c64_29 = arith.constant 64 : index
    %c0_30 = arith.constant 0 : index
    %26 = vector.load %arg13[%c0_28, %c64_29, %c0_30] : memref<1x88x16xf32, #tpu.memory_space<vmem>>, vector<1x1x16xf32>
    %27 = vector.shape_cast %26 : vector<1x1x16xf32> to vector<1x16xf32>
    %c0_31 = arith.constant 0 : index
    %c72_32 = arith.constant 72 : index
    %c0_33 = arith.constant 0 : index
    %28 = vector.load %arg13[%c0_31, %c72_32, %c0_33] : memref<1x88x16xf32, #tpu.memory_space<vmem>>, vector<1x1x16xf32>
    %29 = vector.shape_cast %28 : vector<1x1x16xf32> to vector<1x16xf32>
    %c0_34 = arith.constant 0 : index
    %c80_35 = arith.constant 80 : index
    %c0_36 = arith.constant 0 : index
    %30 = vector.load %arg13[%c0_34, %c80_35, %c0_36] : memref<1x88x16xf32, #tpu.memory_space<vmem>>, vector<1x1x16xf32>
    %31 = vector.shape_cast %30 : vector<1x1x16xf32> to vector<1x16xf32>
    %c0_37 = arith.constant 0 : index
    %c0_38 = arith.constant 0 : index
    %c0_39 = arith.constant 0 : index
    %32 = vector.load %arg14[%c0_37, %c0_38, %c0_39] : memref<1x184x32xf32, #tpu.memory_space<vmem>>, vector<1x64x32xf32>
    %33 = vector.shape_cast %32 : vector<1x64x32xf32> to vector<64x32xf32>
    %c0_40 = arith.constant 0 : index
    %c64_41 = arith.constant 64 : index
    %c0_42 = arith.constant 0 : index
    %34 = vector.load %arg14[%c0_40, %c64_41, %c0_42] : memref<1x184x32xf32, #tpu.memory_space<vmem>>, vector<1x1x32xf32>
    %35 = vector.shape_cast %34 : vector<1x1x32xf32> to vector<1x32xf32>
    %c0_43 = arith.constant 0 : index
    %c72_44 = arith.constant 72 : index
    %c0_45 = arith.constant 0 : index
    %36 = vector.load %arg14[%c0_43, %c72_44, %c0_45] : memref<1x184x32xf32, #tpu.memory_space<vmem>>, vector<1x1x32xf32>
    %37 = vector.shape_cast %36 : vector<1x1x32xf32> to vector<1x32xf32>
    %c0_46 = arith.constant 0 : index
    %c80_47 = arith.constant 80 : index
    %c0_48 = arith.constant 0 : index
    %38 = vector.load %arg14[%c0_46, %c80_47, %c0_48] : memref<1x184x32xf32, #tpu.memory_space<vmem>>, vector<1x1x32xf32>
    %39 = vector.shape_cast %38 : vector<1x1x32xf32> to vector<1x32xf32>
    %c0_49 = arith.constant 0 : index
    %c88 = arith.constant 88 : index
    %c0_50 = arith.constant 0 : index
    %40 = vector.load %arg14[%c0_49, %c88, %c0_50] : memref<1x184x32xf32, #tpu.memory_space<vmem>>, vector<1x1x32xf32>
    %41 = vector.shape_cast %40 : vector<1x1x32xf32> to vector<1x32xf32>
    %c0_51 = arith.constant 0 : index
    %c96 = arith.constant 96 : index
    %c0_52 = arith.constant 0 : index
    %42 = vector.load %arg14[%c0_51, %c96, %c0_52] : memref<1x184x32xf32, #tpu.memory_space<vmem>>, vector<1x1x32xf32>
    %43 = vector.shape_cast %42 : vector<1x1x32xf32> to vector<1x32xf32>
    %c0_53 = arith.constant 0 : index
    %c104 = arith.constant 104 : index
    %c0_54 = arith.constant 0 : index
    %44 = vector.load %arg14[%c0_53, %c104, %c0_54] : memref<1x184x32xf32, #tpu.memory_space<vmem>>, vector<1x64x32xf32>
    %45 = vector.shape_cast %44 : vector<1x64x32xf32> to vector<64x32xf32>
    %c0_55 = arith.constant 0 : index
    %c168_56 = arith.constant 168 : index
    %c0_57 = arith.constant 0 : index
    %46 = vector.load %arg14[%c0_55, %c168_56, %c0_57] : memref<1x184x32xf32, #tpu.memory_space<vmem>>, vector<1x1x32xf32>
    %47 = vector.shape_cast %46 : vector<1x1x32xf32> to vector<1x32xf32>
    %c0_58 = arith.constant 0 : index
    %c176 = arith.constant 176 : index
    %c0_59 = arith.constant 0 : index
    %48 = vector.load %arg14[%c0_58, %c176, %c0_59] : memref<1x184x32xf32, #tpu.memory_space<vmem>>, vector<1x1x32xf32>
    %49 = vector.shape_cast %48 : vector<1x1x32xf32> to vector<1x32xf32>
    %50 = vector.extract_strided_slice %49 {offsets = [0, 0], sizes = [1, 1], strides = [1, 1]} : vector<1x32xf32> to vector<1x1xf32>
    %c0_60 = arith.constant 0 : index
    %c0_61 = arith.constant 0 : index
    %51 = vector.load %arg15[%c0_60, %c0_61] : memref<72x64xf32, #tpu.memory_space<vmem>>, vector<32x64xf32>
    %c32_62 = arith.constant 32 : index
    %c0_63 = arith.constant 0 : index
    %52 = vector.load %arg15[%c32_62, %c0_63] : memref<72x64xf32, #tpu.memory_space<vmem>>, vector<32x64xf32>
    %c64_64 = arith.constant 64 : index
    %c0_65 = arith.constant 0 : index
    %53 = vector.load %arg15[%c64_64, %c0_65] : memref<72x64xf32, #tpu.memory_space<vmem>>, vector<1x64xf32>
    %c0_66 = arith.constant 0 : index
    %c0_67 = arith.constant 0 : index
    %54 = vector.load %arg16[%c0_66, %c0_67] : memref<72x32xf32, #tpu.memory_space<vmem>>, vector<64x32xf32>
    %c64_68 = arith.constant 64 : index
    %c0_69 = arith.constant 0 : index
    %55 = vector.load %arg16[%c64_68, %c0_69] : memref<72x32xf32, #tpu.memory_space<vmem>>, vector<1x32xf32>
    %c0_70 = arith.constant 0 : index
    %c0_71 = arith.constant 0 : index
    %56 = vector.load %arg6[%c0_70, %c0_71] : memref<48x16xbf16, #tpu.memory_space<vmem>>, vector<48x16xbf16>
    %57 = arith.truncf %4 : vector<16x3xf32> to vector<16x3xbf16>
    %cst = arith.constant dense<0.000000e+00> : vector<48x3xf32>
    %58 = tpu.matmul %56, %57, %cst {dimension_numbers = #tpu.dot_dimension_numbers<[1], [0], [0], [1], [0, 0, 1, 1], [], []>} : vector<48x16xbf16>, vector<16x3xbf16>, vector<48x3xf32> -> vector<48x3xf32>
    %59 = arith.mulf %58, %58 : vector<48x3xf32>
    %cst_72 = arith.constant dense<0.000000e+00> : vector<48xf32>
    %60 = vector.multi_reduction <add>, %59, %cst_72 [1] : vector<48x3xf32> to vector<48xf32>
    %61 = vector.shape_cast %60 : vector<48xf32> to vector<48x1xf32>
    %c0_73 = arith.constant 0 : index
    %c0_74 = arith.constant 0 : index
    %62 = vector.load %arg5[%c0_73, %c0_74] : memref<48x16xbf16, #tpu.memory_space<vmem>>, vector<48x16xbf16>
    %cst_75 = arith.constant dense<0.000000e+00> : vector<16x64xf32>
    %63 = tpu.matmul %3, %7, %cst_75 {dimension_numbers = #tpu.dot_dimension_numbers<[1], [0], [0], [1], [0, 0, 1, 1], [], []>} : vector<16x32xf32>, vector<32x64xf32>, vector<16x64xf32> -> vector<16x64xf32>
    %64 = arith.truncf %63 : vector<16x64xf32> to vector<16x64xbf16>
    %cst_76 = arith.constant dense<0.000000e+00> : vector<48x64xf32>
    %65 = tpu.matmul %62, %64, %cst_76 {dimension_numbers = #tpu.dot_dimension_numbers<[1], [0], [0], [1], [0, 0, 1, 1], [], []>} : vector<48x16xbf16>, vector<16x64xbf16>, vector<48x64xf32> -> vector<48x64xf32>
    %c0_77 = arith.constant 0 : index
    %c0_78 = arith.constant 0 : index
    %66 = vector.load %arg4[%c0_77, %c0_78] : memref<48x16xbf16, #tpu.memory_space<vmem>>, vector<48x16xbf16>
    %cst_79 = arith.constant dense<0.000000e+00> : vector<16x64xf32>
    %67 = tpu.matmul %3, %9, %cst_79 {dimension_numbers = #tpu.dot_dimension_numbers<[1], [0], [0], [1], [0, 0, 1, 1], [], []>} : vector<16x32xf32>, vector<32x64xf32>, vector<16x64xf32> -> vector<16x64xf32>
    %68 = arith.truncf %67 : vector<16x64xf32> to vector<16x64xbf16>
    %cst_80 = arith.constant dense<0.000000e+00> : vector<48x64xf32>
    %69 = tpu.matmul %66, %68, %cst_80 {dimension_numbers = #tpu.dot_dimension_numbers<[1], [0], [0], [1], [0, 0, 1, 1], [], []>} : vector<48x16xbf16>, vector<16x64xbf16>, vector<48x64xf32> -> vector<48x64xf32>
    %70 = arith.addf %65, %69 : vector<48x64xf32>
    %71 = vector.broadcast %61 : vector<48x1xf32> to vector<48x64xf32>
    %72 = vector.broadcast %11 : vector<1x64xf32> to vector<48x64xf32>
    %73 = arith.mulf %71, %72 : vector<48x64xf32>
    %74 = arith.addf %70, %73 : vector<48x64xf32>
    %75 = vector.broadcast %13 : vector<1x64xf32> to vector<48x64xf32>
    %76 = arith.addf %74, %75 : vector<48x64xf32>
    %77 = arith.negf %76 : vector<48x64xf32>
    %78 = math.exp %77 : vector<48x64xf32>
    %cst_81 = arith.constant 1.000000e+00 : f32
    %79 = vector.broadcast %cst_81 : f32 to vector<48x64xf32>
    %80 = arith.addf %79, %78 : vector<48x64xf32>
    %81 = arith.divf %79, %80 : vector<48x64xf32>
    %82 = arith.mulf %76, %81 : vector<48x64xf32>
    %cst_82 = arith.constant dense<0.000000e+00> : vector<48x16xf32>
    %83 = tpu.matmul %82, %25, %cst_82 {dimension_numbers = #tpu.dot_dimension_numbers<[1], [0], [0], [1], [0, 0, 1, 1], [], []>} : vector<48x64xf32>, vector<64x16xf32>, vector<48x16xf32> -> vector<48x16xf32>
    %84 = vector.broadcast %27 : vector<1x16xf32> to vector<48x16xf32>
    %85 = arith.addf %83, %84 : vector<48x16xf32>
    %86 = arith.negf %85 : vector<48x16xf32>
    %87 = math.exp %86 : vector<48x16xf32>
    %cst_83 = arith.constant 1.000000e+00 : f32
    %88 = vector.broadcast %cst_83 : f32 to vector<48x16xf32>
    %89 = arith.addf %88, %87 : vector<48x16xf32>
    %90 = arith.divf %88, %89 : vector<48x16xf32>
    %91 = arith.mulf %85, %90 : vector<48x16xf32>
    %cst_84 = arith.constant dense<0.000000e+00> : vector<48xf32>
    %92 = vector.multi_reduction <add>, %91, %cst_84 [1] : vector<48x16xf32> to vector<48xf32>
    %93 = vector.shape_cast %92 : vector<48xf32> to vector<48x1xf32>
    %cst_85 = arith.constant 1.600000e+01 : f32
    %94 = vector.broadcast %cst_85 : f32 to vector<48x1xf32>
    %95 = arith.divf %93, %94 : vector<48x1xf32>
    %96 = vector.broadcast %95 : vector<48x1xf32> to vector<48x16xf32>
    %97 = arith.subf %91, %96 : vector<48x16xf32>
    %98 = arith.mulf %97, %97 : vector<48x16xf32>
    %cst_86 = arith.constant dense<0.000000e+00> : vector<48xf32>
    %99 = vector.multi_reduction <add>, %98, %cst_86 [1] : vector<48x16xf32> to vector<48xf32>
    %100 = vector.shape_cast %99 : vector<48xf32> to vector<48x1xf32>
    %cst_87 = arith.constant 1.600000e+01 : f32
    %101 = vector.broadcast %cst_87 : f32 to vector<48x1xf32>
    %102 = arith.divf %100, %101 : vector<48x1xf32>
    %cst_88 = arith.constant 9.99999974E-6 : f32
    %103 = vector.broadcast %cst_88 : f32 to vector<48x1xf32>
    %104 = arith.addf %102, %103 : vector<48x1xf32>
    %105 = math.rsqrt %104 : vector<48x1xf32>
    %106 = vector.broadcast %105 : vector<48x1xf32> to vector<48x16xf32>
    %107 = arith.mulf %97, %106 : vector<48x16xf32>
    %108 = vector.broadcast %29 : vector<1x16xf32> to vector<48x16xf32>
    %109 = arith.mulf %107, %108 : vector<48x16xf32>
    %110 = vector.broadcast %31 : vector<1x16xf32> to vector<48x16xf32>
    %111 = arith.addf %109, %110 : vector<48x16xf32>
    %c0_89 = arith.constant 0 : index
    %c0_90 = arith.constant 0 : index
    %112 = vector.load %arg7[%c0_89, %c0_90] : memref<16x48xbf16, #tpu.memory_space<vmem>>, vector<16x48xbf16>
    %113 = arith.truncf %111 : vector<48x16xf32> to vector<48x16xbf16>
    %cst_91 = arith.constant dense<0.000000e+00> : vector<16x16xf32>
    %114 = tpu.matmul %112, %113, %cst_91 {dimension_numbers = #tpu.dot_dimension_numbers<[1], [0], [0], [1], [0, 0, 1, 1], [], []>} : vector<16x48xbf16>, vector<48x16xbf16>, vector<16x16xf32> -> vector<16x16xf32>
    %115 = vector.broadcast %5 : vector<16x1xf32> to vector<16x16xf32>
    %116 = arith.mulf %114, %115 : vector<16x16xf32>
    %c0_92 = arith.constant 0 : index
    %c0_93 = arith.constant 0 : index
    %117 = vector.load %arg9[%c0_92, %c0_93] : memref<16x16xf32, #tpu.memory_space<vmem>>, vector<16x16xf32>
    %cst_94 = arith.constant dense<0.000000e+00> : vector<16x3xf32>
    %118 = tpu.matmul %117, %4, %cst_94 {dimension_numbers = #tpu.dot_dimension_numbers<[1], [0], [0], [1], [0, 0, 1, 1], [], []>} : vector<16x16xf32>, vector<16x3xf32>, vector<16x3xf32> -> vector<16x3xf32>
    %119 = vector.broadcast %50 : vector<1x1xf32> to vector<16x3xf32>
    %120 = arith.mulf %119, %118 : vector<16x3xf32>
    %121 = arith.addf %4, %120 : vector<16x3xf32>
    %cst_95 = arith.constant dense<0.000000e+00> : vector<16xf32>
    %122 = vector.multi_reduction <add>, %3, %cst_95 [1] : vector<16x32xf32> to vector<16xf32>
    %123 = vector.shape_cast %122 : vector<16xf32> to vector<16x1xf32>
    %cst_96 = arith.constant 3.200000e+01 : f32
    %124 = vector.broadcast %cst_96 : f32 to vector<16x1xf32>
    %125 = arith.divf %123, %124 : vector<16x1xf32>
    %126 = vector.broadcast %125 : vector<16x1xf32> to vector<16x32xf32>
    %127 = arith.subf %3, %126 : vector<16x32xf32>
    %128 = arith.mulf %127, %127 : vector<16x32xf32>
    %cst_97 = arith.constant dense<0.000000e+00> : vector<16xf32>
    %129 = vector.multi_reduction <add>, %128, %cst_97 [1] : vector<16x32xf32> to vector<16xf32>
    %130 = vector.shape_cast %129 : vector<16xf32> to vector<16x1xf32>
    %cst_98 = arith.constant 3.200000e+01 : f32
    %131 = vector.broadcast %cst_98 : f32 to vector<16x1xf32>
    %132 = arith.divf %130, %131 : vector<16x1xf32>
    %cst_99 = arith.constant 9.99999974E-6 : f32
    %133 = vector.broadcast %cst_99 : f32 to vector<16x1xf32>
    %134 = arith.addf %132, %133 : vector<16x1xf32>
    %135 = math.rsqrt %134 : vector<16x1xf32>
    %136 = vector.broadcast %135 : vector<16x1xf32> to vector<16x32xf32>
    %137 = arith.mulf %127, %136 : vector<16x32xf32>
    %138 = vector.broadcast %37 : vector<1x32xf32> to vector<16x32xf32>
    %139 = arith.mulf %137, %138 : vector<16x32xf32>
    %140 = vector.broadcast %39 : vector<1x32xf32> to vector<16x32xf32>
    %141 = arith.addf %139, %140 : vector<16x32xf32>
    %cst_100 = arith.constant dense<0.000000e+00> : vector<16x64xf32>
    %142 = tpu.matmul %141, %15, %cst_100 {dimension_numbers = #tpu.dot_dimension_numbers<[1], [0], [0], [1], [0, 0, 1, 1], [], []>} : vector<16x32xf32>, vector<32x64xf32>, vector<16x64xf32> -> vector<16x64xf32>
    %cst_101 = arith.constant dense<0.000000e+00> : vector<16x64xf32>
    %143 = tpu.matmul %116, %17, %cst_101 {dimension_numbers = #tpu.dot_dimension_numbers<[1], [0], [0], [1], [0, 0, 1, 1], [], []>} : vector<16x16xf32>, vector<16x64xf32>, vector<16x64xf32> -> vector<16x64xf32>
    %144 = arith.addf %142, %143 : vector<16x64xf32>
    %145 = vector.broadcast %19 : vector<1x64xf32> to vector<16x64xf32>
    %146 = arith.addf %144, %145 : vector<16x64xf32>
    %147 = arith.negf %146 : vector<16x64xf32>
    %148 = math.exp %147 : vector<16x64xf32>
    %cst_102 = arith.constant 1.000000e+00 : f32
    %149 = vector.broadcast %cst_102 : f32 to vector<16x64xf32>
    %150 = arith.addf %149, %148 : vector<16x64xf32>
    %151 = arith.divf %149, %150 : vector<16x64xf32>
    %152 = arith.mulf %146, %151 : vector<16x64xf32>
    %cst_103 = arith.constant dense<0.000000e+00> : vector<16x32xf32>
    %153 = tpu.matmul %152, %33, %cst_103 {dimension_numbers = #tpu.dot_dimension_numbers<[1], [0], [0], [1], [0, 0, 1, 1], [], []>} : vector<16x64xf32>, vector<64x32xf32>, vector<16x32xf32> -> vector<16x32xf32>
    %154 = vector.broadcast %35 : vector<1x32xf32> to vector<16x32xf32>
    %155 = arith.addf %153, %154 : vector<16x32xf32>
    %cst_104 = arith.constant dense<0.000000e+00> : vector<16xf32>
    %156 = vector.multi_reduction <add>, %155, %cst_104 [1] : vector<16x32xf32> to vector<16xf32>
    %157 = vector.shape_cast %156 : vector<16xf32> to vector<16x1xf32>
    %cst_105 = arith.constant 3.200000e+01 : f32
    %158 = vector.broadcast %cst_105 : f32 to vector<16x1xf32>
    %159 = arith.divf %157, %158 : vector<16x1xf32>
    %160 = vector.broadcast %159 : vector<16x1xf32> to vector<16x32xf32>
    %161 = arith.subf %155, %160 : vector<16x32xf32>
    %162 = arith.mulf %161, %161 : vector<16x32xf32>
    %cst_106 = arith.constant dense<0.000000e+00> : vector<16xf32>
    %163 = vector.multi_reduction <add>, %162, %cst_106 [1] : vector<16x32xf32> to vector<16xf32>
    %164 = vector.shape_cast %163 : vector<16xf32> to vector<16x1xf32>
    %cst_107 = arith.constant 3.200000e+01 : f32
    %165 = vector.broadcast %cst_107 : f32 to vector<16x1xf32>
    %166 = arith.divf %164, %165 : vector<16x1xf32>
    %cst_108 = arith.constant 9.99999974E-6 : f32
    %167 = vector.broadcast %cst_108 : f32 to vector<16x1xf32>
    %168 = arith.addf %166, %167 : vector<16x1xf32>
    %169 = math.rsqrt %168 : vector<16x1xf32>
    %170 = vector.broadcast %169 : vector<16x1xf32> to vector<16x32xf32>
    %171 = arith.mulf %161, %170 : vector<16x32xf32>
    %172 = vector.broadcast %41 : vector<1x32xf32> to vector<16x32xf32>
    %173 = arith.mulf %171, %172 : vector<16x32xf32>
    %174 = vector.broadcast %43 : vector<1x32xf32> to vector<16x32xf32>
    %175 = arith.addf %173, %174 : vector<16x32xf32>
    %176 = arith.addf %3, %175 : vector<16x32xf32>
    %c0_109 = arith.constant 0 : index
    %c0_110 = arith.constant 0 : index
    %c0_111 = arith.constant 0 : index
    %177 = vector.load %arg3[%c0_109, %c0_110, %c0_111] : memref<1x24x32xf32, #tpu.memory_space<vmem>>, vector<1x24x32xf32>
    %178 = vector.shape_cast %177 : vector<1x24x32xf32> to vector<24x32xf32>
    %c0_112 = arith.constant 0 : index
    %c0_113 = arith.constant 0 : index
    %179 = vector.load %arg10[%c0_112, %c0_113] : memref<24x16xbf16, #tpu.memory_space<vmem>>, vector<24x16xbf16>
    %180 = arith.truncf %3 : vector<16x32xf32> to vector<16x32xbf16>
    %cst_114 = arith.constant dense<0.000000e+00> : vector<24x32xf32>
    %181 = tpu.matmul %179, %180, %cst_114 {dimension_numbers = #tpu.dot_dimension_numbers<[1], [0], [0], [1], [0, 0, 1, 1], [], []>} : vector<24x16xbf16>, vector<16x32xbf16>, vector<24x32xf32> -> vector<24x32xf32>
    %182 = arith.mulf %181, %178 : vector<24x32xf32>
    %183 = arith.negf %182 : vector<24x32xf32>
    %184 = math.exp %183 : vector<24x32xf32>
    %cst_115 = arith.constant 1.000000e+00 : f32
    %185 = vector.broadcast %cst_115 : f32 to vector<24x32xf32>
    %186 = arith.addf %185, %184 : vector<24x32xf32>
    %187 = arith.divf %185, %186 : vector<24x32xf32>
    %188 = arith.mulf %182, %187 : vector<24x32xf32>
    %c0_116 = arith.constant 0 : index
    %c0_117 = arith.constant 0 : index
    %189 = vector.load %arg11[%c0_116, %c0_117] : memref<16x24xbf16, #tpu.memory_space<vmem>>, vector<16x24xbf16>
    %190 = arith.truncf %188 : vector<24x32xf32> to vector<24x32xbf16>
    %cst_118 = arith.constant dense<0.000000e+00> : vector<16x32xf32>
    %191 = tpu.matmul %189, %190, %cst_118 {dimension_numbers = #tpu.dot_dimension_numbers<[1], [0], [0], [1], [0, 0, 1, 1], [], []>} : vector<16x24xbf16>, vector<24x32xbf16>, vector<16x32xf32> -> vector<16x32xf32>
    %192 = arith.addf %191, %3 : vector<16x32xf32>
    %cst_119 = arith.constant dense<0.000000e+00> : vector<16x64xf32>
    %193 = tpu.matmul %192, %21, %cst_119 {dimension_numbers = #tpu.dot_dimension_numbers<[1], [0], [0], [1], [0, 0, 1, 1], [], []>} : vector<16x32xf32>, vector<32x64xf32>, vector<16x64xf32> -> vector<16x64xf32>
    %194 = vector.broadcast %23 : vector<1x64xf32> to vector<16x64xf32>
    %195 = arith.addf %193, %194 : vector<16x64xf32>
    %196 = arith.negf %195 : vector<16x64xf32>
    %197 = math.exp %196 : vector<16x64xf32>
    %cst_120 = arith.constant 1.000000e+00 : f32
    %198 = vector.broadcast %cst_120 : f32 to vector<16x64xf32>
    %199 = arith.addf %198, %197 : vector<16x64xf32>
    %200 = arith.divf %198, %199 : vector<16x64xf32>
    %201 = arith.mulf %195, %200 : vector<16x64xf32>
    %cst_121 = arith.constant dense<0.000000e+00> : vector<16x32xf32>
    %202 = tpu.matmul %201, %45, %cst_121 {dimension_numbers = #tpu.dot_dimension_numbers<[1], [0], [0], [1], [0, 0, 1, 1], [], []>} : vector<16x64xf32>, vector<64x32xf32>, vector<16x32xf32> -> vector<16x32xf32>
    %203 = vector.broadcast %47 : vector<1x32xf32> to vector<16x32xf32>
    %204 = arith.addf %202, %203 : vector<16x32xf32>
    %cst_122 = arith.constant dense<0.000000e+00> : vector<16x64xf32>
    %205 = tpu.matmul %176, %51, %cst_122 {dimension_numbers = #tpu.dot_dimension_numbers<[1], [0], [0], [1], [0, 0, 1, 1], [], []>} : vector<16x32xf32>, vector<32x64xf32>, vector<16x64xf32> -> vector<16x64xf32>
    %cst_123 = arith.constant dense<0.000000e+00> : vector<16x64xf32>
    %206 = tpu.matmul %204, %52, %cst_123 {dimension_numbers = #tpu.dot_dimension_numbers<[1], [0], [0], [1], [0, 0, 1, 1], [], []>} : vector<16x32xf32>, vector<32x64xf32>, vector<16x64xf32> -> vector<16x64xf32>
    %207 = arith.addf %205, %206 : vector<16x64xf32>
    %208 = vector.broadcast %53 : vector<1x64xf32> to vector<16x64xf32>
    %209 = arith.addf %207, %208 : vector<16x64xf32>
    %210 = arith.negf %209 : vector<16x64xf32>
    %211 = math.exp %210 : vector<16x64xf32>
    %cst_124 = arith.constant 1.000000e+00 : f32
    %212 = vector.broadcast %cst_124 : f32 to vector<16x64xf32>
    %213 = arith.addf %212, %211 : vector<16x64xf32>
    %214 = arith.divf %212, %213 : vector<16x64xf32>
    %215 = arith.mulf %209, %214 : vector<16x64xf32>
    %cst_125 = arith.constant dense<0.000000e+00> : vector<16x32xf32>
    %216 = tpu.matmul %215, %54, %cst_125 {dimension_numbers = #tpu.dot_dimension_numbers<[1], [0], [0], [1], [0, 0, 1, 1], [], []>} : vector<16x64xf32>, vector<64x32xf32>, vector<16x32xf32> -> vector<16x32xf32>
    %217 = vector.broadcast %55 : vector<1x32xf32> to vector<16x32xf32>
    %218 = arith.addf %216, %217 : vector<16x32xf32>
    %219 = arith.addf %3, %218 : vector<16x32xf32>
    %c0_126 = arith.constant 0 : index
    %c0_127 = arith.constant 0 : index
    %220 = vector.load %arg18[%c0_126, %c0_127] : memref<16x32xf32, #tpu.memory_space<vmem>>, vector<16x32xf32>
    tpu.vector_store %arg18[%c0_126, %c0_127], %219 {strides = array<i32>} : memref<16x32xf32, #tpu.memory_space<vmem>>, vector<16x32xf32>,
    %c0_128 = arith.constant 0 : index
    %c0_129 = arith.constant 0 : index
    %221 = vector.load %arg19[%c0_128, %c0_129] : memref<16x3xf32, #tpu.memory_space<vmem>>, vector<16x3xf32>
    tpu.vector_store %arg19[%c0_128, %c0_129], %121 {strides = array<i32>} : memref<16x3xf32, #tpu.memory_space<vmem>>, vector<16x3xf32>,
    %c0_130 = arith.constant 0 : index
    %c0_131 = arith.constant 0 : index
    %222 = vector.load %arg17[%c0_130, %c0_131] : memref<16x32xf32, #tpu.memory_space<vmem>>, vector<16x32xf32>
    tpu.vector_store %arg17[%c0_130, %c0_131], %219 {strides = array<i32>} : memref<16x32xf32, #tpu.memory_space<vmem>>, vector<16x32xf32>,
    return
  }
  func.func @transform_0(%arg0: i32) -> (i32, i32) {
    %c0_i32 = arith.constant 0 : i32
    %c0_i32_0 = arith.constant 0 : i32
    %c0_i32_1 = arith.constant 0 : i32
    return %c0_i32, %c0_i32_0 : i32, i32
  }
  func.func @transform_1(%arg0: i32) -> (i32, i32) {
    %c0_i32 = arith.constant 0 : i32
    %c0_i32_0 = arith.constant 0 : i32
    %c0_i32_1 = arith.constant 0 : i32
    return %c0_i32, %c0_i32_0 : i32, i32
  }
  func.func @transform_2(%arg0: i32) -> (i32, i32, i32) {
    %c0_i32 = arith.constant 0 : i32
    %c0_i32_0 = arith.constant 0 : i32
    %c0_i32_1 = arith.constant 0 : i32
    return %arg0, %c0_i32, %c0_i32_0 : i32, i32, i32
  }
  func.func @transform_3(%arg0: i32) -> (i32, i32) {
    %c0_i32 = arith.constant 0 : i32
    %c0_i32_0 = arith.constant 0 : i32
    %c0_i32_1 = arith.constant 0 : i32
    return %c0_i32, %c0_i32_0 : i32, i32
  }
  func.func @transform_4(%arg0: i32) -> (i32, i32) {
    %c0_i32 = arith.constant 0 : i32
    %c0_i32_0 = arith.constant 0 : i32
    %c0_i32_1 = arith.constant 0 : i32
    return %c0_i32, %c0_i32_0 : i32, i32
  }
  func.func @transform_5(%arg0: i32) -> (i32, i32) {
    %c0_i32 = arith.constant 0 : i32
    %c0_i32_0 = arith.constant 0 : i32
    %c0_i32_1 = arith.constant 0 : i32
    return %c0_i32, %c0_i32_0 : i32, i32
  }
  func.func @transform_6(%arg0: i32) -> (i32, i32) {
    %c0_i32 = arith.constant 0 : i32
    %c0_i32_0 = arith.constant 0 : i32
    %c0_i32_1 = arith.constant 0 : i32
    return %c0_i32, %c0_i32_0 : i32, i32
  }
  func.func @transform_7(%arg0: i32) -> (i32, i32) {
    %c0_i32 = arith.constant 0 : i32
    %c0_i32_0 = arith.constant 0 : i32
    %c0_i32_1 = arith.constant 0 : i32
    return %c0_i32, %c0_i32_0 : i32, i32
  }
  func.func @transform_8(%arg0: i32) -> (i32, i32) {
    %c0_i32 = arith.constant 0 : i32
    %c0_i32_0 = arith.constant 0 : i32
    %c0_i32_1 = arith.constant 0 : i32
    return %c0_i32, %c0_i32_0 : i32, i32
  }
  func.func @transform_9(%arg0: i32) -> (i32, i32) {
    %c0_i32 = arith.constant 0 : i32
    %c0_i32_0 = arith.constant 0 : i32
    %c0_i32_1 = arith.constant 0 : i32
    return %c0_i32, %c0_i32_0 : i32, i32
  }
  func.func @transform_10(%arg0: i32) -> (i32, i32) {
    %c0_i32 = arith.constant 0 : i32
    %c0_i32_0 = arith.constant 0 : i32
    %c0_i32_1 = arith.constant 0 : i32
    return %c0_i32, %c0_i32_0 : i32, i32
  }
  func.func @transform_11(%arg0: i32) -> (i32, i32, i32) {
    %c0_i32 = arith.constant 0 : i32
    %c0_i32_0 = arith.constant 0 : i32
    %c0_i32_1 = arith.constant 0 : i32
    return %arg0, %c0_i32, %c0_i32_0 : i32, i32, i32
  }
  func.func @transform_12(%arg0: i32) -> (i32, i32, i32) {
    %c0_i32 = arith.constant 0 : i32
    %c0_i32_0 = arith.constant 0 : i32
    %c0_i32_1 = arith.constant 0 : i32
    return %arg0, %c0_i32, %c0_i32_0 : i32, i32, i32
  }
  func.func @transform_13(%arg0: i32) -> (i32, i32, i32) {
    %c0_i32 = arith.constant 0 : i32
    %c0_i32_0 = arith.constant 0 : i32
    %c0_i32_1 = arith.constant 0 : i32
    return %arg0, %c0_i32, %c0_i32_0 : i32, i32, i32
  }
  func.func @transform_14(%arg0: i32) -> (i32, i32) {
    %c0_i32 = arith.constant 0 : i32
    %c0_i32_0 = arith.constant 0 : i32
    %c0_i32_1 = arith.constant 0 : i32
    return %c0_i32, %c0_i32_0 : i32, i32
  }
  func.func @transform_15(%arg0: i32) -> (i32, i32) {
    %c0_i32 = arith.constant 0 : i32
    %c0_i32_0 = arith.constant 0 : i32
    %c0_i32_1 = arith.constant 0 : i32
    return %c0_i32, %c0_i32_0 : i32, i32
  }
  func.func @transform_16(%arg0: i32) -> (i32, i32) {
    %c0_i32 = arith.constant 0 : i32
    %c0_i32_0 = arith.constant 0 : i32
    %c0_i32_1 = arith.constant 0 : i32
    return %c0_i32, %c0_i32_0 : i32, i32
  }
}

</mosaic_0001>

<llo_original>
// kernel: encoder_forward.1
$region0: #{encoder_forward.1}
  #allocation0 [shape = 'u32[]', space=smem, size = 0x4, offset = 0x4, fixed_abs, tag = 'smem constant byte address 0x4 - core index']
  #allocation1 [shape = 'u32[144,128]{1,0:T(1,128)}', space=vmem, size = 0x12000, scoped, tag = 'internal scratch']
  #allocation2 [shape = 'f32[16,32]{1,0:T(8,128)}', space=vmem, size = 0x2000, scoped, tag = 'scratch operand']
  #allocation3 [shape = 'f32[16,3]{1,0:T(8,128)}', space=vmem, size = 0x2000, scoped, tag = 'scratch operand']
  %s0 = inlined_call_operand.hbm [shape: f32[16,32], index: 0, kind: input, shape index: {}, may-alias: {0,16}]
  %s1 = inlined_call_operand.vmem [shape: f32[16,3], index: 1, kind: input, shape index: {}]
  %s2 = inlined_call_operand.vmem [shape: f32[2,24,32], index: 2, kind: input, shape index: {}]
  %s3 = inlined_call_operand.vmem [shape: bf16[48,16], index: 3, kind: input, shape index: {}]
  %s4 = inlined_call_operand.vmem [shape: bf16[48,16], index: 4, kind: input, shape index: {}]
  %s5 = inlined_call_operand.vmem [shape: bf16[48,16], index: 5, kind: input, shape index: {}]
  %s6 = inlined_call_operand.vmem [shape: bf16[16,48], index: 6, kind: input, shape index: {}]
  %s7 = inlined_call_operand.vmem [shape: f32[16,1], index: 7, kind: input, shape index: {}]
  %s8 = inlined_call_operand.vmem [shape: f32[16,16], index: 8, kind: input, shape index: {}]
  %s9 = inlined_call_operand.vmem [shape: bf16[24,16], index: 9, kind: input, shape index: {}]
  %s10 = inlined_call_operand.vmem [shape: bf16[16,24], index: 10, kind: input, shape index: {}]
  %s11 = inlined_call_operand.vmem [shape: f32[2,176,64], index: 11, kind: input, shape index: {}]
  %s12 = inlined_call_operand.vmem [shape: f32[2,88,16], index: 12, kind: input, shape index: {}]
  %s13 = inlined_call_operand.vmem [shape: f32[2,184,32], index: 13, kind: input, shape index: {}]
  %s14 = inlined_call_operand.vmem [shape: f32[72,64], index: 14, kind: input, shape index: {}]
  %s15 = inlined_call_operand.vmem [shape: f32[72,32], index: 15, kind: input, shape index: {}]
  %s16 = inlined_call_operand.hbm [shape: f32[16,32], index: 16, kind: output, shape index: {}, may-alias: {0,16}]
  %s17 = sld [smem:[#allocation0]]
  $region105: #{encoder_forward.1} parent=0
    _
  %s19 = ssub.s32 1, %s17
  %s20 = scalar_select 0, %s19, %s17
  $region1: #{encoder_forward.1} parent=0
    #allocation4 [shape = 'u8[8192]{0}', space=vmem, size = 0x2000, scoped, tag = 'input window, operand 0, single buffered']
    #allocation5 [shape = 's32[2]{0}', space=sflag, size = 0x8, scoped, tag = 'scoped memory for encoder_forward.1']
    #allocation6 [shape = 's32[2]{0}', space=sflag, size = 0x8, scoped, tag = 'scoped memory for encoder_forward.1']
    #allocation7 [shape = 'u8[8192]{0}', space=vmem, size = 0x2000, scoped, tag = 'output window, operand 0, single buffered']
    %21 = vsyncpa [#allocation5], 0
    %22 = vsyncpa [#allocation6], 0
    loop: start=0, step=1, limit=4
    $region2: #{encoder_forward.1} parent=1 // loop_pre_header
      _
    $region3: #{encoder_forward.1} parent=1 // loop_header
      %s24 = sphi 0, %s28
      %p25 = scmp.ge.s32.totalorder %s24, 4
      %s32 = sphi 0, %s32
      %s34 = sphi 0, %s32
      %s35 = sphi 0, %s34
      %s49 = sphi 0, %s35
      %s53 = sphi 0, %s53
      %s55 = sphi 0, %s53
      %s56 = sphi 0, %s55
      %s70 = sphi 0, %s56
      %s76 = sphi 0, %s78
      %s79 = sphi 0, %s76
      %s80 = sphi 0, %s79
      %s96 = sphi 0, %s80
      %s100 = sphi 0, %s100
      %s102 = sphi 0, %s100
      %s103 = sphi 0, %s102
      %s117 = sphi 0, %s103
      %s121 = sphi 0, %s121
      %s123 = sphi 0, %s121
      %s124 = sphi 0, %s123
      %s138 = sphi 0, %s124
      %s142 = sphi 0, %s142
      %s144 = sphi 0, %s142
      %s145 = sphi 0, %s144
      %s159 = sphi 0, %s145
      %s163 = sphi 0, %s163
      %s165 = sphi 0, %s163
      %s166 = sphi 0, %s165
      %s180 = sphi 0, %s166
      %s184 = sphi 0, %s184
      %s186 = sphi 0, %s184
      %s187 = sphi 0, %s186
      %s201 = sphi 0, %s187
      %s205 = sphi 0, %s205
      %s207 = sphi 0, %s205
      %s208 = sphi 0, %s207
      %s222 = sphi 0, %s208
      %s226 = sphi 0, %s226
      %s228 = sphi 0, %s226
      %s229 = sphi 0, %s228
      %s243 = sphi 0, %s229
      %s247 = sphi 0, %s247
      %s249 = sphi 0, %s247
      %s250 = sphi 0, %s249
      %s264 = sphi 0, %s250
      %s270 = sphi 0, %s272
      %s273 = sphi 0, %s270
      %s274 = sphi 0, %s273
      %s290 = sphi 0, %s274
      %s296 = sphi 0, %s298
      %s299 = sphi 0, %s296
      %s300 = sphi 0, %s299
      %s316 = sphi 0, %s300
      %s322 = sphi 0, %s324
      %s325 = sphi 0, %s322
      %s326 = sphi 0, %s325
      %s342 = sphi 0, %s326
      %s346 = sphi 0, %s346
      %s348 = sphi 0, %s346
      %s349 = sphi 0, %s348
      %s363 = sphi 0, %s349
      %s367 = sphi 0, %s367
      %s369 = sphi 0, %s367
      %s370 = sphi 0, %s369
      %s384 = sphi 0, %s370
      %s388 = sphi 0, %s388
      %s390 = sphi 0, %s388
      %s391 = sphi 0, %s390
      %s405 = sphi 0, %s391
    $region4: #{encoder_forward.1} parent=1 // loop_header_branch
      %27 = sbr.rel (%p25) target = $region8
    $region5: #{encoder_forward.1} parent=1 // loop_body
      %s29 = ssub.s32 %s24, 1
      %s30 = ssub.s32 %s24, 2
      %s31 = sadd.s32 %s24, 1
      %s33 = sadd.s32 %s32, 1
      %p36 = scmp.eq.s32.totalorder %s24, 1
      %p37 = scmp.ne.s32.totalorder %s32, %s34
      %p38 = scmp.eq.s32.totalorder %s24, 0
      %p39 = por %p37, %p38
      %p40 = scmp.ne.s32.totalorder %s32, %s34
      %p41 = scmp.eq.s32.totalorder %s29, 1
      %p42 = por %p40, %p41
      %p43 = scmp.ne.s32.totalorder %s34, %s35
      %p44 = scmp.eq.s32.totalorder %s29, 0
      %p45 = por %p43, %p44
      %p46 = scmp.ne.s32.totalorder %s34, %s35
      %p47 = scmp.eq.s32.totalorder %s30, 1
      %p48 = por %p46, %p47
      %p50 = scmp.ne.s32.totalorder %s35, %s49
      %p51 = scmp.eq.s32.totalorder %s30, 0
      %p52 = por %p50, %p51
      %s54 = sadd.s32 %s53, 1
      %p57 = scmp.eq.s32.totalorder %s24, 1
      %p58 = scmp.ne.s32.totalorder %s53, %s55
      %p59 = scmp.eq.s32.totalorder %s24, 0
      %p60 = por %p58, %p59
      %p61 = scmp.ne.s32.totalorder %s53, %s55
      %p62 = scmp.eq.s32.totalorder %s29, 1
      %p63 = por %p61, %p62
      %p64 = scmp.ne.s32.totalorder %s55, %s56
      %p65 = scmp.eq.s32.totalorder %s29, 0
      %p66 = por %p64, %p65
      %p67 = scmp.ne.s32.totalorder %s55, %s56
      %p68 = scmp.eq.s32.totalorder %s30, 1
      %p69 = por %p67, %p68
      %p71 = scmp.ne.s32.totalorder %s56, %s70
      %p72 = scmp.eq.s32.totalorder %s30, 0
      %p73 = por %p71, %p72
      %s74 = ssub.s32 %s24, %s31
      %p75 = scmp.eq.s32.totalorder %s74, 0
      %s77 = sadd.s32 %s76, 1
      %s78 = scalar_select %p75, %s76, %s77
      %p81 = pneg %p75
      %p82 = scmp.eq.s32.totalorder %s24, 1
      %p83 = por %p81, %p82
      %p84 = scmp.ne.s32.totalorder %s76, %s79
      %p85 = scmp.eq.s32.totalorder %s24, 0
      %p86 = por %p84, %p85
      %p87 = scmp.ne.s32.totalorder %s76, %s79
      %p88 = scmp.eq.s32.totalorder %s29, 1
      %p89 = por %p87, %p88
      %p90 = scmp.ne.s32.totalorder %s79, %s80
      %p91 = scmp.eq.s32.totalorder %s29, 0
      %p92 = por %p90, %p91
      %p93 = scmp.ne.s32.totalorder %s79, %s80
      %p94 = scmp.eq.s32.totalorder %s30, 1
      %p95 = por %p93, %p94
      %p97 = scmp.ne.s32.totalorder %s80, %s96
      %p98 = scmp.eq.s32.totalorder %s30, 0
      %p99 = por %p97, %p98
      %s101 = sadd.s32 %s100, 1
      %p104 = scmp.eq.s32.totalorder %s24, 1
      %p105 = scmp.ne.s32.totalorder %s100, %s102
      %p106 = scmp.eq.s32.totalorder %s24, 0
      %p107 = por %p105, %p106
      %p108 = scmp.ne.s32.totalorder %s100, %s102
      %p109 = scmp.eq.s32.totalorder %s29, 1
      %p110 = por %p108, %p109
      %p111 = scmp.ne.s32.totalorder %s102, %s103
      %p112 = scmp.eq.s32.totalorder %s29, 0
      %p113 = por %p111, %p112
      %p114 = scmp.ne.s32.totalorder %s102, %s103
      %p115 = scmp.eq.s32.totalorder %s30, 1
      %p116 = por %p114, %p115
      %p118 = scmp.ne.s32.totalorder %s103, %s117
      %p119 = scmp.eq.s32.totalorder %s30, 0
      %p120 = por %p118, %p119
      %s122 = sadd.s32 %s121, 1
      %p125 = scmp.eq.s32.totalorder %s24, 1
      %p126 = scmp.ne.s32.totalorder %s121, %s123
      %p127 = scmp.eq.s32.totalorder %s24, 0
      %p128 = por %p126, %p127
      %p129 = scmp.ne.s32.totalorder %s121, %s123
      %p130 = scmp.eq.s32.totalorder %s29, 1
      %p131 = por %p129, %p130
      %p132 = scmp.ne.s32.totalorder %s123, %s124
      %p133 = scmp.eq.s32.totalorder %s29, 0
      %p134 = por %p132, %p133
      %p135 = scmp.ne.s32.totalorder %s123, %s124
      %p136 = scmp.eq.s32.totalorder %s30, 1
      %p137 = por %p135, %p136
      %p139 = scmp.ne.s32.totalorder %s124, %s138
      %p140 = scmp.eq.s32.totalorder %s30, 0
      %p141 = por %p139, %p140
      %s143 = sadd.s32 %s142, 1
      %p146 = scmp.eq.s32.totalorder %s24, 1
      %p147 = scmp.ne.s32.totalorder %s142, %s144
      %p148 = scmp.eq.s32.totalorder %s24, 0
      %p149 = por %p147, %p148
      %p150 = scmp.ne.s32.totalorder %s142, %s144
      %p151 = scmp.eq.s32.totalorder %s29, 1
      %p152 = por %p150, %p151
      %p153 = scmp.ne.s32.totalorder %s144, %s145
      %p154 = scmp.eq.s32.totalorder %s29, 0
      %p155 = por %p153, %p154
      %p156 = scmp.ne.s32.totalorder %s144, %s145
      %p157 = scmp.eq.s32.totalorder %s30, 1
      %p158 = por %p156, %p157
      %p160 = scmp.ne.s32.totalorder %s145, %s159
      %p161 = scmp.eq.s32.totalorder %s30, 0
      %p162 = por %p160, %p161
      %s164 = sadd.s32 %s163, 1
      %p167 = scmp.eq.s32.totalorder %s24, 1
      %p168 = scmp.ne.s32.totalorder %s163, %s165
      %p169 = scmp.eq.s32.totalorder %s24, 0
      %p170 = por %p168, %p169
      %p171 = scmp.ne.s32.totalorder %s163, %s165
      %p172 = scmp.eq.s32.totalorder %s29, 1
      %p173 = por %p171, %p172
      %p174 = scmp.ne.s32.totalorder %s165, %s166
      %p175 = scmp.eq.s32.totalorder %s29, 0
      %p176 = por %p174, %p175
      %p177 = scmp.ne.s32.totalorder %s165, %s166
      %p178 = scmp.eq.s32.totalorder %s30, 1
      %p179 = por %p177, %p178
      %p181 = scmp.ne.s32.totalorder %s166, %s180
      %p182 = scmp.eq.s32.totalorder %s30, 0
      %p183 = por %p181, %p182
      %s185 = sadd.s32 %s184, 1
      %p188 = scmp.eq.s32.totalorder %s24, 1
      %p189 = scmp.ne.s32.totalorder %s184, %s186
      %p190 = scmp.eq.s32.totalorder %s24, 0
      %p191 = por %p189, %p190
      %p192 = scmp.ne.s32.totalorder %s184, %s186
      %p193 = scmp.eq.s32.totalorder %s29, 1
      %p194 = por %p192, %p193
      %p195 = scmp.ne.s32.totalorder %s186, %s187
      %p196 = scmp.eq.s32.totalorder %s29, 0
      %p197 = por %p195, %p196
      %p198 = scmp.ne.s32.totalorder %s186, %s187
      %p199 = scmp.eq.s32.totalorder %s30, 1
      %p200 = por %p198, %p199
      %p202 = scmp.ne.s32.totalorder %s187, %s201
      %p203 = scmp.eq.s32.totalorder %s30, 0
      %p204 = por %p202, %p203
      %s206 = sadd.s32 %s205, 1
      %p209 = scmp.eq.s32.totalorder %s24, 1
      %p210 = scmp.ne.s32.totalorder %s205, %s207
      %p211 = scmp.eq.s32.totalorder %s24, 0
      %p212 = por %p210, %p211
      %p213 = scmp.ne.s32.totalorder %s205, %s207
      %p214 = scmp.eq.s32.totalorder %s29, 1
      %p215 = por %p213, %p214
      %p216 = scmp.ne.s32.totalorder %s207, %s208
      %p217 = scmp.eq.s32.totalorder %s29, 0
      %p218 = por %p216, %p217
      %p219 = scmp.ne.s32.totalorder %s207, %s208
      %p220 = scmp.eq.s32.totalorder %s30, 1
      %p221 = por %p219, %p220
      %p223 = scmp.ne.s32.totalorder %s208, %s222
      %p224 = scmp.eq.s32.totalorder %s30, 0
      %p225 = por %p223, %p224
      %s227 = sadd.s32 %s226, 1
      %p230 = scmp.eq.s32.totalorder %s24, 1
      %p231 = scmp.ne.s32.totalorder %s226, %s228
      %p232 = scmp.eq.s32.totalorder %s24, 0
      %p233 = por %p231, %p232
      %p234 = scmp.ne.s32.totalorder %s226, %s228
      %p235 = scmp.eq.s32.totalorder %s29, 1
      %p236 = por %p234, %p235
      %p237 = scmp.ne.s32.totalorder %s228, %s229
      %p238 = scmp.eq.s32.totalorder %s29, 0
      %p239 = por %p237, %p238
      %p240 = scmp.ne.s32.totalorder %s228, %s229
      %p241 = scmp.eq.s32.totalorder %s30, 1
      %p242 = por %p240, %p241
      %p244 = scmp.ne.s32.totalorder %s229, %s243
      %p245 = scmp.eq.s32.totalorder %s30, 0
      %p246 = por %p244, %p245
      %s248 = sadd.s32 %s247, 1
      %p251 = scmp.eq.s32.totalorder %s24, 1
      %p252 = scmp.ne.s32.totalorder %s247, %s249
      %p253 = scmp.eq.s32.totalorder %s24, 0
      %p254 = por %p252, %p253
      %p255 = scmp.ne.s32.totalorder %s247, %s249
      %p256 = scmp.eq.s32.totalorder %s29, 1
      %p257 = por %p255, %p256
      %p258 = scmp.ne.s32.totalorder %s249, %s250
      %p259 = scmp.eq.s32.totalorder %s29, 0
      %p260 = por %p258, %p259
      %p261 = scmp.ne.s32.totalorder %s249, %s250
      %p262 = scmp.eq.s32.totalorder %s30, 1
      %p263 = por %p261, %p262
      %p265 = scmp.ne.s32.totalorder %s250, %s264
      %p266 = scmp.eq.s32.totalorder %s30, 0
      %p267 = por %p265, %p266
      %s268 = ssub.s32 %s24, %s31
      %p269 = scmp.eq.s32.totalorder %s268, 0
      %s271 = sadd.s32 %s270, 1
      %s272 = scalar_select %p269, %s270, %s271
      %p275 = pneg %p269
      %p276 = scmp.eq.s32.totalorder %s24, 1
      %p277 = por %p275, %p276
      %p278 = scmp.ne.s32.totalorder %s270, %s273
      %p279 = scmp.eq.s32.totalorder %s24, 0
      %p280 = por %p278, %p279
      %p281 = scmp.ne.s32.totalorder %s270, %s273
      %p282 = scmp.eq.s32.totalorder %s29, 1
      %p283 = por %p281, %p282
      %p284 = scmp.ne.s32.totalorder %s273, %s274
      %p285 = scmp.eq.s32.totalorder %s29, 0
      %p286 = por %p284, %p285
      %p287 = scmp.ne.s32.totalorder %s273, %s274
      %p288 = scmp.eq.s32.totalorder %s30, 1
      %p289 = por %p287, %p288
      %p291 = scmp.ne.s32.totalorder %s274, %s290
      %p292 = scmp.eq.s32.totalorder %s30, 0
      %p293 = por %p291, %p292
      %s294 = ssub.s32 %s24, %s31
      %p295 = scmp.eq.s32.totalorder %s294, 0
      %s297 = sadd.s32 %s296, 1
      %s298 = scalar_select %p295, %s296, %s297
      %p301 = pneg %p295
      %p302 = scmp.eq.s32.totalorder %s24, 1
      %p303 = por %p301, %p302
      %p304 = scmp.ne.s32.totalorder %s296, %s299
      %p305 = scmp.eq.s32.totalorder %s24, 0
      %p306 = por %p304, %p305
      %p307 = scmp.ne.s32.totalorder %s296, %s299
      %p308 = scmp.eq.s32.totalorder %s29, 1
      %p309 = por %p307, %p308
      %p310 = scmp.ne.s32.totalorder %s299, %s300
      %p311 = scmp.eq.s32.totalorder %s29, 0
      %p312 = por %p310, %p311
      %p313 = scmp.ne.s32.totalorder %s299, %s300
      %p314 = scmp.eq.s32.totalorder %s30, 1
      %p315 = por %p313, %p314
      %p317 = scmp.ne.s32.totalorder %s300, %s316
      %p318 = scmp.eq.s32.totalorder %s30, 0
      %p319 = por %p317, %p318
      %s320 = ssub.s32 %s24, %s31
      %p321 = scmp.eq.s32.totalorder %s320, 0
      %s323 = sadd.s32 %s322, 1
      %s324 = scalar_select %p321, %s322, %s323
      %p327 = pneg %p321
      %p328 = scmp.eq.s32.totalorder %s24, 1
      %p329 = por %p327, %p328
      %p330 = scmp.ne.s32.totalorder %s322, %s325
      %p331 = scmp.eq.s32.totalorder %s24, 0
      %p332 = por %p330, %p331
      %p333 = scmp.ne.s32.totalorder %s322, %s325
      %p334 = scmp.eq.s32.totalorder %s29, 1
      %p335 = por %p333, %p334
      %p336 = scmp.ne.s32.totalorder %s325, %s326
      %p337 = scmp.eq.s32.totalorder %s29, 0
      %p338 = por %p336, %p337
      %p339 = scmp.ne.s32.totalorder %s325, %s326
      %p340 = scmp.eq.s32.totalorder %s30, 1
      %p341 = por %p339, %p340
      %p343 = scmp.ne.s32.totalorder %s326, %s342
      %p344 = scmp.eq.s32.totalorder %s30, 0
      %p345 = por %p343, %p344
      %s347 = sadd.s32 %s346, 1
      %p350 = scmp.eq.s32.totalorder %s24, 1
      %p351 = scmp.ne.s32.totalorder %s346, %s348
      %p352 = scmp.eq.s32.totalorder %s24, 0
      %p353 = por %p351, %p352
      %p354 = scmp.ne.s32.totalorder %s346, %s348
      %p355 = scmp.eq.s32.totalorder %s29, 1
      %p356 = por %p354, %p355
      %p357 = scmp.ne.s32.totalorder %s348, %s349
      %p358 = scmp.eq.s32.totalorder %s29, 0
      %p359 = por %p357, %p358
      %p360 = scmp.ne.s32.totalorder %s348, %s349
      %p361 = scmp.eq.s32.totalorder %s30, 1
      %p362 = por %p360, %p361
      %p364 = scmp.ne.s32.totalorder %s349, %s363
      %p365 = scmp.eq.s32.totalorder %s30, 0
      %p366 = por %p364, %p365
      %s368 = sadd.s32 %s367, 1
      %p371 = scmp.eq.s32.totalorder %s24, 1
      %p372 = scmp.ne.s32.totalorder %s367, %s369
      %p373 = scmp.eq.s32.totalorder %s24, 0
      %p374 = por %p372, %p373
      %p375 = scmp.ne.s32.totalorder %s367, %s369
      %p376 = scmp.eq.s32.totalorder %s29, 1
      %p377 = por %p375, %p376
      %p378 = scmp.ne.s32.totalorder %s369, %s370
      %p379 = scmp.eq.s32.totalorder %s29, 0
      %p380 = por %p378, %p379
      %p381 = scmp.ne.s32.totalorder %s369, %s370
      %p382 = scmp.eq.s32.totalorder %s30, 1
      %p383 = por %p381, %p382
      %p385 = scmp.ne.s32.totalorder %s370, %s384
      %p386 = scmp.eq.s32.totalorder %s30, 0
      %p387 = por %p385, %p386
      %s389 = sadd.s32 %s388, 1
      %p392 = scmp.eq.s32.totalorder %s24, 1
      %p393 = scmp.ne.s32.totalorder %s388, %s390
      %p394 = scmp.eq.s32.totalorder %s24, 0
      %p395 = por %p393, %p394
      %p396 = scmp.ne.s32.totalorder %s388, %s390
      %p397 = scmp.eq.s32.totalorder %s29, 1
      %p398 = por %p396, %p397
      %p399 = scmp.ne.s32.totalorder %s390, %s391
      %p400 = scmp.eq.s32.totalorder %s29, 0
      %p401 = por %p399, %p400
      %p402 = scmp.ne.s32.totalorder %s390, %s391
      %p403 = scmp.eq.s32.totalorder %s30, 1
      %p404 = por %p402, %p403
      %p406 = scmp.ne.s32.totalorder %s391, %s405
      %p407 = scmp.eq.s32.totalorder %s30, 0
      %p408 = por %p406, %p407
      %p409 = scmp.le.s32.totalorder 1, %s24
      %p410 = scmp.lt.s32.totalorder %s24, 3
      %p411 = pnand %p409, %p410
      %p412 = pneg %p411
      // Predicated region
      $region9: #{encoder_forward.1} parent=5 // pred_check
        _
      $region10: #{encoder_forward.1} parent=5 // pred_check_branch
        %414 = sbr.rel (%p411) target = $region12
      $region11: #{encoder_forward.1} parent=5 // pred_region
        %s415 = ssub.s32 %s24, 1
        // Predicated region
        $region13: #{encoder_forward.1} parent=11 // pred_check
          %p416 = pneg %p45
        $region14: #{encoder_forward.1} parent=11 // pred_check_branch
          %418 = sbr.rel (%p416) target = $region16
        $region15: #{encoder_forward.1} parent=11 // pred_region
          %s420 = ssub.s32 256, 256
          %421 = vsyncadd [#allocation5], %s420
          %s422 = sshll.u32 [#allocation4], 4
          %s423 = int_to_ptr.vmem [resolvable:$true] %s422
          %428 = dma.hbm_to_vmem [thread:$0]  %s0, 256, %s423, [#allocation5], 128, 128, 8
        $region16: #{encoder_forward.1} parent=11 // pred_fallthru
          _
        // Predicated region
        $region17: #{encoder_forward.1} parent=11 // pred_check
          %p429 = pneg %p66
        $region18: #{encoder_forward.1} parent=11 // pred_check_branch
          %431 = sbr.rel (%p429) target = $region20
        $region19: #{encoder_forward.1} parent=11 // pred_region
          _
        $region20: #{encoder_forward.1} parent=11 // pred_fallthru
          _
        // Predicated region
        $region21: #{encoder_forward.1} parent=11 // pred_check
          %p432 = pneg %p113
        $region22: #{encoder_forward.1} parent=11 // pred_check_branch
          %434 = sbr.rel (%p432) target = $region24
        $region23: #{encoder_forward.1} parent=11 // pred_region
          _
        $region24: #{encoder_forward.1} parent=11 // pred_fallthru
          _
        // Predicated region
        $region25: #{encoder_forward.1} parent=11 // pred_check
          %p435 = pneg %p134
        $region26: #{encoder_forward.1} parent=11 // pred_check_branch
          %437 = sbr.rel (%p435) target = $region28
        $region27: #{encoder_forward.1} parent=11 // pred_region
          _
        $region28: #{encoder_forward.1} parent=11 // pred_fallthru
          _
        // Predicated region
        $region29: #{encoder_forward.1} parent=11 // pred_check
          %p438 = pneg %p155
        $region30: #{encoder_forward.1} parent=11 // pred_check_branch
          %440 = sbr.rel (%p438) target = $region32
        $region31: #{encoder_forward.1} parent=11 // pred_region
          _
        $region32: #{encoder_forward.1} parent=11 // pred_fallthru
          _
        // Predicated region
        $region33: #{encoder_forward.1} parent=11 // pred_check
          %p441 = pneg %p176
        $region34: #{encoder_forward.1} parent=11 // pred_check_branch
          %443 = sbr.rel (%p441) target = $region36
        $region35: #{encoder_forward.1} parent=11 // pred_region
          _
        $region36: #{encoder_forward.1} parent=11 // pred_fallthru
          _
        // Predicated region
        $region37: #{encoder_forward.1} parent=11 // pred_check
          %p444 = pneg %p197
        $region38: #{encoder_forward.1} parent=11 // pred_check_branch
          %446 = sbr.rel (%p444) target = $region40
        $region39: #{encoder_forward.1} parent=11 // pred_region
          _
        $region40: #{encoder_forward.1} parent=11 // pred_fallthru
          _
        // Predicated region
        $region41: #{encoder_forward.1} parent=11 // pred_check
          %p447 = pneg %p218
        $region42: #{encoder_forward.1} parent=11 // pred_check_branch
          %449 = sbr.rel (%p447) target = $region44
        $region43: #{encoder_forward.1} parent=11 // pred_region
          _
        $region44: #{encoder_forward.1} parent=11 // pred_fallthru
          _
        // Predicated region
        $region45: #{encoder_forward.1} parent=11 // pred_check
          %p450 = pneg %p239
        $region46: #{encoder_forward.1} parent=11 // pred_check_branch
          %452 = sbr.rel (%p450) target = $region48
        $region47: #{encoder_forward.1} parent=11 // pred_region
          _
        $region48: #{encoder_forward.1} parent=11 // pred_fallthru
          _
        // Predicated region
        $region49: #{encoder_forward.1} parent=11 // pred_check
          %p453 = pneg %p260
        $region50: #{encoder_forward.1} parent=11 // pred_check_branch
          %455 = sbr.rel (%p453) target = $region52
        $region51: #{encoder_forward.1} parent=11 // pred_region
          _
        $region52: #{encoder_forward.1} parent=11 // pred_fallthru
          _
        // Predicated region
        $region53: #{encoder_forward.1} parent=11 // pred_check
          %p456 = pneg %p359
        $region54: #{encoder_forward.1} parent=11 // pred_check_branch
          %458 = sbr.rel (%p456) target = $region56
        $region55: #{encoder_forward.1} parent=11 // pred_region
          _
        $region56: #{encoder_forward.1} parent=11 // pred_fallthru
          _
        // Predicated region
        $region57: #{encoder_forward.1} parent=11 // pred_check
          %p459 = pneg %p380
        $region58: #{encoder_forward.1} parent=11 // pred_check_branch
          %461 = sbr.rel (%p459) target = $region60
        $region59: #{encoder_forward.1} parent=11 // pred_region
          _
        $region60: #{encoder_forward.1} parent=11 // pred_fallthru
          _
      $region12: #{encoder_forward.1} parent=5 // pred_fallthru
        _
      %p462 = scmp.lt.s32.totalorder %s24, 2
      // Predicated region
      $region61: #{encoder_forward.1} parent=5 // pred_check
        %p463 = pneg %p462
      $region62: #{encoder_forward.1} parent=5 // pred_check_branch
        %465 = sbr.rel (%p463) target = $region64
      $region63: #{encoder_forward.1} parent=5 // pred_region
        // Predicated region
        $region65: #{encoder_forward.1} parent=63 // pred_check
          %p466 = pneg %p86
        $region66: #{encoder_forward.1} parent=63 // pred_check_branch
          %468 = sbr.rel (%p466) target = $region68
        $region67: #{encoder_forward.1} parent=63 // pred_region
          %p469 = scmp.lt.s32.totalorder %s24, 1
          %s470 = scalar_select %p469, %s24, 1
          %s471 = smul.addr %s470, 3
          %s472 = smul.addr %s471, 8
          %s473 = scalar_lea.vmem %s2, %s472
        $region68: #{encoder_forward.1} parent=63 // pred_fallthru
          _
        // Predicated region
        $region69: #{encoder_forward.1} parent=63 // pred_check
          %p474 = pneg %p280
        $region70: #{encoder_forward.1} parent=63 // pred_check_branch
          %476 = sbr.rel (%p474) target = $region72
        $region71: #{encoder_forward.1} parent=63 // pred_region
          %p477 = scmp.lt.s32.totalorder %s24, 1
          %s478 = scalar_select %p477, %s24, 1
          %s479 = smul.addr %s478, 22
          %s480 = smul.addr %s479, 8
          %s481 = scalar_lea.vmem %s11, %s480
        $region72: #{encoder_forward.1} parent=63 // pred_fallthru
          _
        // Predicated region
        $region73: #{encoder_forward.1} parent=63 // pred_check
          %p482 = pneg %p306
        $region74: #{encoder_forward.1} parent=63 // pred_check_branch
          %484 = sbr.rel (%p482) target = $region76
        $region75: #{encoder_forward.1} parent=63 // pred_region
          %p485 = scmp.lt.s32.totalorder %s24, 1
          %s486 = scalar_select %p485, %s24, 1
          %s487 = smul.addr %s486, 11
          %s488 = smul.addr %s487, 8
          %s489 = scalar_lea.vmem %s12, %s488
        $region76: #{encoder_forward.1} parent=63 // pred_fallthru
          _
        // Predicated region
        $region77: #{encoder_forward.1} parent=63 // pred_check
          %p490 = pneg %p332
        $region78: #{encoder_forward.1} parent=63 // pred_check_branch
          %492 = sbr.rel (%p490) target = $region80
        $region79: #{encoder_forward.1} parent=63 // pred_region
          %p493 = scmp.lt.s32.totalorder %s24, 1
          %s494 = scalar_select %p493, %s24, 1
          %s495 = smul.addr %s494, 23
          %s496 = smul.addr %s495, 8
          %s497 = scalar_lea.vmem %s13, %s496
        $region80: #{encoder_forward.1} parent=63 // pred_fallthru
          _
      $region64: #{encoder_forward.1} parent=5 // pred_fallthru
        _
      %p498 = scmp.le.s32.totalorder 1, %s24
      %p499 = scmp.lt.s32.totalorder %s24, 3
      %p500 = pnand %p498, %p499
      %p501 = pneg %p500
      // Predicated region
      $region81: #{encoder_forward.1} parent=5 // pred_check
        _
      $region82: #{encoder_forward.1} parent=5 // pred_check_branch
        %503 = sbr.rel (%p500) target = $region84
      $region83: #{encoder_forward.1} parent=5 // pred_region
        %s504 = ssub.s32 %s24, 1
        // Predicated region
        $region85: #{encoder_forward.1} parent=83 // pred_check
          %p505 = pneg %p45
        $region86: #{encoder_forward.1} parent=83 // pred_check_branch
          %507 = sbr.rel (%p505) target = $region88
        $region87: #{encoder_forward.1} parent=83 // pred_region
          %508 = dma.done [#allocation5], 256
        $region88: #{encoder_forward.1} parent=83 // pred_fallthru
          _
        %p509 = pneg %p45
        %p510 = pneg %p42
        %p511 = pneg %p66
        %p512 = pneg %p63
        %p513 = scmp.lt.s32.totalorder %s29, 1
        %s514 = scalar_select %p513, %s29, 1
        %s515 = smul.addr %s514, 3
        %s516 = smul.addr %s515, 8
        %s517 = scalar_lea.vmem %s2, %s516
        %p518 = pneg %p92
        %p519 = pneg %p89
        %p520 = pneg %p113
        %p521 = pneg %p110
        %p522 = pneg %p134
        %p523 = pneg %p131
        %p524 = pneg %p155
        %p525 = pneg %p152
        %p526 = pneg %p176
        %p527 = pneg %p173
        %p528 = pneg %p197
        %p529 = pneg %p194
        %p530 = pneg %p218
        %p531 = pneg %p215
        %p532 = pneg %p239
        %p533 = pneg %p236
        %p534 = pneg %p260
        %p535 = pneg %p257
        %p536 = scmp.lt.s32.totalorder %s29, 1
        %s537 = scalar_select %p536, %s29, 1
        %s538 = smul.addr %s537, 22
        %s539 = smul.addr %s538, 8
        %s540 = scalar_lea.vmem %s11, %s539
        %p541 = pneg %p286
        %p542 = pneg %p283
        %p543 = scmp.lt.s32.totalorder %s29, 1
        %s544 = scalar_select %p543, %s29, 1
        %s545 = smul.addr %s544, 11
        %s546 = smul.addr %s545, 8
        %s547 = scalar_lea.vmem %s12, %s546
        %p548 = pneg %p312
        %p549 = pneg %p309
        %p550 = scmp.lt.s32.totalorder %s29, 1
        %s551 = scalar_select %p550, %s29, 1
        %s552 = smul.addr %s551, 23
        %s553 = smul.addr %s552, 8
        %s554 = scalar_lea.vmem %s13, %s553
        %p555 = pneg %p338
        %p556 = pneg %p335
        %p557 = pneg %p359
        %p558 = pneg %p356
        %p559 = pneg %p380
        %p560 = pneg %p377
        %p561 = pneg %p401
        %p562 = pneg %p398
        %p563 = scmp.lt.s32.totalorder %s29, 1
        %s564 = scalar_select %p563, %s29, 1
        %s565 = smul.addr %s564, 3
        %s566 = smul.addr %s565, 8
        %s567 = scalar_lea.vmem %s2, %s566
        %p568 = scmp.lt.s32.totalorder %s29, 1
        %s569 = scalar_select %p568, %s29, 1
        %s570 = smul.addr %s569, 22
        %s571 = smul.addr %s570, 8
        %s572 = scalar_lea.vmem %s11, %s571
        %p573 = scmp.lt.s32.totalorder %s29, 1
        %s574 = scalar_select %p573, %s29, 1
        %s575 = smul.addr %s574, 11
        %s576 = smul.addr %s575, 8
        %s577 = scalar_lea.vmem %s12, %s576
        %p578 = scmp.lt.s32.totalorder %s29, 1
        %s579 = scalar_select %p578, %s29, 1
        %s580 = smul.addr %s579, 23
        %s581 = smul.addr %s580, 8
        %s582 = scalar_lea.vmem %s13, %s581
        %p584 = scmp.eq.s32.totalorder %s29, 0
        // Predicated region
        $region89: #{encoder_forward.1} parent=83 // pred_check
          %p585 = pneg %p584
        $region90: #{encoder_forward.1} parent=83 // pred_check_branch
          %587 = sbr.rel (%p585) target = $region92
        $region91: #{encoder_forward.1} parent=83 // pred_region
          %v588 = vld [vmem:[#allocation4] sm:$0xff]
          %v589 = vld [vmem:[#allocation4 + $0x8] sm:$0xff]
          %vm590 = vcmask 261120
          %591 = vst.msk [vmem:[#allocation2] sm:$0xff] %vm590, %v588
          %592 = vst.msk [vmem:[#allocation2 + $0x8] sm:$0xff] %vm590, %v589
          %v593 = vld [vmem:[%s1] sm:$0xff]
          %v594 = vld [vmem:[%s1 + $0x8] sm:$0xff]
          %vm595 = vcmask 23552
          %596 = vst.msk [vmem:[#allocation3] sm:$0xff] %vm595, %v593
          %597 = vst.msk [vmem:[#allocation3 + $0x8] sm:$0xff] %vm595, %v594
        $region92: #{encoder_forward.1} parent=83 // pred_fallthru
          _
        %v598 = vld [vmem:[#allocation2] sm:$0xff]
        %v599 = vld [vmem:[#allocation2 + $0x8] sm:$0xff]
        %v600 = vld [vmem:[#allocation3] sm:$0xff]
        %v601 = vld [vmem:[#allocation3 + $0x8] sm:$0xff]
        %v602 = vld [vmem:[%s7] sm:$0xff]
        %v603 = vld [vmem:[%s7 + $0x8] sm:$0xff]
        %v604 = vld [vmem:[%s572] sm:$0xff]
        %v605 = vld [vmem:[%s572 + $0x8] sm:$0xff]
        %v606 = vld [vmem:[%s572 + $0x10] sm:$0xff]
        %v607 = vld [vmem:[%s572 + $0x18] sm:$0xff]
        %v608 = vld [vmem:[%s572 + $0x20] sm:$0xff]
        %v609 = vld [vmem:[%s572 + $0x28] sm:$0xff]
        %v610 = vld [vmem:[%s572 + $0x30] sm:$0xff]
        %v611 = vld [vmem:[%s572 + $0x38] sm:$0xff]
        %v612 = vld [vmem:[%s572 + $0x40] sm:$0x1]
        %v613 = vld [vmem:[%s572 + $0x48] sm:$0x1]
        %v614 = vld [vmem:[%s572 + $0x50] sm:$0xff]
        %v615 = vld [vmem:[%s572 + $0x58] sm:$0xff]
        %v616 = vld [vmem:[%s572 + $0x60] sm:$0xff]
        %v617 = vld [vmem:[%s572 + $0x68] sm:$0xff]
        %v618 = vld [vmem:[%s572 + $0x70] sm:$0xff]
        %v619 = vld [vmem:[%s572 + $0x78] sm:$0xff]
        %v620 = vld [vmem:[%s572 + $0x80] sm:$0x1]
        %v621 = vld [vmem:[%s572 + $0x88] sm:$0xff]
        %v622 = vld [vmem:[%s572 + $0x90] sm:$0xff]
        %v623 = vld [vmem:[%s572 + $0x98] sm:$0xff]
        %v624 = vld [vmem:[%s572 + $0xa0] sm:$0xff]
        %v625 = vld [vmem:[%s572 + $0xa8] sm:$0x1]
        %v626 = vld [vmem:[%s577] sm:$0xff]
        %v627 = vld [vmem:[%s577 + $0x8] sm:$0xff]
        %v628 = vld [vmem:[%s577 + $0x10] sm:$0xff]
        %v629 = vld [vmem:[%s577 + $0x18] sm:$0xff]
        %v630 = vld [vmem:[%s577 + $0x20] sm:$0xff]
        %v631 = vld [vmem:[%s577 + $0x28] sm:$0xff]
        %v632 = vld [vmem:[%s577 + $0x30] sm:$0xff]
        %v633 = vld [vmem:[%s577 + $0x38] sm:$0xff]
        %v634 = vld [vmem:[%s577 + $0x40] sm:$0x1]
        %v635 = vld [vmem:[%s577 + $0x48] sm:$0x1]
        %v636 = vld [vmem:[%s577 + $0x50] sm:$0x1]
        %v637 = vld [vmem:[%s582] sm:$0xff]
        %v638 = vld [vmem:[%s582 + $0x8] sm:$0xff]
        %v639 = vld [vmem:[%s582 + $0x10] sm:$0xff]
        %v640 = vld [vmem:[%s582 + $0x18] sm:$0xff]
        %v641 = vld [vmem:[%s582 + $0x20] sm:$0xff]
        %v642 = vld [vmem:[%s582 + $0x28] sm:$0xff]
        %v643 = vld [vmem:[%s582 + $0x30] sm:$0xff]
        %v644 = vld [vmem:[%s582 + $0x38] sm:$0xff]
        %v645 = vld [vmem:[%s582 + $0x40] sm:$0x1]
        %v646 = vld [vmem:[%s582 + $0x48] sm:$0x1]
        %v647 = vld [vmem:[%s582 + $0x50] sm:$0x1]
        %v648 = vld [vmem:[%s582 + $0x58] sm:$0x1]
        %v649 = vld [vmem:[%s582 + $0x60] sm:$0x1]
        %v650 = vld [vmem:[%s582 + $0x68] sm:$0xff]
        %v651 = vld [vmem:[%s582 + $0x70] sm:$0xff]
        %v652 = vld [vmem:[%s582 + $0x78] sm:$0xff]
        %v653 = vld [vmem:[%s582 + $0x80] sm:$0xff]
        %v654 = vld [vmem:[%s582 + $0x88] sm:$0xff]
        %v655 = vld [vmem:[%s582 + $0x90] sm:$0xff]
        %v656 = vld [vmem:[%s582 + $0x98] sm:$0xff]
        %v657 = vld [vmem:[%s582 + $0xa0] sm:$0xff]
        %v658 = vld [vmem:[%s582 + $0xa8] sm:$0x1]
        %v659 = vld [vmem:[%s582 + $0xb0] sm:$0x1]
        %v660 = vld [vmem:[%s14] sm:$0xff]
        %v661 = vld [vmem:[%s14 + $0x8] sm:$0xff]
        %v662 = vld [vmem:[%s14 + $0x10] sm:$0xff]
        %v663 = vld [vmem:[%s14 + $0x18] sm:$0xff]
        %v664 = vld [vmem:[%s14 + $0x20] sm:$0xff]
        %v665 = vld [vmem:[%s14 + $0x28] sm:$0xff]
        %v666 = vld [vmem:[%s14 + $0x30] sm:$0xff]
        %v667 = vld [vmem:[%s14 + $0x38] sm:$0xff]
        %v668 = vld [vmem:[%s14 + $0x40] sm:$0x1]
        %v669 = vld [vmem:[%s15] sm:$0xff]
        %v670 = vld [vmem:[%s15 + $0x8] sm:$0xff]
        %v671 = vld [vmem:[%s15 + $0x10] sm:$0xff]
        %v672 = vld [vmem:[%s15 + $0x18] sm:$0xff]
        %v673 = vld [vmem:[%s15 + $0x20] sm:$0xff]
        %v674 = vld [vmem:[%s15 + $0x28] sm:$0xff]
        %v675 = vld [vmem:[%s15 + $0x30] sm:$0xff]
        %v676 = vld [vmem:[%s15 + $0x38] sm:$0xff]
        %v677 = vld [vmem:[%s15 + $0x40] sm:$0x1]
        %v678 = vld [vmem:[%s5] sm:$0xf]
        %v679 = vld [vmem:[%s5 + $0x4] sm:$0xf]
        %v680 = vld [vmem:[%s5 + $0x8] sm:$0xf]
        %v681 = vld [vmem:[%s5 + $0xc] sm:$0xf]
        %v682 = vld [vmem:[%s5 + $0x10] sm:$0xf]
        %v683 = vld [vmem:[%s5 + $0x14] sm:$0xf]
        %v684 = vpack.c.bf16 %v601, %v600
        %v691 = vunpack.c.l.b16 %v678
        %v692 = vunpack.c.l.b16 %v679
        %v693 = vunpack.c.l.b16 %v680
        %v694 = vunpack.c.l.b16 %v681
        %v695 = vunpack.c.l.b16 %v682
        %v696 = vunpack.c.l.b16 %v683
        %v697 = vpack.c.b16 %v692, %v691
        %v698 = vpack.c.b16 %v694, %v693
        %v699 = vpack.c.b16 %v696, %v695
        %vm700 = vcmask 130048
        %v702 = vsel %vm700, %v697, 0
        %v705 = vsel %vm700, %v698, 0
        %v708 = vsel %vm700, %v699, 0
        %710 = vmatprep.subr.bf16.mxu0 0
        %711 = vmatpush1.bf16.msra.mxu0 0
        %712 = vmatprep.subr.bf16.mxu0 0
        %713 = vmatpush1.bf16.msra.mxu0 0
        %714 = vmatprep.subr.bf16.mxu0 0
        %715 = vmatpush1.bf16.msra.mxu0 0
        %716 = vmatprep.subr.bf16.mxu0 0
        %717 = vmatpush1.bf16.msra.mxu0 0
        %718 = vmatprep.subr.bf16.mxu0 0
        %719 = vmatpush1.bf16.msra.mxu0 0
        %720 = vmatprep.subr.bf16.mxu0 0
        %721 = vmatpush1.bf16.msra.mxu0 0
        %722 = vmatprep.subr.bf16.mxu0 0
        %723 = vmatpush1.bf16.msra.mxu0 0
        %724 = vmatprep.subr.bf16.mxu0 0
        %725 = vmatpush1.bf16.msra.mxu0 %v684
        %726 = vmatprep.subr.bf16.mxu0 0
        %727 = vmatpush2.bf16.msra.mxu0 0
        %728 = vmatprep.subr.bf16.mxu0 0
        %729 = vmatpush2.bf16.msra.mxu0 0
        %730 = vmatprep.subr.bf16.mxu0 0
        %731 = vmatpush2.bf16.msra.mxu0 0
        %732 = vmatprep.subr.bf16.mxu0 0
        %733 = vmatpush2.bf16.msra.mxu0 0
        %734 = vmatprep.subr.bf16.mxu0 0
        %735 = vmatpush2.bf16.msra.mxu0 0
        %736 = vmatprep.subr.bf16.mxu0 0
        %737 = vmatpush2.bf16.msra.mxu0 0
        %738 = vmatprep.subr.bf16.mxu0 0
        %739 = vmatpush2.bf16.msra.mxu0 0
        %740 = vmatprep.subr.bf16.mxu0 0
        %741 = vmatpush2.bf16.msra.mxu0 0
        %742 = vmatprep.mubr.bf16.mxu0 0
        %743 = vmatmul.mubr.bf16.gmra.mxu0 %v702
        %v744 = vpop.f32.mrf.mxu0
        %v745 = vadd.f32 0.0, %v744
        %v746 = vpop.f32.mrf.mxu0
        %v747 = vpop.f32.mrf.mxu0
        %v748 = vadd.f32 0.0, %v747
        %v749 = vpop.f32.mrf.mxu0
        %750 = vmatprep.mubr.bf16.mxu0 0
        %751 = vmatmul.mubr.bf16.gmra.mxu0 %v705
        %v752 = vpop.f32.mrf.mxu0
        %v753 = vadd.f32 0.0, %v752
        %v754 = vpop.f32.mrf.mxu0
        %v755 = vpop.f32.mrf.mxu0
        %v756 = vadd.f32 0.0, %v755
        %v757 = vpop.f32.mrf.mxu0
        %758 = vmatprep.mubr.bf16.mxu0 0
        %759 = vmatmul.mubr.bf16.gmra.mxu0 %v708
        %v760 = vpop.f32.mrf.mxu0
        %v761 = vadd.f32 0.0, %v760
        %v762 = vpop.f32.mrf.mxu0
        %v763 = vpop.f32.mrf.mxu0
        %v764 = vadd.f32 0.0, %v763
        %v765 = vpop.f32.mrf.mxu0
        %766 = vdwg.mxu0
        %v767 = vmul.f32 %v745, %v745
        %v768 = vmul.f32 %v748, %v748
        %v769 = vmul.f32 %v753, %v753
        %v770 = vmul.f32 %v756, %v756
        %v771 = vmul.f32 %v761, %v761
        %v772 = vmul.f32 %v764, %v764
        %vm773 = vcmask 23552
        %v774 = vsel %vm773, %v767, 0.0
        %775 = vadd.xlane.f32.xlu0 %v774
        %v776 = vpop.xlane.xlu0 %775
        %v777 = vsel %vm773, %v768, 0.0
        %778 = vadd.xlane.f32.xlu0 %v777
        %v779 = vpop.xlane.xlu0 %778
        %v780 = vsel %vm773, %v769, 0.0
        %781 = vadd.xlane.f32.xlu0 %v780
        %v782 = vpop.xlane.xlu0 %781
        %v783 = vsel %vm773, %v770, 0.0
        %784 = vadd.xlane.f32.xlu0 %v783
        %v785 = vpop.xlane.xlu0 %784
        %v786 = vsel %vm773, %v771, 0.0
        %787 = vadd.xlane.f32.xlu0 %v786
        %v788 = vpop.xlane.xlu0 %787
        %v789 = vsel %vm773, %v772, 0.0
        %790 = vadd.xlane.f32.xlu0 %v789
        %v791 = vpop.xlane.xlu0 %790
        %v792 = vld [vmem:[%s4] sm:$0xf]
        %v793 = vld [vmem:[%s4 + $0x4] sm:$0xf]
        %v794 = vld [vmem:[%s4 + $0x8] sm:$0xf]
        %v795 = vld [vmem:[%s4 + $0xc] sm:$0xf]
        %v796 = vld [vmem:[%s4 + $0x10] sm:$0xf]
        %v797 = vld [vmem:[%s4 + $0x14] sm:$0xf]
        %vm798 = vcmask 261120
        %v800 = vsel %vm798, %v598, 0
        %v803 = vsel %vm798, %v599, 0
        %805 = vmatprep.subr.mxu0 0.0
        %806 = vmatpush1.msra.mxu0 0.0
        %807 = vmatprep.subr.mxu0 0.0
        %808 = vmatpush1.msra.mxu0 0.0
        %809 = vmatprep.subr.mxu0 0.0
        %810 = vmatpush1.msra.mxu0 0.0
        %811 = vmatprep.subr.mxu0 0.0
        %812 = vmatpush1.msra.mxu0 0.0
        %813 = vmatprep.subr.mxu0 0.0
        %814 = vmatpush1.msra.mxu0 0.0
        %815 = vmatprep.subr.mxu0 0.0
        %816 = vmatpush1.msra.mxu0 0.0
        %817 = vmatprep.subr.mxu0 0.0
        %818 = vmatpush1.msra.mxu0 0.0
        %819 = vmatprep.subr.mxu0 0.0
        %820 = vmatpush1.msra.mxu0 0.0
        %821 = vmatprep.subr.mxu0 0.0
        %822 = vmatpush1.msra.mxu0 0.0
        %823 = vmatprep.subr.mxu0 0.0
        %824 = vmatpush1.msra.mxu0 0.0
        %825 = vmatprep.subr.mxu0 0.0
        %826 = vmatpush1.msra.mxu0 0.0
        %827 = vmatprep.subr.mxu0 0.0
        %828 = vmatpush1.msra.mxu0 0.0
        %829 = vmatprep.subr.mxu0 0.0
        %830 = vmatpush1.msra.mxu0 %v607
        %831 = vmatprep.subr.mxu0 0.0
        %832 = vmatpush1.msra.mxu0 %v606
        %833 = vmatprep.subr.mxu0 0.0
        %834 = vmatpush1.msra.mxu0 %v605
        %835 = vmatprep.subr.mxu0 0.0
        %836 = vmatpush1.msra.mxu0 %v604
        %837 = vmatprep.subr.mxu0 0.0
        %838 = vmatpush2.msra.mxu0 0.0
        %839 = vmatprep.subr.mxu0 0.0
        %840 = vmatpush2.msra.mxu0 0.0
        %841 = vmatprep.subr.mxu0 0.0
        %842 = vmatpush2.msra.mxu0 0.0
        %843 = vmatprep.subr.mxu0 0.0
        %844 = vmatpush2.msra.mxu0 0.0
        %845 = vmatprep.subr.mxu0 0.0
        %846 = vmatpush2.msra.mxu0 0.0
        %847 = vmatprep.subr.mxu0 0.0
        %848 = vmatpush2.msra.mxu0 0.0
        %849 = vmatprep.subr.mxu0 0.0
        %850 = vmatpush2.msra.mxu0 0.0
        %851 = vmatprep.subr.mxu0 0.0
        %852 = vmatpush2.msra.mxu0 0.0
        %853 = vmatprep.subr.mxu0 0.0
        %854 = vmatpush2.msra.mxu0 0.0
        %855 = vmatprep.subr.mxu0 0.0
        %856 = vmatpush2.msra.mxu0 0.0
        %857 = vmatprep.subr.mxu0 0.0
        %858 = vmatpush2.msra.mxu0 0.0
        %859 = vmatprep.subr.mxu0 0.0
        %860 = vmatpush2.msra.mxu0 0.0
        %861 = vmatprep.subr.mxu0 0.0
        %862 = vmatpush2.msra.mxu0 0.0
        %863 = vmatprep.subr.mxu0 0.0
        %864 = vmatpush2.msra.mxu0 0.0
        %865 = vmatprep.subr.mxu0 0.0
        %866 = vmatpush2.msra.mxu0 0.0
        %867 = vmatprep.subr.mxu0 0.0
        %868 = vmatpush2.msra.mxu0 0.0
        %869 = vmatprep.mubr.f32.mxu0 0.0
        %870 = vmatmul.mubr.f32.gmra.mxu0 %v800
        %v871 = vpop.f32.mrf.mxu0
        %v872 = vadd.f32 0.0, %v871
        %v873 = vpop.f32.mrf.mxu0
        %874 = vmatprep.mubr.f32.mxu0 0.0
        %875 = vmatmul.mubr.f32.gmra.mxu0 %v803
        %v876 = vpop.f32.mrf.mxu0
        %v877 = vadd.f32 0.0, %v876
        %v878 = vpop.f32.mrf.mxu0
        %879 = vdwg.mxu0
        %v880 = vpack.c.bf16 %v877, %v872
        %v881 = vld [vmem:[%s3] sm:$0xf]
        %v882 = vld [vmem:[%s3 + $0x4] sm:$0xf]
        %v883 = vld [vmem:[%s3 + $0x8] sm:$0xf]
        %v884 = vld [vmem:[%s3 + $0xc] sm:$0xf]
        %v885 = vld [vmem:[%s3 + $0x10] sm:$0xf]
        %v886 = vld [vmem:[%s3 + $0x14] sm:$0xf]
        %887 = vmatprep.subr.mxu0 0.0
        %888 = vmatpush1.msra.mxu0 0.0
        %889 = vmatprep.subr.mxu0 0.0
        %890 = vmatpush1.msra.mxu0 0.0
        %891 = vmatprep.subr.mxu0 0.0
        %892 = vmatpush1.msra.mxu0 0.0
        %893 = vmatprep.subr.mxu0 0.0
        %894 = vmatpush1.msra.mxu0 0.0
        %895 = vmatprep.subr.mxu0 0.0
        %896 = vmatpush1.msra.mxu0 0.0
        %897 = vmatprep.subr.mxu0 0.0
        %898 = vmatpush1.msra.mxu0 0.0
        %899 = vmatprep.subr.mxu0 0.0
        %900 = vmatpush1.msra.mxu0 0.0
        %901 = vmatprep.subr.mxu0 0.0
        %902 = vmatpush1.msra.mxu0 0.0
        %903 = vmatprep.subr.mxu0 0.0
        %904 = vmatpush1.msra.mxu0 0.0
        %905 = vmatprep.subr.mxu0 0.0
        %906 = vmatpush1.msra.mxu0 0.0
        %907 = vmatprep.subr.mxu0 0.0
        %908 = vmatpush1.msra.mxu0 0.0
        %909 = vmatprep.subr.mxu0 0.0
        %910 = vmatpush1.msra.mxu0 0.0
        %911 = vmatprep.subr.mxu0 0.0
        %912 = vmatpush1.msra.mxu0 %v611
        %913 = vmatprep.subr.mxu0 0.0
        %914 = vmatpush1.msra.mxu0 %v610
        %915 = vmatprep.subr.mxu0 0.0
        %916 = vmatpush1.msra.mxu0 %v609
        %917 = vmatprep.subr.mxu0 0.0
        %918 = vmatpush1.msra.mxu0 %v608
        %919 = vmatprep.subr.mxu0 0.0
        %920 = vmatpush2.msra.mxu0 0.0
        %921 = vmatprep.subr.mxu0 0.0
        %922 = vmatpush2.msra.mxu0 0.0
        %923 = vmatprep.subr.mxu0 0.0
        %924 = vmatpush2.msra.mxu0 0.0
        %925 = vmatprep.subr.mxu0 0.0
        %926 = vmatpush2.msra.mxu0 0.0
        %927 = vmatprep.subr.mxu0 0.0
        %928 = vmatpush2.msra.mxu0 0.0
        %929 = vmatprep.subr.mxu0 0.0
        %930 = vmatpush2.msra.mxu0 0.0
        %931 = vmatprep.subr.mxu0 0.0
        %932 = vmatpush2.msra.mxu0 0.0
        %933 = vmatprep.subr.mxu0 0.0
        %934 = vmatpush2.msra.mxu0 0.0
        %935 = vmatprep.subr.mxu0 0.0
        %936 = vmatpush2.msra.mxu0 0.0
        %937 = vmatprep.subr.mxu0 0.0
        %938 = vmatpush2.msra.mxu0 0.0
        %939 = vmatprep.subr.mxu0 0.0
        %940 = vmatpush2.msra.mxu0 0.0
        %941 = vmatprep.subr.mxu0 0.0
        %942 = vmatpush2.msra.mxu0 0.0
        %943 = vmatprep.subr.mxu0 0.0
        %944 = vmatpush2.msra.mxu0 0.0
        %945 = vmatprep.subr.mxu0 0.0
        %946 = vmatpush2.msra.mxu0 0.0
        %947 = vmatprep.subr.mxu0 0.0
        %948 = vmatpush2.msra.mxu0 0.0
        %949 = vmatprep.subr.mxu0 0.0
        %950 = vmatpush2.msra.mxu0 0.0
        %951 = vmatprep.mubr.f32.mxu0 0.0
        %952 = vmatmul.mubr.f32.gmra.mxu0 %v800
        %v953 = vpop.f32.mrf.mxu0
        %v954 = vadd.f32 0.0, %v953
        %v955 = vpop.f32.mrf.mxu0
        %956 = vmatprep.mubr.f32.mxu0 0.0
        %957 = vmatmul.mubr.f32.gmra.mxu0 %v803
        %v958 = vpop.f32.mrf.mxu0
        %v959 = vadd.f32 0.0, %v958
        %v960 = vpop.f32.mrf.mxu0
        %961 = vdwg.mxu0
        %v962 = vpack.c.bf16 %v959, %v954
        %v969 = vunpack.c.l.b16 %v881
        %v970 = vunpack.c.l.b16 %v882
        %v971 = vunpack.c.l.b16 %v883
        %v972 = vunpack.c.l.b16 %v884
        %v973 = vunpack.c.l.b16 %v885
        %v974 = vunpack.c.l.b16 %v886
        %v975 = vpack.c.b16 %v970, %v969
        %v976 = vpack.c.b16 %v972, %v971
        %v977 = vpack.c.b16 %v974, %v973
        %v979 = vsel %vm700, %v975, 0
        %v982 = vsel %vm700, %v976, 0
        %v985 = vsel %vm700, %v977, 0
        %987 = vmatprep.subr.bf16.mxu0 0
        %988 = vmatpush1.bf16.msra.mxu0 0
        %989 = vmatprep.subr.bf16.mxu0 0
        %990 = vmatpush1.bf16.msra.mxu0 0
        %991 = vmatprep.subr.bf16.mxu0 0
        %992 = vmatpush1.bf16.msra.mxu0 0
        %993 = vmatprep.subr.bf16.mxu0 0
        %994 = vmatpush1.bf16.msra.mxu0 0
        %995 = vmatprep.subr.bf16.mxu0 0
        %996 = vmatpush1.bf16.msra.mxu0 0
        %997 = vmatprep.subr.bf16.mxu0 0
        %998 = vmatpush1.bf16.msra.mxu0 0
        %999 = vmatprep.subr.bf16.mxu0 0
        %1000 = vmatpush1.bf16.msra.mxu0 0
        %1001 = vmatprep.subr.bf16.mxu0 0
        %1002 = vmatpush1.bf16.msra.mxu0 %v962
        %1003 = vmatprep.subr.bf16.mxu0 0
        %1004 = vmatpush2.bf16.msra.mxu0 0
        %1005 = vmatprep.subr.bf16.mxu0 0
        %1006 = vmatpush2.bf16.msra.mxu0 0
        %1007 = vmatprep.subr.bf16.mxu0 0
        %1008 = vmatpush2.bf16.msra.mxu0 0
        %1009 = vmatprep.subr.bf16.mxu0 0
        %1010 = vmatpush2.bf16.msra.mxu0 0
        %1011 = vmatprep.subr.bf16.mxu0 0
        %1012 = vmatpush2.bf16.msra.mxu0 0
        %1013 = vmatprep.subr.bf16.mxu0 0
        %1014 = vmatpush2.bf16.msra.mxu0 0
        %1015 = vmatprep.subr.bf16.mxu0 0
        %1016 = vmatpush2.bf16.msra.mxu0 0
        %1017 = vmatprep.subr.bf16.mxu0 0
        %1018 = vmatpush2.bf16.msra.mxu0 0
        %1019 = vmatprep.mubr.bf16.mxu0 0
        %1020 = vmatmul.mubr.bf16.gmra.mxu0 %v979
        %v1021 = vpop.f32.mrf.mxu0
        %v1022 = vadd.f32 0.0, %v1021
        %v1023 = vpop.f32.mrf.mxu0
        %v1024 = vpop.f32.mrf.mxu0
        %v1025 = vadd.f32 0.0, %v1024
        %v1026 = vpop.f32.mrf.mxu0
        %1027 = vmatprep.mubr.bf16.mxu0 0
        %1028 = vmatmul.mubr.bf16.gmra.mxu0 %v982
        %v1029 = vpop.f32.mrf.mxu0
        %v1030 = vadd.f32 0.0, %v1029
        %v1031 = vpop.f32.mrf.mxu0
        %v1032 = vpop.f32.mrf.mxu0
        %v1033 = vadd.f32 0.0, %v1032
        %v1034 = vpop.f32.mrf.mxu0
        %1035 = vmatprep.mubr.bf16.mxu0 0
        %1036 = vmatmul.mubr.bf16.gmra.mxu0 %v985
        %v1037 = vpop.f32.mrf.mxu0
        %v1038 = vadd.f32 0.0, %v1037
        %v1039 = vpop.f32.mrf.mxu0
        %v1040 = vpop.f32.mrf.mxu0
        %v1041 = vadd.f32 0.0, %v1040
        %v1042 = vpop.f32.mrf.mxu0
        %1043 = vdwg.mxu0
        %v1050 = vunpack.c.l.b16 %v792
        %v1051 = vunpack.c.l.b16 %v793
        %v1052 = vunpack.c.l.b16 %v794
        %v1053 = vunpack.c.l.b16 %v795
        %v1054 = vunpack.c.l.b16 %v796
        %v1055 = vunpack.c.l.b16 %v797
        %v1056 = vpack.c.b16 %v1051, %v1050
        %v1057 = vpack.c.b16 %v1053, %v1052
        %v1058 = vpack.c.b16 %v1055, %v1054
        %v1060 = vsel %vm700, %v1056, 0
        %v1063 = vsel %vm700, %v1057, 0
        %v1066 = vsel %vm700, %v1058, 0
        %1068 = vmatprep.subr.bf16.mxu0 0
        %1069 = vmatpush1.bf16.msra.mxu0 0
        %1070 = vmatprep.subr.bf16.mxu0 0
        %1071 = vmatpush1.bf16.msra.mxu0 0
        %1072 = vmatprep.subr.bf16.mxu0 0
        %1073 = vmatpush1.bf16.msra.mxu0 0
        %1074 = vmatprep.subr.bf16.mxu0 0
        %1075 = vmatpush1.bf16.msra.mxu0 0
        %1076 = vmatprep.subr.bf16.mxu0 0
        %1077 = vmatpush1.bf16.msra.mxu0 0
        %1078 = vmatprep.subr.bf16.mxu0 0
        %1079 = vmatpush1.bf16.msra.mxu0 0
        %1080 = vmatprep.subr.bf16.mxu0 0
        %1081 = vmatpush1.bf16.msra.mxu0 0
        %1082 = vmatprep.subr.bf16.mxu0 0
        %1083 = vmatpush1.bf16.msra.mxu0 %v880
        %1084 = vmatprep.subr.bf16.mxu0 0
        %1085 = vmatpush2.bf16.msra.mxu0 0
        %1086 = vmatprep.subr.bf16.mxu0 0
        %1087 = vmatpush2.bf16.msra.mxu0 0
        %1088 = vmatprep.subr.bf16.mxu0 0
        %1089 = vmatpush2.bf16.msra.mxu0 0
        %1090 = vmatprep.subr.bf16.mxu0 0
        %1091 = vmatpush2.bf16.msra.mxu0 0
        %1092 = vmatprep.subr.bf16.mxu0 0
        %1093 = vmatpush2.bf16.msra.mxu0 0
        %1094 = vmatprep.subr.bf16.mxu0 0
        %1095 = vmatpush2.bf16.msra.mxu0 0
        %1096 = vmatprep.subr.bf16.mxu0 0
        %1097 = vmatpush2.bf16.msra.mxu0 0
        %1098 = vmatprep.subr.bf16.mxu0 0
        %1099 = vmatpush2.bf16.msra.mxu0 0
        %1100 = vmatprep.mubr.bf16.mxu0 0
        %1101 = vmatmul.mubr.bf16.gmra.mxu0 %v1060
        %v1102 = vpop.f32.mrf.mxu0
        %v1103 = vadd.f32 %v1022, %v1102
        %v1104 = vpop.f32.mrf.mxu0
        %v1105 = vpop.f32.mrf.mxu0
        %v1106 = vadd.f32 %v1025, %v1105
        %v1107 = vpop.f32.mrf.mxu0
        %1108 = vmatprep.mubr.bf16.mxu0 0
        %1109 = vmatmul.mubr.bf16.gmra.mxu0 %v1063
        %v1110 = vpop.f32.mrf.mxu0
        %v1111 = vadd.f32 %v1030, %v1110
        %v1112 = vpop.f32.mrf.mxu0
        %v1113 = vpop.f32.mrf.mxu0
        %v1114 = vadd.f32 %v1033, %v1113
        %v1115 = vpop.f32.mrf.mxu0
        %1116 = vmatprep.mubr.bf16.mxu0 0
        %1117 = vmatmul.mubr.bf16.gmra.mxu0 %v1066
        %v1118 = vpop.f32.mrf.mxu0
        %v1119 = vadd.f32 %v1038, %v1118
        %v1120 = vpop.f32.mrf.mxu0
        %v1121 = vpop.f32.mrf.mxu0
        %v1122 = vadd.f32 %v1041, %v1121
        %v1123 = vpop.f32.mrf.mxu0
        %1124 = vdwg.mxu0
        %v1125 = vlaneseq
        %v1126 = vshrl.u32 %v1125, 7
        %v1127 = vsub.s32 0, %v1126
        %v1128 = vrot.slane %v612, %v1127
        %v1129 = vmul.f32 %v776, %v1128
        %v1130 = vmul.f32 %v779, %v1128
        %v1131 = vmul.f32 %v782, %v1128
        %v1132 = vmul.f32 %v785, %v1128
        %v1133 = vmul.f32 %v788, %v1128
        %v1134 = vmul.f32 %v791, %v1128
        %v1135 = vadd.f32 %v1103, %v1129
        %v1136 = vadd.f32 %v1106, %v1130
        %v1137 = vadd.f32 %v1111, %v1131
        %v1138 = vadd.f32 %v1114, %v1132
        %v1139 = vadd.f32 %v1119, %v1133
        %v1140 = vadd.f32 %v1122, %v1134
        %v1141 = vlaneseq
        %v1142 = vshrl.u32 %v1141, 7
        %v1143 = vsub.s32 0, %v1142
        %v1144 = vrot.slane %v613, %v1143
        %v1145 = vadd.f32 %v1135, %v1144
        %v1146 = vadd.f32 %v1136, %v1144
        %v1147 = vadd.f32 %v1137, %v1144
        %v1148 = vadd.f32 %v1138, %v1144
        %v1149 = vadd.f32 %v1139, %v1144
        %v1150 = vadd.f32 %v1140, %v1144
        %v1151 = vxor.u32 %v1145, 2147483648
        %v1152 = vxor.u32 %v1146, 2147483648
        %v1153 = vxor.u32 %v1147, 2147483648
        %v1154 = vxor.u32 %v1148, 2147483648
        %v1155 = vxor.u32 %v1149, 2147483648
        %v1156 = vxor.u32 %v1150, 2147483648
        %v1157 = vmul.f32 %v1151, 1.442695
        %v1158 = vpow.pop %v1157
        %v1159 = vmul.f32 %v1152, 1.442695
        %v1160 = vpow.pop %v1159
        %v1161 = vmul.f32 %v1153, 1.442695
        %v1162 = vpow.pop %v1161
        %v1163 = vmul.f32 %v1154, 1.442695
        %v1164 = vpow.pop %v1163
        %v1165 = vmul.f32 %v1155, 1.442695
        %v1166 = vpow.pop %v1165
        %v1167 = vmul.f32 %v1156, 1.442695
        %v1168 = vpow.pop %v1167
        %v1169 = vadd.f32 %v1158, 1.0
        %v1170 = vadd.f32 %v1160, 1.0
        %v1171 = vadd.f32 %v1162, 1.0
        %v1172 = vadd.f32 %v1164, 1.0
        %v1173 = vadd.f32 %v1166, 1.0
        %v1174 = vadd.f32 %v1168, 1.0
        %v1175 = vrcp.pop %v1169
        %v1176 = vmul.f32 1.0, %v1175
        %v1177 = vrcp.pop %v1170
        %v1178 = vmul.f32 1.0, %v1177
        %v1179 = vrcp.pop %v1171
        %v1180 = vmul.f32 1.0, %v1179
        %v1181 = vrcp.pop %v1172
        %v1182 = vmul.f32 1.0, %v1181
        %v1183 = vrcp.pop %v1173
        %v1184 = vmul.f32 1.0, %v1183
        %v1185 = vrcp.pop %v1174
        %v1186 = vmul.f32 1.0, %v1185
        %v1187 = vmul.f32 %v1145, %v1176
        %v1188 = vmul.f32 %v1146, %v1178
        %v1189 = vmul.f32 %v1147, %v1180
        %v1190 = vmul.f32 %v1148, %v1182
        %v1191 = vmul.f32 %v1149, %v1184
        %v1192 = vmul.f32 %v1150, %v1186
        %v1193 = vlaneseq
        %v1194 = vshrl.u32 %v1193, 7
        %v1195 = vsub.s32 0, %v1194
        %v1196 = vrot.slane %v634, %v1195
        %vm1197 = vcmask 523264
        %v1199 = vsel %vm1197, %v1187, 0
        %v1202 = vsel %vm1197, %v1188, 0
        %v1205 = vsel %vm1197, %v1189, 0
        %v1208 = vsel %vm1197, %v1190, 0
        %v1211 = vsel %vm1197, %v1191, 0
        %v1214 = vsel %vm1197, %v1192, 0
        %1216 = vmatprep.subr.mxu0 0.0
        %1217 = vmatpush1.msra.mxu0 0.0
        %1218 = vmatprep.subr.mxu0 0.0
        %1219 = vmatpush1.msra.mxu0 0.0
        %1220 = vmatprep.subr.mxu0 0.0
        %1221 = vmatpush1.msra.mxu0 0.0
        %1222 = vmatprep.subr.mxu0 0.0
        %1223 = vmatpush1.msra.mxu0 0.0
        %1224 = vmatprep.subr.mxu0 0.0
        %1225 = vmatpush1.msra.mxu0 0.0
        %1226 = vmatprep.subr.mxu0 0.0
        %1227 = vmatpush1.msra.mxu0 0.0
        %1228 = vmatprep.subr.mxu0 0.0
        %1229 = vmatpush1.msra.mxu0 0.0
        %1230 = vmatprep.subr.mxu0 0.0
        %1231 = vmatpush1.msra.mxu0 0.0
        %1232 = vmatprep.subr.mxu0 0.0
        %1233 = vmatpush1.msra.mxu0 %v633
        %1234 = vmatprep.subr.mxu0 0.0
        %1235 = vmatpush1.msra.mxu0 %v632
        %1236 = vmatprep.subr.mxu0 0.0
        %1237 = vmatpush1.msra.mxu0 %v631
        %1238 = vmatprep.subr.mxu0 0.0
        %1239 = vmatpush1.msra.mxu0 %v630
        %1240 = vmatprep.subr.mxu0 0.0
        %1241 = vmatpush1.msra.mxu0 %v629
        %1242 = vmatprep.subr.mxu0 0.0
        %1243 = vmatpush1.msra.mxu0 %v628
        %1244 = vmatprep.subr.mxu0 0.0
        %1245 = vmatpush1.msra.mxu0 %v627
        %1246 = vmatprep.subr.mxu0 0.0
        %1247 = vmatpush1.msra.mxu0 %v626
        %1248 = vmatprep.subr.mxu0 0.0
        %1249 = vmatpush2.msra.mxu0 0.0
        %1250 = vmatprep.subr.mxu0 0.0
        %1251 = vmatpush2.msra.mxu0 0.0
        %1252 = vmatprep.subr.mxu0 0.0
        %1253 = vmatpush2.msra.mxu0 0.0
        %1254 = vmatprep.subr.mxu0 0.0
        %1255 = vmatpush2.msra.mxu0 0.0
        %1256 = vmatprep.subr.mxu0 0.0
        %1257 = vmatpush2.msra.mxu0 0.0
        %1258 = vmatprep.subr.mxu0 0.0
        %1259 = vmatpush2.msra.mxu0 0.0
        %1260 = vmatprep.subr.mxu0 0.0
        %1261 = vmatpush2.msra.mxu0 0.0
        %1262 = vmatprep.subr.mxu0 0.0
        %1263 = vmatpush2.msra.mxu0 0.0
        %1264 = vmatprep.subr.mxu0 0.0
        %1265 = vmatpush2.msra.mxu0 0.0
        %1266 = vmatprep.subr.mxu0 0.0
        %1267 = vmatpush2.msra.mxu0 0.0
        %1268 = vmatprep.subr.mxu0 0.0
        %1269 = vmatpush2.msra.mxu0 0.0
        %1270 = vmatprep.subr.mxu0 0.0
        %1271 = vmatpush2.msra.mxu0 0.0
        %1272 = vmatprep.subr.mxu0 0.0
        %1273 = vmatpush2.msra.mxu0 0.0
        %1274 = vmatprep.subr.mxu0 0.0
        %1275 = vmatpush2.msra.mxu0 0.0
        %1276 = vmatprep.subr.mxu0 0.0
        %1277 = vmatpush2.msra.mxu0 0.0
        %1278 = vmatprep.subr.mxu0 0.0
        %1279 = vmatpush2.msra.mxu0 0.0
        %1280 = vmatprep.mubr.f32.mxu0 0.0
        %1281 = vmatmul.mubr.f32.gmra.mxu0 %v1199
        %v1282 = vpop.f32.mrf.mxu0
        %v1283 = vadd.f32 %v1196, %v1282
        %v1284 = vpop.f32.mrf.mxu0
        %1285 = vmatprep.mubr.f32.mxu0 0.0
        %1286 = vmatmul.mubr.f32.gmra.mxu0 %v1202
        %v1287 = vpop.f32.mrf.mxu0
        %v1288 = vadd.f32 %v1196, %v1287
        %v1289 = vpop.f32.mrf.mxu0
        %1290 = vmatprep.mubr.f32.mxu0 0.0
        %1291 = vmatmul.mubr.f32.gmra.mxu0 %v1205
        %v1292 = vpop.f32.mrf.mxu0
        %v1293 = vadd.f32 %v1196, %v1292
        %v1294 = vpop.f32.mrf.mxu0
        %1295 = vmatprep.mubr.f32.mxu0 0.0
        %1296 = vmatmul.mubr.f32.gmra.mxu0 %v1208
        %v1297 = vpop.f32.mrf.mxu0
        %v1298 = vadd.f32 %v1196, %v1297
        %v1299 = vpop.f32.mrf.mxu0
        %1300 = vmatprep.mubr.f32.mxu0 0.0
        %1301 = vmatmul.mubr.f32.gmra.mxu0 %v1211
        %v1302 = vpop.f32.mrf.mxu0
        %v1303 = vadd.f32 %v1196, %v1302
        %v1304 = vpop.f32.mrf.mxu0
        %1305 = vmatprep.mubr.f32.mxu0 0.0
        %1306 = vmatmul.mubr.f32.gmra.mxu0 %v1214
        %v1307 = vpop.f32.mrf.mxu0
        %v1308 = vadd.f32 %v1196, %v1307
        %v1309 = vpop.f32.mrf.mxu0
        %1310 = vdwg.mxu0
        %v1311 = vxor.u32 %v1283, 2147483648
        %v1312 = vxor.u32 %v1288, 2147483648
        %v1313 = vxor.u32 %v1293, 2147483648
        %v1314 = vxor.u32 %v1298, 2147483648
        %v1315 = vxor.u32 %v1303, 2147483648
        %v1316 = vxor.u32 %v1308, 2147483648
        %v1317 = vmul.f32 %v1311, 1.442695
        %v1318 = vpow.pop %v1317
        %v1319 = vmul.f32 %v1312, 1.442695
        %v1320 = vpow.pop %v1319
        %v1321 = vmul.f32 %v1313, 1.442695
        %v1322 = vpow.pop %v1321
        %v1323 = vmul.f32 %v1314, 1.442695
        %v1324 = vpow.pop %v1323
        %v1325 = vmul.f32 %v1315, 1.442695
        %v1326 = vpow.pop %v1325
        %v1327 = vmul.f32 %v1316, 1.442695
        %v1328 = vpow.pop %v1327
        %v1329 = vadd.f32 %v1318, 1.0
        %v1330 = vadd.f32 %v1320, 1.0
        %v1331 = vadd.f32 %v1322, 1.0
        %v1332 = vadd.f32 %v1324, 1.0
        %v1333 = vadd.f32 %v1326, 1.0
        %v1334 = vadd.f32 %v1328, 1.0
        %v1335 = vrcp.pop %v1329
        %v1336 = vmul.f32 1.0, %v1335
        %v1337 = vrcp.pop %v1330
        %v1338 = vmul.f32 1.0, %v1337
        %v1339 = vrcp.pop %v1331
        %v1340 = vmul.f32 1.0, %v1339
        %v1341 = vrcp.pop %v1332
        %v1342 = vmul.f32 1.0, %v1341
        %v1343 = vrcp.pop %v1333
        %v1344 = vmul.f32 1.0, %v1343
        %v1345 = vrcp.pop %v1334
        %v1346 = vmul.f32 1.0, %v1345
        %v1347 = vmul.f32 %v1283, %v1336
        %v1348 = vmul.f32 %v1288, %v1338
        %v1349 = vmul.f32 %v1293, %v1340
        %v1350 = vmul.f32 %v1298, %v1342
        %v1351 = vmul.f32 %v1303, %v1344
        %v1352 = vmul.f32 %v1308, %v1346
        %v1353 = vsel %vm700, %v1347, 0.0
        %1354 = vadd.xlane.f32.xlu0 %v1353
        %v1355 = vpop.xlane.xlu0 %1354
        %v1356 = vsel %vm700, %v1348, 0.0
        %1357 = vadd.xlane.f32.xlu0 %v1356
        %v1358 = vpop.xlane.xlu0 %1357
        %v1359 = vsel %vm700, %v1349, 0.0
        %1360 = vadd.xlane.f32.xlu0 %v1359
        %v1361 = vpop.xlane.xlu0 %1360
        %v1362 = vsel %vm700, %v1350, 0.0
        %1363 = vadd.xlane.f32.xlu0 %v1362
        %v1364 = vpop.xlane.xlu0 %1363
        %v1365 = vsel %vm700, %v1351, 0.0
        %1366 = vadd.xlane.f32.xlu0 %v1365
        %v1367 = vpop.xlane.xlu0 %1366
        %v1368 = vsel %vm700, %v1352, 0.0
        %1369 = vadd.xlane.f32.xlu0 %v1368
        %v1370 = vpop.xlane.xlu0 %1369
        %v1371 = vrcp.pop 16.0
        %v1372 = vmul.f32 %v1355, %v1371
        %v1373 = vmul.f32 %v1358, %v1371
        %v1374 = vmul.f32 %v1361, %v1371
        %v1375 = vmul.f32 %v1364, %v1371
        %v1376 = vmul.f32 %v1367, %v1371
        %v1377 = vmul.f32 %v1370, %v1371
        %v1378 = vsub.f32 %v1347, %v1372
        %v1379 = vsub.f32 %v1348, %v1373
        %v1380 = vsub.f32 %v1349, %v1374
        %v1381 = vsub.f32 %v1350, %v1375
        %v1382 = vsub.f32 %v1351, %v1376
        %v1383 = vsub.f32 %v1352, %v1377
        %v1384 = vmul.f32 %v1378, %v1378
        %v1385 = vmul.f32 %v1379, %v1379
        %v1386 = vmul.f32 %v1380, %v1380
        %v1387 = vmul.f32 %v1381, %v1381
        %v1388 = vmul.f32 %v1382, %v1382
        %v1389 = vmul.f32 %v1383, %v1383
        %v1390 = vsel %vm700, %v1384, 0.0
        %1391 = vadd.xlane.f32.xlu0 %v1390
        %v1392 = vpop.xlane.xlu0 %1391
        %v1393 = vsel %vm700, %v1385, 0.0
        %1394 = vadd.xlane.f32.xlu0 %v1393
        %v1395 = vpop.xlane.xlu0 %1394
        %v1396 = vsel %vm700, %v1386, 0.0
        %1397 = vadd.xlane.f32.xlu0 %v1396
        %v1398 = vpop.xlane.xlu0 %1397
        %v1399 = vsel %vm700, %v1387, 0.0
        %1400 = vadd.xlane.f32.xlu0 %v1399
        %v1401 = vpop.xlane.xlu0 %1400
        %v1402 = vsel %vm700, %v1388, 0.0
        %1403 = vadd.xlane.f32.xlu0 %v1402
        %v1404 = vpop.xlane.xlu0 %1403
        %v1405 = vsel %vm700, %v1389, 0.0
        %1406 = vadd.xlane.f32.xlu0 %v1405
        %v1407 = vpop.xlane.xlu0 %1406
        %v1408 = vmul.f32 %v1392, %v1371
        %v1409 = vmul.f32 %v1395, %v1371
        %v1410 = vmul.f32 %v1398, %v1371
        %v1411 = vmul.f32 %v1401, %v1371
        %v1412 = vmul.f32 %v1404, %v1371
        %v1413 = vmul.f32 %v1407, %v1371
        %v1414 = vadd.f32 %v1408, 1e-05
        %v1415 = vadd.f32 %v1409, 1e-05
        %v1416 = vadd.f32 %v1410, 1e-05
        %v1417 = vadd.f32 %v1411, 1e-05
        %v1418 = vadd.f32 %v1412, 1e-05
        %v1419 = vadd.f32 %v1413, 1e-05
        %v1420 = vrsqrt.pop %v1414
        %v1421 = vrsqrt.pop %v1415
        %v1422 = vrsqrt.pop %v1416
        %v1423 = vrsqrt.pop %v1417
        %v1424 = vrsqrt.pop %v1418
        %v1425 = vrsqrt.pop %v1419
        %v1426 = vmul.f32 %v1378, %v1420
        %v1427 = vmul.f32 %v1379, %v1421
        %v1428 = vmul.f32 %v1380, %v1422
        %v1429 = vmul.f32 %v1381, %v1423
        %v1430 = vmul.f32 %v1382, %v1424
        %v1431 = vmul.f32 %v1383, %v1425
        %v1432 = vlaneseq
        %v1433 = vshrl.u32 %v1432, 7
        %v1434 = vsub.s32 0, %v1433
        %v1435 = vrot.slane %v635, %v1434
        %v1436 = vmul.f32 %v1426, %v1435
        %v1437 = vmul.f32 %v1427, %v1435
        %v1438 = vmul.f32 %v1428, %v1435
        %v1439 = vmul.f32 %v1429, %v1435
        %v1440 = vmul.f32 %v1430, %v1435
        %v1441 = vmul.f32 %v1431, %v1435
        %v1442 = vlaneseq
        %v1443 = vshrl.u32 %v1442, 7
        %v1444 = vsub.s32 0, %v1443
        %v1445 = vrot.slane %v636, %v1444
        %v1446 = vadd.f32 %v1436, %v1445
        %v1447 = vadd.f32 %v1437, %v1445
        %v1448 = vadd.f32 %v1438, %v1445
        %v1449 = vadd.f32 %v1439, %v1445
        %v1450 = vadd.f32 %v1440, %v1445
        %v1451 = vadd.f32 %v1441, %v1445
        %v1452 = vld [vmem:[%s6] sm:$0xf]
        %v1453 = vld [vmem:[%s6 + $0x4] sm:$0xf]
        %v1454 = vpack.c.bf16 %v1447, %v1446
        %v1455 = vpack.c.bf16 %v1449, %v1448
        %v1456 = vpack.c.bf16 %v1451, %v1450
        %v1459 = vunpack.c.l.b16 %v1452
        %v1460 = vunpack.c.l.b16 %v1453
        %v1461 = vpack.c.b16 %v1460, %v1459
        %vm1462 = vcmask 392192
        %v1464 = vsel %vm1462, %v1461, 0
        %1466 = vmatprep.subr.bf16.mxu0 0
        %1467 = vmatpush1.bf16.msra.mxu0 0
        %1468 = vmatprep.subr.bf16.mxu0 0
        %1469 = vmatpush1.bf16.msra.mxu0 0
        %1470 = vmatprep.subr.bf16.mxu0 0
        %1471 = vmatpush1.bf16.msra.mxu0 0
        %1472 = vmatprep.subr.bf16.mxu0 0
        %1473 = vmatpush1.bf16.msra.mxu0 0
        %1474 = vmatprep.subr.bf16.mxu0 0
        %1475 = vmatpush1.bf16.msra.mxu0 0
        %1476 = vmatprep.subr.bf16.mxu0 0
        %1477 = vmatpush1.bf16.msra.mxu0 %v1456
        %1478 = vmatprep.subr.bf16.mxu0 0
        %1479 = vmatpush1.bf16.msra.mxu0 %v1455
        %1480 = vmatprep.subr.bf16.mxu0 0
        %1481 = vmatpush1.bf16.msra.mxu0 %v1454
        %1482 = vmatprep.subr.bf16.mxu0 0
        %1483 = vmatpush2.bf16.msra.mxu0 0
        %1484 = vmatprep.subr.bf16.mxu0 0
        %1485 = vmatpush2.bf16.msra.mxu0 0
        %1486 = vmatprep.subr.bf16.mxu0 0
        %1487 = vmatpush2.bf16.msra.mxu0 0
        %1488 = vmatprep.subr.bf16.mxu0 0
        %1489 = vmatpush2.bf16.msra.mxu0 0
        %1490 = vmatprep.subr.bf16.mxu0 0
        %1491 = vmatpush2.bf16.msra.mxu0 0
        %1492 = vmatprep.subr.bf16.mxu0 0
        %1493 = vmatpush2.bf16.msra.mxu0 0
        %1494 = vmatprep.subr.bf16.mxu0 0
        %1495 = vmatpush2.bf16.msra.mxu0 0
        %1496 = vmatprep.subr.bf16.mxu0 0
        %1497 = vmatpush2.bf16.msra.mxu0 0
        %1498 = vmatprep.mubr.bf16.mxu0 0
        %1499 = vmatmul.mubr.bf16.gmra.mxu0 %v1464
        %v1500 = vpop.f32.mrf.mxu0
        %v1501 = vadd.f32 0.0, %v1500
        %v1502 = vpop.f32.mrf.mxu0
        %v1503 = vpop.f32.mrf.mxu0
        %v1504 = vadd.f32 0.0, %v1503
        %v1505 = vpop.f32.mrf.mxu0
        %1506 = vdwg.mxu0
        %1508 = vset.pattern.permute.xlu0 0
        %1509 = vperm.xlu0 %1508, %v602
        %v1510 = vpop.permute.xlu0 %1509
        %1513 = vset.pattern.permute.xlu0 0
        %1514 = vperm.xlu0 %1513, %v603
        %v1515 = vpop.permute.xlu0 %1514
        %v1517 = vmul.f32 %v1501, %v1510
        %v1518 = vmul.f32 %v1504, %v1515
        %v1519 = vld [vmem:[%s8] sm:$0xff]
        %v1520 = vld [vmem:[%s8 + $0x8] sm:$0xff]
        %v1522 = vsel %vm700, %v1519, 0
        %v1525 = vsel %vm700, %v1520, 0
        %1527 = vmatprep.subr.mxu0 0.0
        %1528 = vmatpush1.msra.mxu0 0.0
        %1529 = vmatprep.subr.mxu0 0.0
        %1530 = vmatpush1.msra.mxu0 0.0
        %1531 = vmatprep.subr.mxu0 0.0
        %1532 = vmatpush1.msra.mxu0 0.0
        %1533 = vmatprep.subr.mxu0 0.0
        %1534 = vmatpush1.msra.mxu0 0.0
        %1535 = vmatprep.subr.mxu0 0.0
        %1536 = vmatpush1.msra.mxu0 0.0
        %1537 = vmatprep.subr.mxu0 0.0
        %1538 = vmatpush1.msra.mxu0 0.0
        %1539 = vmatprep.subr.mxu0 0.0
        %1540 = vmatpush1.msra.mxu0 0.0
        %1541 = vmatprep.subr.mxu0 0.0
        %1542 = vmatpush1.msra.mxu0 0.0
        %1543 = vmatprep.subr.mxu0 0.0
        %1544 = vmatpush1.msra.mxu0 0.0
        %1545 = vmatprep.subr.mxu0 0.0
        %1546 = vmatpush1.msra.mxu0 0.0
        %1547 = vmatprep.subr.mxu0 0.0
        %1548 = vmatpush1.msra.mxu0 0.0
        %1549 = vmatprep.subr.mxu0 0.0
        %1550 = vmatpush1.msra.mxu0 0.0
        %1551 = vmatprep.subr.mxu0 0.0
        %1552 = vmatpush1.msra.mxu0 0.0
        %1553 = vmatprep.subr.mxu0 0.0
        %1554 = vmatpush1.msra.mxu0 0.0
        %1555 = vmatprep.subr.mxu0 0.0
        %1556 = vmatpush1.msra.mxu0 %v601
        %1557 = vmatprep.subr.mxu0 0.0
        %1558 = vmatpush1.msra.mxu0 %v600
        %1559 = vmatprep.subr.mxu0 0.0
        %1560 = vmatpush2.msra.mxu0 0.0
        %1561 = vmatprep.subr.mxu0 0.0
        %1562 = vmatpush2.msra.mxu0 0.0
        %1563 = vmatprep.subr.mxu0 0.0
        %1564 = vmatpush2.msra.mxu0 0.0
        %1565 = vmatprep.subr.mxu0 0.0
        %1566 = vmatpush2.msra.mxu0 0.0
        %1567 = vmatprep.subr.mxu0 0.0
        %1568 = vmatpush2.msra.mxu0 0.0
        %1569 = vmatprep.subr.mxu0 0.0
        %1570 = vmatpush2.msra.mxu0 0.0
        %1571 = vmatprep.subr.mxu0 0.0
        %1572 = vmatpush2.msra.mxu0 0.0
        %1573 = vmatprep.subr.mxu0 0.0
        %1574 = vmatpush2.msra.mxu0 0.0
        %1575 = vmatprep.subr.mxu0 0.0
        %1576 = vmatpush2.msra.mxu0 0.0
        %1577 = vmatprep.subr.mxu0 0.0
        %1578 = vmatpush2.msra.mxu0 0.0
        %1579 = vmatprep.subr.mxu0 0.0
        %1580 = vmatpush2.msra.mxu0 0.0
        %1581 = vmatprep.subr.mxu0 0.0
        %1582 = vmatpush2.msra.mxu0 0.0
        %1583 = vmatprep.subr.mxu0 0.0
        %1584 = vmatpush2.msra.mxu0 0.0
        %1585 = vmatprep.subr.mxu0 0.0
        %1586 = vmatpush2.msra.mxu0 0.0
        %1587 = vmatprep.subr.mxu0 0.0
        %1588 = vmatpush2.msra.mxu0 0.0
        %1589 = vmatprep.subr.mxu0 0.0
        %1590 = vmatpush2.msra.mxu0 0.0
        %1591 = vmatprep.mubr.f32.mxu0 0.0
        %1592 = vmatmul.mubr.f32.gmra.mxu0 %v1522
        %v1593 = vpop.f32.mrf.mxu0
        %v1594 = vadd.f32 0.0, %v1593
        %v1595 = vpop.f32.mrf.mxu0
        %1596 = vmatprep.mubr.f32.mxu0 0.0
        %1597 = vmatmul.mubr.f32.gmra.mxu0 %v1525
        %v1598 = vpop.f32.mrf.mxu0
        %v1599 = vadd.f32 0.0, %v1598
        %v1600 = vpop.f32.mrf.mxu0
        %1601 = vdwg.mxu0
        %s1603 = vtos %v659
        %v1604 = vstv %s1603
        %v1606 = vmul.f32 %v1604, %v1594
        %v1607 = vmul.f32 %v1604, %v1599
        %v1608 = vadd.f32 %v600, %v1606
        %v1609 = vadd.f32 %v601, %v1607
        %v1610 = vsel %vm798, %v598, 0.0
        %1611 = vadd.xlane.f32.xlu0 %v1610
        %v1612 = vpop.xlane.xlu0 %1611
        %v1613 = vsel %vm798, %v599, 0.0
        %1614 = vadd.xlane.f32.xlu0 %v1613
        %v1615 = vpop.xlane.xlu0 %1614
        %v1616 = vrcp.pop 32.0
        %v1617 = vmul.f32 %v1612, %v1616
        %v1618 = vmul.f32 %v1615, %v1616
        %v1619 = vsub.f32 %v598, %v1617
        %v1620 = vsub.f32 %v599, %v1618
        %v1621 = vmul.f32 %v1619, %v1619
        %v1622 = vmul.f32 %v1620, %v1620
        %v1623 = vsel %vm798, %v1621, 0.0
        %1624 = vadd.xlane.f32.xlu0 %v1623
        %v1625 = vpop.xlane.xlu0 %1624
        %v1626 = vsel %vm798, %v1622, 0.0
        %1627 = vadd.xlane.f32.xlu0 %v1626
        %v1628 = vpop.xlane.xlu0 %1627
        %v1629 = vmul.f32 %v1625, %v1616
        %v1630 = vmul.f32 %v1628, %v1616
        %v1631 = vadd.f32 %v1629, 1e-05
        %v1632 = vadd.f32 %v1630, 1e-05
        %v1633 = vrsqrt.pop %v1631
        %v1634 = vrsqrt.pop %v1632
        %v1635 = vmul.f32 %v1619, %v1633
        %v1636 = vmul.f32 %v1620, %v1634
        %v1637 = vlaneseq
        %v1638 = vshrl.u32 %v1637, 7
        %v1639 = vsub.s32 0, %v1638
        %v1640 = vrot.slane %v646, %v1639
        %v1641 = vmul.f32 %v1635, %v1640
        %v1642 = vmul.f32 %v1636, %v1640
        %v1643 = vlaneseq
        %v1644 = vshrl.u32 %v1643, 7
        %v1645 = vsub.s32 0, %v1644
        %v1646 = vrot.slane %v647, %v1645
        %v1647 = vadd.f32 %v1641, %v1646
        %v1648 = vadd.f32 %v1642, %v1646
        %v1650 = vsel %vm700, %v1517, 0
        %v1653 = vsel %vm700, %v1518, 0
        %1655 = vmatprep.subr.mxu0 0.0
        %1656 = vmatpush1.msra.mxu0 0.0
        %1657 = vmatprep.subr.mxu0 0.0
        %1658 = vmatpush1.msra.mxu0 0.0
        %1659 = vmatprep.subr.mxu0 0.0
        %1660 = vmatpush1.msra.mxu0 0.0
        %1661 = vmatprep.subr.mxu0 0.0
        %1662 = vmatpush1.msra.mxu0 0.0
        %1663 = vmatprep.subr.mxu0 0.0
        %1664 = vmatpush1.msra.mxu0 0.0
        %1665 = vmatprep.subr.mxu0 0.0
        %1666 = vmatpush1.msra.mxu0 0.0
        %1667 = vmatprep.subr.mxu0 0.0
        %1668 = vmatpush1.msra.mxu0 0.0
        %1669 = vmatprep.subr.mxu0 0.0
        %1670 = vmatpush1.msra.mxu0 0.0
        %1671 = vmatprep.subr.mxu0 0.0
        %1672 = vmatpush1.msra.mxu0 0.0
        %1673 = vmatprep.subr.mxu0 0.0
        %1674 = vmatpush1.msra.mxu0 0.0
        %1675 = vmatprep.subr.mxu0 0.0
        %1676 = vmatpush1.msra.mxu0 0.0
        %1677 = vmatprep.subr.mxu0 0.0
        %1678 = vmatpush1.msra.mxu0 0.0
        %1679 = vmatprep.subr.mxu0 0.0
        %1680 = vmatpush1.msra.mxu0 0.0
        %1681 = vmatprep.subr.mxu0 0.0
        %1682 = vmatpush1.msra.mxu0 0.0
        %1683 = vmatprep.subr.mxu0 0.0
        %1684 = vmatpush1.msra.mxu0 %v619
        %1685 = vmatprep.subr.mxu0 0.0
        %1686 = vmatpush1.msra.mxu0 %v618
        %1687 = vmatprep.subr.mxu0 0.0
        %1688 = vmatpush2.msra.mxu0 0.0
        %1689 = vmatprep.subr.mxu0 0.0
        %1690 = vmatpush2.msra.mxu0 0.0
        %1691 = vmatprep.subr.mxu0 0.0
        %1692 = vmatpush2.msra.mxu0 0.0
        %1693 = vmatprep.subr.mxu0 0.0
        %1694 = vmatpush2.msra.mxu0 0.0
        %1695 = vmatprep.subr.mxu0 0.0
        %1696 = vmatpush2.msra.mxu0 0.0
        %1697 = vmatprep.subr.mxu0 0.0
        %1698 = vmatpush2.msra.mxu0 0.0
        %1699 = vmatprep.subr.mxu0 0.0
        %1700 = vmatpush2.msra.mxu0 0.0
        %1701 = vmatprep.subr.mxu0 0.0
        %1702 = vmatpush2.msra.mxu0 0.0
        %1703 = vmatprep.subr.mxu0 0.0
        %1704 = vmatpush2.msra.mxu0 0.0
        %1705 = vmatprep.subr.mxu0 0.0
        %1706 = vmatpush2.msra.mxu0 0.0
        %1707 = vmatprep.subr.mxu0 0.0
        %1708 = vmatpush2.msra.mxu0 0.0
        %1709 = vmatprep.subr.mxu0 0.0
        %1710 = vmatpush2.msra.mxu0 0.0
        %1711 = vmatprep.subr.mxu0 0.0
        %1712 = vmatpush2.msra.mxu0 0.0
        %1713 = vmatprep.subr.mxu0 0.0
        %1714 = vmatpush2.msra.mxu0 0.0
        %1715 = vmatprep.subr.mxu0 0.0
        %1716 = vmatpush2.msra.mxu0 0.0
        %1717 = vmatprep.subr.mxu0 0.0
        %1718 = vmatpush2.msra.mxu0 0.0
        %1719 = vmatprep.mubr.f32.mxu0 0.0
        %1720 = vmatmul.mubr.f32.gmra.mxu0 %v1650
        %v1721 = vpop.f32.mrf.mxu0
        %v1722 = vadd.f32 0.0, %v1721
        %v1723 = vpop.f32.mrf.mxu0
        %1724 = vmatprep.mubr.f32.mxu0 0.0
        %1725 = vmatmul.mubr.f32.gmra.mxu0 %v1653
        %v1726 = vpop.f32.mrf.mxu0
        %v1727 = vadd.f32 0.0, %v1726
        %v1728 = vpop.f32.mrf.mxu0
        %1729 = vdwg.mxu0
        %v1731 = vsel %vm798, %v1647, 0
        %v1734 = vsel %vm798, %v1648, 0
        %1736 = vmatprep.subr.mxu0 0.0
        %1737 = vmatpush1.msra.mxu0 0.0
        %1738 = vmatprep.subr.mxu0 0.0
        %1739 = vmatpush1.msra.mxu0 0.0
        %1740 = vmatprep.subr.mxu0 0.0
        %1741 = vmatpush1.msra.mxu0 0.0
        %1742 = vmatprep.subr.mxu0 0.0
        %1743 = vmatpush1.msra.mxu0 0.0
        %1744 = vmatprep.subr.mxu0 0.0
        %1745 = vmatpush1.msra.mxu0 0.0
        %1746 = vmatprep.subr.mxu0 0.0
        %1747 = vmatpush1.msra.mxu0 0.0
        %1748 = vmatprep.subr.mxu0 0.0
        %1749 = vmatpush1.msra.mxu0 0.0
        %1750 = vmatprep.subr.mxu0 0.0
        %1751 = vmatpush1.msra.mxu0 0.0
        %1752 = vmatprep.subr.mxu0 0.0
        %1753 = vmatpush1.msra.mxu0 0.0
        %1754 = vmatprep.subr.mxu0 0.0
        %1755 = vmatpush1.msra.mxu0 0.0
        %1756 = vmatprep.subr.mxu0 0.0
        %1757 = vmatpush1.msra.mxu0 0.0
        %1758 = vmatprep.subr.mxu0 0.0
        %1759 = vmatpush1.msra.mxu0 0.0
        %1760 = vmatprep.subr.mxu0 0.0
        %1761 = vmatpush1.msra.mxu0 %v617
        %1762 = vmatprep.subr.mxu0 0.0
        %1763 = vmatpush1.msra.mxu0 %v616
        %1764 = vmatprep.subr.mxu0 0.0
        %1765 = vmatpush1.msra.mxu0 %v615
        %1766 = vmatprep.subr.mxu0 0.0
        %1767 = vmatpush1.msra.mxu0 %v614
        %1768 = vmatprep.subr.mxu0 0.0
        %1769 = vmatpush2.msra.mxu0 0.0
        %1770 = vmatprep.subr.mxu0 0.0
        %1771 = vmatpush2.msra.mxu0 0.0
        %1772 = vmatprep.subr.mxu0 0.0
        %1773 = vmatpush2.msra.mxu0 0.0
        %1774 = vmatprep.subr.mxu0 0.0
        %1775 = vmatpush2.msra.mxu0 0.0
        %1776 = vmatprep.subr.mxu0 0.0
        %1777 = vmatpush2.msra.mxu0 0.0
        %1778 = vmatprep.subr.mxu0 0.0
        %1779 = vmatpush2.msra.mxu0 0.0
        %1780 = vmatprep.subr.mxu0 0.0
        %1781 = vmatpush2.msra.mxu0 0.0
        %1782 = vmatprep.subr.mxu0 0.0
        %1783 = vmatpush2.msra.mxu0 0.0
        %1784 = vmatprep.subr.mxu0 0.0
        %1785 = vmatpush2.msra.mxu0 0.0
        %1786 = vmatprep.subr.mxu0 0.0
        %1787 = vmatpush2.msra.mxu0 0.0
        %1788 = vmatprep.subr.mxu0 0.0
        %1789 = vmatpush2.msra.mxu0 0.0
        %1790 = vmatprep.subr.mxu0 0.0
        %1791 = vmatpush2.msra.mxu0 0.0
        %1792 = vmatprep.subr.mxu0 0.0
        %1793 = vmatpush2.msra.mxu0 0.0
        %1794 = vmatprep.subr.mxu0 0.0
        %1795 = vmatpush2.msra.mxu0 0.0
        %1796 = vmatprep.subr.mxu0 0.0
        %1797 = vmatpush2.msra.mxu0 0.0
        %1798 = vmatprep.subr.mxu0 0.0
        %1799 = vmatpush2.msra.mxu0 0.0
        %1800 = vmatprep.mubr.f32.mxu0 0.0
        %1801 = vmatmul.mubr.f32.gmra.mxu0 %v1731
        %v1802 = vpop.f32.mrf.mxu0
        %v1803 = vadd.f32 %v1722, %v1802
        %v1804 = vpop.f32.mrf.mxu0
        %1805 = vmatprep.mubr.f32.mxu0 0.0
        %1806 = vmatmul.mubr.f32.gmra.mxu0 %v1734
        %v1807 = vpop.f32.mrf.mxu0
        %v1808 = vadd.f32 %v1727, %v1807
        %v1809 = vpop.f32.mrf.mxu0
        %1810 = vdwg.mxu0
        %v1811 = vlaneseq
        %v1812 = vshrl.u32 %v1811, 7
        %v1813 = vsub.s32 0, %v1812
        %v1814 = vrot.slane %v620, %v1813
        %v1815 = vadd.f32 %v1803, %v1814
        %v1816 = vadd.f32 %v1808, %v1814
        %v1817 = vxor.u32 %v1815, 2147483648
        %v1818 = vxor.u32 %v1816, 2147483648
        %v1819 = vmul.f32 %v1817, 1.442695
        %v1820 = vpow.pop %v1819
        %v1821 = vmul.f32 %v1818, 1.442695
        %v1822 = vpow.pop %v1821
        %v1823 = vadd.f32 %v1820, 1.0
        %v1824 = vadd.f32 %v1822, 1.0
        %v1825 = vrcp.pop %v1823
        %v1826 = vmul.f32 1.0, %v1825
        %v1827 = vrcp.pop %v1824
        %v1828 = vmul.f32 1.0, %v1827
        %v1829 = vmul.f32 %v1815, %v1826
        %v1830 = vmul.f32 %v1816, %v1828
        %v1831 = vlaneseq
        %v1832 = vshrl.u32 %v1831, 7
        %v1833 = vsub.s32 0, %v1832
        %v1834 = vrot.slane %v645, %v1833
        %v1836 = vsel %vm1197, %v1829, 0
        %v1839 = vsel %vm1197, %v1830, 0
        %1841 = vmatprep.subr.mxu0 0.0
        %1842 = vmatpush1.msra.mxu0 0.0
        %1843 = vmatprep.subr.mxu0 0.0
        %1844 = vmatpush1.msra.mxu0 0.0
        %1845 = vmatprep.subr.mxu0 0.0
        %1846 = vmatpush1.msra.mxu0 0.0
        %1847 = vmatprep.subr.mxu0 0.0
        %1848 = vmatpush1.msra.mxu0 0.0
        %1849 = vmatprep.subr.mxu0 0.0
        %1850 = vmatpush1.msra.mxu0 0.0
        %1851 = vmatprep.subr.mxu0 0.0
        %1852 = vmatpush1.msra.mxu0 0.0
        %1853 = vmatprep.subr.mxu0 0.0
        %1854 = vmatpush1.msra.mxu0 0.0
        %1855 = vmatprep.subr.mxu0 0.0
        %1856 = vmatpush1.msra.mxu0 0.0
        %1857 = vmatprep.subr.mxu0 0.0
        %1858 = vmatpush1.msra.mxu0 %v644
        %1859 = vmatprep.subr.mxu0 0.0
        %1860 = vmatpush1.msra.mxu0 %v643
        %1861 = vmatprep.subr.mxu0 0.0
        %1862 = vmatpush1.msra.mxu0 %v642
        %1863 = vmatprep.subr.mxu0 0.0
        %1864 = vmatpush1.msra.mxu0 %v641
        %1865 = vmatprep.subr.mxu0 0.0
        %1866 = vmatpush1.msra.mxu0 %v640
        %1867 = vmatprep.subr.mxu0 0.0
        %1868 = vmatpush1.msra.mxu0 %v639
        %1869 = vmatprep.subr.mxu0 0.0
        %1870 = vmatpush1.msra.mxu0 %v638
        %1871 = vmatprep.subr.mxu0 0.0
        %1872 = vmatpush1.msra.mxu0 %v637
        %1873 = vmatprep.subr.mxu0 0.0
        %1874 = vmatpush2.msra.mxu0 0.0
        %1875 = vmatprep.subr.mxu0 0.0
        %1876 = vmatpush2.msra.mxu0 0.0
        %1877 = vmatprep.subr.mxu0 0.0
        %1878 = vmatpush2.msra.mxu0 0.0
        %1879 = vmatprep.subr.mxu0 0.0
        %1880 = vmatpush2.msra.mxu0 0.0
        %1881 = vmatprep.subr.mxu0 0.0
        %1882 = vmatpush2.msra.mxu0 0.0
        %1883 = vmatprep.subr.mxu0 0.0
        %1884 = vmatpush2.msra.mxu0 0.0
        %1885 = vmatprep.subr.mxu0 0.0
        %1886 = vmatpush2.msra.mxu0 0.0
        %1887 = vmatprep.subr.mxu0 0.0
        %1888 = vmatpush2.msra.mxu0 0.0
        %1889 = vmatprep.subr.mxu0 0.0
        %1890 = vmatpush2.msra.mxu0 0.0
        %1891 = vmatprep.subr.mxu0 0.0
        %1892 = vmatpush2.msra.mxu0 0.0
        %1893 = vmatprep.subr.mxu0 0.0
        %1894 = vmatpush2.msra.mxu0 0.0
        %1895 = vmatprep.subr.mxu0 0.0
        %1896 = vmatpush2.msra.mxu0 0.0
        %1897 = vmatprep.subr.mxu0 0.0
        %1898 = vmatpush2.msra.mxu0 0.0
        %1899 = vmatprep.subr.mxu0 0.0
        %1900 = vmatpush2.msra.mxu0 0.0
        %1901 = vmatprep.subr.mxu0 0.0
        %1902 = vmatpush2.msra.mxu0 0.0
        %1903 = vmatprep.subr.mxu0 0.0
        %1904 = vmatpush2.msra.mxu0 0.0
        %1905 = vmatprep.mubr.f32.mxu0 0.0
        %1906 = vmatmul.mubr.f32.gmra.mxu0 %v1836
        %v1907 = vpop.f32.mrf.mxu0
        %v1908 = vadd.f32 %v1834, %v1907
        %v1909 = vpop.f32.mrf.mxu0
        %1910 = vmatprep.mubr.f32.mxu0 0.0
        %1911 = vmatmul.mubr.f32.gmra.mxu0 %v1839
        %v1912 = vpop.f32.mrf.mxu0
        %v1913 = vadd.f32 %v1834, %v1912
        %v1914 = vpop.f32.mrf.mxu0
        %1915 = vdwg.mxu0
        %v1916 = vsel %vm798, %v1908, 0.0
        %1917 = vadd.xlane.f32.xlu0 %v1916
        %v1918 = vpop.xlane.xlu0 %1917
        %v1919 = vsel %vm798, %v1913, 0.0
        %1920 = vadd.xlane.f32.xlu0 %v1919
        %v1921 = vpop.xlane.xlu0 %1920
        %v1922 = vmul.f32 %v1918, %v1616
        %v1923 = vmul.f32 %v1921, %v1616
        %v1924 = vsub.f32 %v1908, %v1922
        %v1925 = vsub.f32 %v1913, %v1923
        %v1926 = vmul.f32 %v1924, %v1924
        %v1927 = vmul.f32 %v1925, %v1925
        %v1928 = vsel %vm798, %v1926, 0.0
        %1929 = vadd.xlane.f32.xlu0 %v1928
        %v1930 = vpop.xlane.xlu0 %1929
        %v1931 = vsel %vm798, %v1927, 0.0
        %1932 = vadd.xlane.f32.xlu0 %v1931
        %v1933 = vpop.xlane.xlu0 %1932
        %v1934 = vmul.f32 %v1930, %v1616
        %v1935 = vmul.f32 %v1933, %v1616
        %v1936 = vadd.f32 %v1934, 1e-05
        %v1937 = vadd.f32 %v1935, 1e-05
        %v1938 = vrsqrt.pop %v1936
        %v1939 = vrsqrt.pop %v1937
        %v1940 = vmul.f32 %v1924, %v1938
        %v1941 = vmul.f32 %v1925, %v1939
        %v1942 = vlaneseq
        %v1943 = vshrl.u32 %v1942, 7
        %v1944 = vsub.s32 0, %v1943
        %v1945 = vrot.slane %v648, %v1944
        %v1946 = vmul.f32 %v1940, %v1945
        %v1947 = vmul.f32 %v1941, %v1945
        %v1948 = vlaneseq
        %v1949 = vshrl.u32 %v1948, 7
        %v1950 = vsub.s32 0, %v1949
        %v1951 = vrot.slane %v649, %v1950
        %v1952 = vadd.f32 %v1946, %v1951
        %v1953 = vadd.f32 %v1947, %v1951
        %v1954 = vadd.f32 %v598, %v1952
        %v1955 = vadd.f32 %v599, %v1953
        %v1956 = vld [vmem:[%s567] sm:$0xff]
        %v1957 = vld [vmem:[%s567 + $0x8] sm:$0xff]
        %v1958 = vld [vmem:[%s567 + $0x10] sm:$0xff]
        %v1959 = vld [vmem:[%s9] sm:$0xf]
        %v1960 = vld [vmem:[%s9 + $0x4] sm:$0xf]
        %v1961 = vld [vmem:[%s9 + $0x8] sm:$0xf]
        %v1962 = vpack.c.bf16 %v599, %v598
        %v1966 = vunpack.c.l.b16 %v1959
        %v1967 = vunpack.c.l.b16 %v1960
        %v1968 = vunpack.c.l.b16 %v1961
        %v1969 = vpack.c.b16 %v1967, %v1966
        %v1970 = vpack.c.b16 %v1968, %v1968
        %v1972 = vsel %vm700, %v1969, 0
        %v1975 = vsel %vm700, %v1970, 0
        %1977 = vmatprep.subr.bf16.mxu0 0
        %1978 = vmatpush1.bf16.msra.mxu0 0
        %1979 = vmatprep.subr.bf16.mxu0 0
        %1980 = vmatpush1.bf16.msra.mxu0 0
        %1981 = vmatprep.subr.bf16.mxu0 0
        %1982 = vmatpush1.bf16.msra.mxu0 0
        %1983 = vmatprep.subr.bf16.mxu0 0
        %1984 = vmatpush1.bf16.msra.mxu0 0
        %1985 = vmatprep.subr.bf16.mxu0 0
        %1986 = vmatpush1.bf16.msra.mxu0 0
        %1987 = vmatprep.subr.bf16.mxu0 0
        %1988 = vmatpush1.bf16.msra.mxu0 0
        %1989 = vmatprep.subr.bf16.mxu0 0
        %1990 = vmatpush1.bf16.msra.mxu0 0
        %1991 = vmatprep.subr.bf16.mxu0 0
        %1992 = vmatpush1.bf16.msra.mxu0 %v1962
        %1993 = vmatprep.subr.bf16.mxu0 0
        %1994 = vmatpush2.bf16.msra.mxu0 0
        %1995 = vmatprep.subr.bf16.mxu0 0
        %1996 = vmatpush2.bf16.msra.mxu0 0
        %1997 = vmatprep.subr.bf16.mxu0 0
        %1998 = vmatpush2.bf16.msra.mxu0 0
        %1999 = vmatprep.subr.bf16.mxu0 0
        %2000 = vmatpush2.bf16.msra.mxu0 0
        %2001 = vmatprep.subr.bf16.mxu0 0
        %2002 = vmatpush2.bf16.msra.mxu0 0
        %2003 = vmatprep.subr.bf16.mxu0 0
        %2004 = vmatpush2.bf16.msra.mxu0 0
        %2005 = vmatprep.subr.bf16.mxu0 0
        %2006 = vmatpush2.bf16.msra.mxu0 0
        %2007 = vmatprep.subr.bf16.mxu0 0
        %2008 = vmatpush2.bf16.msra.mxu0 0
        %2009 = vmatprep.mubr.bf16.mxu0 0
        %2010 = vmatmul.mubr.bf16.gmra.mxu0 %v1972
        %v2011 = vpop.f32.mrf.mxu0
        %v2012 = vadd.f32 0.0, %v2011
        %v2013 = vpop.f32.mrf.mxu0
        %v2014 = vpop.f32.mrf.mxu0
        %v2015 = vadd.f32 0.0, %v2014
        %v2016 = vpop.f32.mrf.mxu0
        %2017 = vmatprep.mubr.bf16.mxu0 0
        %2018 = vmatmul.mubr.bf16.gmra.mxu0 %v1975
        %v2019 = vpop.f32.mrf.mxu0
        %v2020 = vadd.f32 0.0, %v2019
        %v2021 = vpop.f32.mrf.mxu0
        %v2022 = vpop.f32.mrf.mxu0
        %v2023 = vpop.f32.mrf.mxu0
        %2024 = vdwg.mxu0
        %v2025 = vmul.f32 %v2012, %v1956
        %v2026 = vmul.f32 %v2015, %v1957
        %v2027 = vmul.f32 %v2020, %v1958
        %v2028 = vxor.u32 %v2025, 2147483648
        %v2029 = vxor.u32 %v2026, 2147483648
        %v2030 = vxor.u32 %v2027, 2147483648
        %v2031 = vmul.f32 %v2028, 1.442695
        %v2032 = vpow.pop %v2031
        %v2033 = vmul.f32 %v2029, 1.442695
        %v2034 = vpow.pop %v2033
        %v2035 = vmul.f32 %v2030, 1.442695
        %v2036 = vpow.pop %v2035
        %v2037 = vadd.f32 %v2032, 1.0
        %v2038 = vadd.f32 %v2034, 1.0
        %v2039 = vadd.f32 %v2036, 1.0
        %v2040 = vrcp.pop %v2037
        %v2041 = vmul.f32 1.0, %v2040
        %v2042 = vrcp.pop %v2038
        %v2043 = vmul.f32 1.0, %v2042
        %v2044 = vrcp.pop %v2039
        %v2045 = vmul.f32 1.0, %v2044
        %v2046 = vmul.f32 %v2025, %v2041
        %v2047 = vmul.f32 %v2026, %v2043
        %v2048 = vmul.f32 %v2027, %v2045
        %v2049 = vld [vmem:[%s10] sm:$0xf]
        %v2050 = vld [vmem:[%s10 + $0x4] sm:$0xf]
        %v2051 = vpack.c.bf16 %v2047, %v2046
        %v2052 = vpack.c.bf16 %v2048, %v2048
        %v2055 = vunpack.c.l.b16 %v2049
        %v2056 = vunpack.c.l.b16 %v2050
        %v2057 = vpack.c.b16 %v2056, %v2055
        %vm2058 = vcmask 195584
        %v2060 = vsel %vm2058, %v2057, 0
        %vm2062 = vcmask 1043456
        %v2064 = vsel %vm2062, %v2052, 0
        %2066 = vmatprep.subr.bf16.mxu0 0
        %2067 = vmatpush1.bf16.msra.mxu0 0
        %2068 = vmatprep.subr.bf16.mxu0 0
        %2069 = vmatpush1.bf16.msra.mxu0 0
        %2070 = vmatprep.subr.bf16.mxu0 0
        %2071 = vmatpush1.bf16.msra.mxu0 0
        %2072 = vmatprep.subr.bf16.mxu0 0
        %2073 = vmatpush1.bf16.msra.mxu0 0
        %2074 = vmatprep.subr.bf16.mxu0 0
        %2075 = vmatpush1.bf16.msra.mxu0 0
        %2076 = vmatprep.subr.bf16.mxu0 0
        %2077 = vmatpush1.bf16.msra.mxu0 0
        %2078 = vmatprep.subr.bf16.mxu0 0
        %2079 = vmatpush1.bf16.msra.mxu0 %v2064
        %2080 = vmatprep.subr.bf16.mxu0 0
        %2081 = vmatpush1.bf16.msra.mxu0 %v2051
        %2082 = vmatprep.subr.bf16.mxu0 0
        %2083 = vmatpush2.bf16.msra.mxu0 0
        %2084 = vmatprep.subr.bf16.mxu0 0
        %2085 = vmatpush2.bf16.msra.mxu0 0
        %2086 = vmatprep.subr.bf16.mxu0 0
        %2087 = vmatpush2.bf16.msra.mxu0 0
        %2088 = vmatprep.subr.bf16.mxu0 0
        %2089 = vmatpush2.bf16.msra.mxu0 0
        %2090 = vmatprep.subr.bf16.mxu0 0
        %2091 = vmatpush2.bf16.msra.mxu0 0
        %2092 = vmatprep.subr.bf16.mxu0 0
        %2093 = vmatpush2.bf16.msra.mxu0 0
        %2094 = vmatprep.subr.bf16.mxu0 0
        %2095 = vmatpush2.bf16.msra.mxu0 0
        %2096 = vmatprep.subr.bf16.mxu0 0
        %2097 = vmatpush2.bf16.msra.mxu0 0
        %2098 = vmatprep.mubr.bf16.mxu0 0
        %2099 = vmatmul.mubr.bf16.gmra.mxu0 %v2060
        %v2100 = vpop.f32.mrf.mxu0
        %v2101 = vadd.f32 %v598, %v2100
        %v2102 = vpop.f32.mrf.mxu0
        %v2103 = vpop.f32.mrf.mxu0
        %v2104 = vadd.f32 %v599, %v2103
        %v2105 = vpop.f32.mrf.mxu0
        %2106 = vdwg.mxu0
        %v2107 = vlaneseq
        %v2108 = vshrl.u32 %v2107, 7
        %v2109 = vsub.s32 0, %v2108
        %v2110 = vrot.slane %v625, %v2109
        %v2112 = vsel %vm798, %v2101, 0
        %v2115 = vsel %vm798, %v2104, 0
        %2117 = vmatprep.subr.mxu0 0.0
        %2118 = vmatpush1.msra.mxu0 0.0
        %2119 = vmatprep.subr.mxu0 0.0
        %2120 = vmatpush1.msra.mxu0 0.0
        %2121 = vmatprep.subr.mxu0 0.0
        %2122 = vmatpush1.msra.mxu0 0.0
        %2123 = vmatprep.subr.mxu0 0.0
        %2124 = vmatpush1.msra.mxu0 0.0
        %2125 = vmatprep.subr.mxu0 0.0
        %2126 = vmatpush1.msra.mxu0 0.0
        %2127 = vmatprep.subr.mxu0 0.0
        %2128 = vmatpush1.msra.mxu0 0.0
        %2129 = vmatprep.subr.mxu0 0.0
        %2130 = vmatpush1.msra.mxu0 0.0
        %2131 = vmatprep.subr.mxu0 0.0
        %2132 = vmatpush1.msra.mxu0 0.0
        %2133 = vmatprep.subr.mxu0 0.0
        %2134 = vmatpush1.msra.mxu0 0.0
        %2135 = vmatprep.subr.mxu0 0.0
        %2136 = vmatpush1.msra.mxu0 0.0
        %2137 = vmatprep.subr.mxu0 0.0
        %2138 = vmatpush1.msra.mxu0 0.0
        %2139 = vmatprep.subr.mxu0 0.0
        %2140 = vmatpush1.msra.mxu0 0.0
        %2141 = vmatprep.subr.mxu0 0.0
        %2142 = vmatpush1.msra.mxu0 %v624
        %2143 = vmatprep.subr.mxu0 0.0
        %2144 = vmatpush1.msra.mxu0 %v623
        %2145 = vmatprep.subr.mxu0 0.0
        %2146 = vmatpush1.msra.mxu0 %v622
        %2147 = vmatprep.subr.mxu0 0.0
        %2148 = vmatpush1.msra.mxu0 %v621
        %2149 = vmatprep.subr.mxu0 0.0
        %2150 = vmatpush2.msra.mxu0 0.0
        %2151 = vmatprep.subr.mxu0 0.0
        %2152 = vmatpush2.msra.mxu0 0.0
        %2153 = vmatprep.subr.mxu0 0.0
        %2154 = vmatpush2.msra.mxu0 0.0
        %2155 = vmatprep.subr.mxu0 0.0
        %2156 = vmatpush2.msra.mxu0 0.0
        %2157 = vmatprep.subr.mxu0 0.0
        %2158 = vmatpush2.msra.mxu0 0.0
        %2159 = vmatprep.subr.mxu0 0.0
        %2160 = vmatpush2.msra.mxu0 0.0
        %2161 = vmatprep.subr.mxu0 0.0
        %2162 = vmatpush2.msra.mxu0 0.0
        %2163 = vmatprep.subr.mxu0 0.0
        %2164 = vmatpush2.msra.mxu0 0.0
        %2165 = vmatprep.subr.mxu0 0.0
        %2166 = vmatpush2.msra.mxu0 0.0
        %2167 = vmatprep.subr.mxu0 0.0
        %2168 = vmatpush2.msra.mxu0 0.0
        %2169 = vmatprep.subr.mxu0 0.0
        %2170 = vmatpush2.msra.mxu0 0.0
        %2171 = vmatprep.subr.mxu0 0.0
        %2172 = vmatpush2.msra.mxu0 0.0
        %2173 = vmatprep.subr.mxu0 0.0
        %2174 = vmatpush2.msra.mxu0 0.0
        %2175 = vmatprep.subr.mxu0 0.0
        %2176 = vmatpush2.msra.mxu0 0.0
        %2177 = vmatprep.subr.mxu0 0.0
        %2178 = vmatpush2.msra.mxu0 0.0
        %2179 = vmatprep.subr.mxu0 0.0
        %2180 = vmatpush2.msra.mxu0 0.0
        %2181 = vmatprep.mubr.f32.mxu0 0.0
        %2182 = vmatmul.mubr.f32.gmra.mxu0 %v2112
        %v2183 = vpop.f32.mrf.mxu0
        %v2184 = vadd.f32 %v2110, %v2183
        %v2185 = vpop.f32.mrf.mxu0
        %2186 = vmatprep.mubr.f32.mxu0 0.0
        %2187 = vmatmul.mubr.f32.gmra.mxu0 %v2115
        %v2188 = vpop.f32.mrf.mxu0
        %v2189 = vadd.f32 %v2110, %v2188
        %v2190 = vpop.f32.mrf.mxu0
        %2191 = vdwg.mxu0
        %v2192 = vxor.u32 %v2184, 2147483648
        %v2193 = vxor.u32 %v2189, 2147483648
        %v2194 = vmul.f32 %v2192, 1.442695
        %v2195 = vpow.pop %v2194
        %v2196 = vmul.f32 %v2193, 1.442695
        %v2197 = vpow.pop %v2196
        %v2198 = vadd.f32 %v2195, 1.0
        %v2199 = vadd.f32 %v2197, 1.0
        %v2200 = vrcp.pop %v2198
        %v2201 = vmul.f32 1.0, %v2200
        %v2202 = vrcp.pop %v2199
        %v2203 = vmul.f32 1.0, %v2202
        %v2204 = vmul.f32 %v2184, %v2201
        %v2205 = vmul.f32 %v2189, %v2203
        %v2206 = vlaneseq
        %v2207 = vshrl.u32 %v2206, 7
        %v2208 = vsub.s32 0, %v2207
        %v2209 = vrot.slane %v658, %v2208
        %v2211 = vsel %vm1197, %v2204, 0
        %v2214 = vsel %vm1197, %v2205, 0
        %2216 = vmatprep.subr.mxu0 0.0
        %2217 = vmatpush1.msra.mxu0 0.0
        %2218 = vmatprep.subr.mxu0 0.0
        %2219 = vmatpush1.msra.mxu0 0.0
        %2220 = vmatprep.subr.mxu0 0.0
        %2221 = vmatpush1.msra.mxu0 0.0
        %2222 = vmatprep.subr.mxu0 0.0
        %2223 = vmatpush1.msra.mxu0 0.0
        %2224 = vmatprep.subr.mxu0 0.0
        %2225 = vmatpush1.msra.mxu0 0.0
        %2226 = vmatprep.subr.mxu0 0.0
        %2227 = vmatpush1.msra.mxu0 0.0
        %2228 = vmatprep.subr.mxu0 0.0
        %2229 = vmatpush1.msra.mxu0 0.0
        %2230 = vmatprep.subr.mxu0 0.0
        %2231 = vmatpush1.msra.mxu0 0.0
        %2232 = vmatprep.subr.mxu0 0.0
        %2233 = vmatpush1.msra.mxu0 %v657
        %2234 = vmatprep.subr.mxu0 0.0
        %2235 = vmatpush1.msra.mxu0 %v656
        %2236 = vmatprep.subr.mxu0 0.0
        %2237 = vmatpush1.msra.mxu0 %v655
        %2238 = vmatprep.subr.mxu0 0.0
        %2239 = vmatpush1.msra.mxu0 %v654
        %2240 = vmatprep.subr.mxu0 0.0
        %2241 = vmatpush1.msra.mxu0 %v653
        %2242 = vmatprep.subr.mxu0 0.0
        %2243 = vmatpush1.msra.mxu0 %v652
        %2244 = vmatprep.subr.mxu0 0.0
        %2245 = vmatpush1.msra.mxu0 %v651
        %2246 = vmatprep.subr.mxu0 0.0
        %2247 = vmatpush1.msra.mxu0 %v650
        %2248 = vmatprep.subr.mxu0 0.0
        %2249 = vmatpush2.msra.mxu0 0.0
        %2250 = vmatprep.subr.mxu0 0.0
        %2251 = vmatpush2.msra.mxu0 0.0
        %2252 = vmatprep.subr.mxu0 0.0
        %2253 = vmatpush2.msra.mxu0 0.0
        %2254 = vmatprep.subr.mxu0 0.0
        %2255 = vmatpush2.msra.mxu0 0.0
        %2256 = vmatprep.subr.mxu0 0.0
        %2257 = vmatpush2.msra.mxu0 0.0
        %2258 = vmatprep.subr.mxu0 0.0
        %2259 = vmatpush2.msra.mxu0 0.0
        %2260 = vmatprep.subr.mxu0 0.0
        %2261 = vmatpush2.msra.mxu0 0.0
        %2262 = vmatprep.subr.mxu0 0.0
        %2263 = vmatpush2.msra.mxu0 0.0
        %2264 = vmatprep.subr.mxu0 0.0
        %2265 = vmatpush2.msra.mxu0 0.0
        %2266 = vmatprep.subr.mxu0 0.0
        %2267 = vmatpush2.msra.mxu0 0.0
        %2268 = vmatprep.subr.mxu0 0.0
        %2269 = vmatpush2.msra.mxu0 0.0
        %2270 = vmatprep.subr.mxu0 0.0
        %2271 = vmatpush2.msra.mxu0 0.0
        %2272 = vmatprep.subr.mxu0 0.0
        %2273 = vmatpush2.msra.mxu0 0.0
        %2274 = vmatprep.subr.mxu0 0.0
        %2275 = vmatpush2.msra.mxu0 0.0
        %2276 = vmatprep.subr.mxu0 0.0
        %2277 = vmatpush2.msra.mxu0 0.0
        %2278 = vmatprep.subr.mxu0 0.0
        %2279 = vmatpush2.msra.mxu0 0.0
        %2280 = vmatprep.mubr.f32.mxu0 0.0
        %2281 = vmatmul.mubr.f32.gmra.mxu0 %v2211
        %v2282 = vpop.f32.mrf.mxu0
        %v2283 = vadd.f32 %v2209, %v2282
        %v2284 = vpop.f32.mrf.mxu0
        %2285 = vmatprep.mubr.f32.mxu0 0.0
        %2286 = vmatmul.mubr.f32.gmra.mxu0 %v2214
        %v2287 = vpop.f32.mrf.mxu0
        %v2288 = vadd.f32 %v2209, %v2287
        %v2289 = vpop.f32.mrf.mxu0
        %2290 = vdwg.mxu0
        %v2292 = vsel %vm798, %v2283, 0
        %v2295 = vsel %vm798, %v2288, 0
        %2297 = vmatprep.subr.mxu0 0.0
        %2298 = vmatpush1.msra.mxu0 0.0
        %2299 = vmatprep.subr.mxu0 0.0
        %2300 = vmatpush1.msra.mxu0 0.0
        %2301 = vmatprep.subr.mxu0 0.0
        %2302 = vmatpush1.msra.mxu0 0.0
        %2303 = vmatprep.subr.mxu0 0.0
        %2304 = vmatpush1.msra.mxu0 0.0
        %2305 = vmatprep.subr.mxu0 0.0
        %2306 = vmatpush1.msra.mxu0 0.0
        %2307 = vmatprep.subr.mxu0 0.0
        %2308 = vmatpush1.msra.mxu0 0.0
        %2309 = vmatprep.subr.mxu0 0.0
        %2310 = vmatpush1.msra.mxu0 0.0
        %2311 = vmatprep.subr.mxu0 0.0
        %2312 = vmatpush1.msra.mxu0 0.0
        %2313 = vmatprep.subr.mxu0 0.0
        %2314 = vmatpush1.msra.mxu0 0.0
        %2315 = vmatprep.subr.mxu0 0.0
        %2316 = vmatpush1.msra.mxu0 0.0
        %2317 = vmatprep.subr.mxu0 0.0
        %2318 = vmatpush1.msra.mxu0 0.0
        %2319 = vmatprep.subr.mxu0 0.0
        %2320 = vmatpush1.msra.mxu0 0.0
        %2321 = vmatprep.subr.mxu0 0.0
        %2322 = vmatpush1.msra.mxu0 %v667
        %2323 = vmatprep.subr.mxu0 0.0
        %2324 = vmatpush1.msra.mxu0 %v666
        %2325 = vmatprep.subr.mxu0 0.0
        %2326 = vmatpush1.msra.mxu0 %v665
        %2327 = vmatprep.subr.mxu0 0.0
        %2328 = vmatpush1.msra.mxu0 %v664
        %2329 = vmatprep.subr.mxu0 0.0
        %2330 = vmatpush2.msra.mxu0 0.0
        %2331 = vmatprep.subr.mxu0 0.0
        %2332 = vmatpush2.msra.mxu0 0.0
        %2333 = vmatprep.subr.mxu0 0.0
        %2334 = vmatpush2.msra.mxu0 0.0
        %2335 = vmatprep.subr.mxu0 0.0
        %2336 = vmatpush2.msra.mxu0 0.0
        %2337 = vmatprep.subr.mxu0 0.0
        %2338 = vmatpush2.msra.mxu0 0.0
        %2339 = vmatprep.subr.mxu0 0.0
        %2340 = vmatpush2.msra.mxu0 0.0
        %2341 = vmatprep.subr.mxu0 0.0
        %2342 = vmatpush2.msra.mxu0 0.0
        %2343 = vmatprep.subr.mxu0 0.0
        %2344 = vmatpush2.msra.mxu0 0.0
        %2345 = vmatprep.subr.mxu0 0.0
        %2346 = vmatpush2.msra.mxu0 0.0
        %2347 = vmatprep.subr.mxu0 0.0
        %2348 = vmatpush2.msra.mxu0 0.0
        %2349 = vmatprep.subr.mxu0 0.0
        %2350 = vmatpush2.msra.mxu0 0.0
        %2351 = vmatprep.subr.mxu0 0.0
        %2352 = vmatpush2.msra.mxu0 0.0
        %2353 = vmatprep.subr.mxu0 0.0
        %2354 = vmatpush2.msra.mxu0 0.0
        %2355 = vmatprep.subr.mxu0 0.0
        %2356 = vmatpush2.msra.mxu0 0.0
        %2357 = vmatprep.subr.mxu0 0.0
        %2358 = vmatpush2.msra.mxu0 0.0
        %2359 = vmatprep.subr.mxu0 0.0
        %2360 = vmatpush2.msra.mxu0 0.0
        %2361 = vmatprep.mubr.f32.mxu0 0.0
        %2362 = vmatmul.mubr.f32.gmra.mxu0 %v2292
        %v2363 = vpop.f32.mrf.mxu0
        %v2364 = vadd.f32 0.0, %v2363
        %v2365 = vpop.f32.mrf.mxu0
        %2366 = vmatprep.mubr.f32.mxu0 0.0
        %2367 = vmatmul.mubr.f32.gmra.mxu0 %v2295
        %v2368 = vpop.f32.mrf.mxu0
        %v2369 = vadd.f32 0.0, %v2368
        %v2370 = vpop.f32.mrf.mxu0
        %2371 = vdwg.mxu0
        %v2373 = vsel %vm798, %v1954, 0
        %v2376 = vsel %vm798, %v1955, 0
        %2378 = vmatprep.subr.mxu0 0.0
        %2379 = vmatpush1.msra.mxu0 0.0
        %2380 = vmatprep.subr.mxu0 0.0
        %2381 = vmatpush1.msra.mxu0 0.0
        %2382 = vmatprep.subr.mxu0 0.0
        %2383 = vmatpush1.msra.mxu0 0.0
        %2384 = vmatprep.subr.mxu0 0.0
        %2385 = vmatpush1.msra.mxu0 0.0
        %2386 = vmatprep.subr.mxu0 0.0
        %2387 = vmatpush1.msra.mxu0 0.0
        %2388 = vmatprep.subr.mxu0 0.0
        %2389 = vmatpush1.msra.mxu0 0.0
        %2390 = vmatprep.subr.mxu0 0.0
        %2391 = vmatpush1.msra.mxu0 0.0
        %2392 = vmatprep.subr.mxu0 0.0
        %2393 = vmatpush1.msra.mxu0 0.0
        %2394 = vmatprep.subr.mxu0 0.0
        %2395 = vmatpush1.msra.mxu0 0.0
        %2396 = vmatprep.subr.mxu0 0.0
        %2397 = vmatpush1.msra.mxu0 0.0
        %2398 = vmatprep.subr.mxu0 0.0
        %2399 = vmatpush1.msra.mxu0 0.0
        %2400 = vmatprep.subr.mxu0 0.0
        %2401 = vmatpush1.msra.mxu0 0.0
        %2402 = vmatprep.subr.mxu0 0.0
        %2403 = vmatpush1.msra.mxu0 %v663
        %2404 = vmatprep.subr.mxu0 0.0
        %2405 = vmatpush1.msra.mxu0 %v662
        %2406 = vmatprep.subr.mxu0 0.0
        %2407 = vmatpush1.msra.mxu0 %v661
        %2408 = vmatprep.subr.mxu0 0.0
        %2409 = vmatpush1.msra.mxu0 %v660
        %2410 = vmatprep.subr.mxu0 0.0
        %2411 = vmatpush2.msra.mxu0 0.0
        %2412 = vmatprep.subr.mxu0 0.0
        %2413 = vmatpush2.msra.mxu0 0.0
        %2414 = vmatprep.subr.mxu0 0.0
        %2415 = vmatpush2.msra.mxu0 0.0
        %2416 = vmatprep.subr.mxu0 0.0
        %2417 = vmatpush2.msra.mxu0 0.0
        %2418 = vmatprep.subr.mxu0 0.0
        %2419 = vmatpush2.msra.mxu0 0.0
        %2420 = vmatprep.subr.mxu0 0.0
        %2421 = vmatpush2.msra.mxu0 0.0
        %2422 = vmatprep.subr.mxu0 0.0
        %2423 = vmatpush2.msra.mxu0 0.0
        %2424 = vmatprep.subr.mxu0 0.0
        %2425 = vmatpush2.msra.mxu0 0.0
        %2426 = vmatprep.subr.mxu0 0.0
        %2427 = vmatpush2.msra.mxu0 0.0
        %2428 = vmatprep.subr.mxu0 0.0
        %2429 = vmatpush2.msra.mxu0 0.0
        %2430 = vmatprep.subr.mxu0 0.0
        %2431 = vmatpush2.msra.mxu0 0.0
        %2432 = vmatprep.subr.mxu0 0.0
        %2433 = vmatpush2.msra.mxu0 0.0
        %2434 = vmatprep.subr.mxu0 0.0
        %2435 = vmatpush2.msra.mxu0 0.0
        %2436 = vmatprep.subr.mxu0 0.0
        %2437 = vmatpush2.msra.mxu0 0.0
        %2438 = vmatprep.subr.mxu0 0.0
        %2439 = vmatpush2.msra.mxu0 0.0
        %2440 = vmatprep.subr.mxu0 0.0
        %2441 = vmatpush2.msra.mxu0 0.0
        %2442 = vmatprep.mubr.f32.mxu0 0.0
        %2443 = vmatmul.mubr.f32.gmra.mxu0 %v2373
        %v2444 = vpop.f32.mrf.mxu0
        %v2445 = vadd.f32 %v2364, %v2444
        %v2446 = vpop.f32.mrf.mxu0
        %2447 = vmatprep.mubr.f32.mxu0 0.0
        %2448 = vmatmul.mubr.f32.gmra.mxu0 %v2376
        %v2449 = vpop.f32.mrf.mxu0
        %v2450 = vadd.f32 %v2369, %v2449
        %v2451 = vpop.f32.mrf.mxu0
        %2452 = vdwg.mxu0
        %v2453 = vlaneseq
        %v2454 = vshrl.u32 %v2453, 7
        %v2455 = vsub.s32 0, %v2454
        %v2456 = vrot.slane %v668, %v2455
        %v2457 = vadd.f32 %v2445, %v2456
        %v2458 = vadd.f32 %v2450, %v2456
        %v2459 = vxor.u32 %v2457, 2147483648
        %v2460 = vxor.u32 %v2458, 2147483648
        %v2461 = vmul.f32 %v2459, 1.442695
        %v2462 = vpow.pop %v2461
        %v2463 = vmul.f32 %v2460, 1.442695
        %v2464 = vpow.pop %v2463
        %v2465 = vadd.f32 %v2462, 1.0
        %v2466 = vadd.f32 %v2464, 1.0
        %v2467 = vrcp.pop %v2465
        %v2468 = vmul.f32 1.0, %v2467
        %v2469 = vrcp.pop %v2466
        %v2470 = vmul.f32 1.0, %v2469
        %v2471 = vmul.f32 %v2457, %v2468
        %v2472 = vmul.f32 %v2458, %v2470
        %v2473 = vlaneseq
        %v2474 = vshrl.u32 %v2473, 7
        %v2475 = vsub.s32 0, %v2474
        %v2476 = vrot.slane %v677, %v2475
        %v2478 = vsel %vm1197, %v2471, 0
        %v2481 = vsel %vm1197, %v2472, 0
        %2483 = vmatprep.subr.mxu0 0.0
        %2484 = vmatpush1.msra.mxu0 0.0
        %2485 = vmatprep.subr.mxu0 0.0
        %2486 = vmatpush1.msra.mxu0 0.0
        %2487 = vmatprep.subr.mxu0 0.0
        %2488 = vmatpush1.msra.mxu0 0.0
        %2489 = vmatprep.subr.mxu0 0.0
        %2490 = vmatpush1.msra.mxu0 0.0
        %2491 = vmatprep.subr.mxu0 0.0
        %2492 = vmatpush1.msra.mxu0 0.0
        %2493 = vmatprep.subr.mxu0 0.0
        %2494 = vmatpush1.msra.mxu0 0.0
        %2495 = vmatprep.subr.mxu0 0.0
        %2496 = vmatpush1.msra.mxu0 0.0
        %2497 = vmatprep.subr.mxu0 0.0
        %2498 = vmatpush1.msra.mxu0 0.0
        %2499 = vmatprep.subr.mxu0 0.0
        %2500 = vmatpush1.msra.mxu0 %v676
        %2501 = vmatprep.subr.mxu0 0.0
        %2502 = vmatpush1.msra.mxu0 %v675
        %2503 = vmatprep.subr.mxu0 0.0
        %2504 = vmatpush1.msra.mxu0 %v674
        %2505 = vmatprep.subr.mxu0 0.0
        %2506 = vmatpush1.msra.mxu0 %v673
        %2507 = vmatprep.subr.mxu0 0.0
        %2508 = vmatpush1.msra.mxu0 %v672
        %2509 = vmatprep.subr.mxu0 0.0
        %2510 = vmatpush1.msra.mxu0 %v671
        %2511 = vmatprep.subr.mxu0 0.0
        %2512 = vmatpush1.msra.mxu0 %v670
        %2513 = vmatprep.subr.mxu0 0.0
        %2514 = vmatpush1.msra.mxu0 %v669
        %2515 = vmatprep.subr.mxu0 0.0
        %2516 = vmatpush2.msra.mxu0 0.0
        %2517 = vmatprep.subr.mxu0 0.0
        %2518 = vmatpush2.msra.mxu0 0.0
        %2519 = vmatprep.subr.mxu0 0.0
        %2520 = vmatpush2.msra.mxu0 0.0
        %2521 = vmatprep.subr.mxu0 0.0
        %2522 = vmatpush2.msra.mxu0 0.0
        %2523 = vmatprep.subr.mxu0 0.0
        %2524 = vmatpush2.msra.mxu0 0.0
        %2525 = vmatprep.subr.mxu0 0.0
        %2526 = vmatpush2.msra.mxu0 0.0
        %2527 = vmatprep.subr.mxu0 0.0
        %2528 = vmatpush2.msra.mxu0 0.0
        %2529 = vmatprep.subr.mxu0 0.0
        %2530 = vmatpush2.msra.mxu0 0.0
        %2531 = vmatprep.subr.mxu0 0.0
        %2532 = vmatpush2.msra.mxu0 0.0
        %2533 = vmatprep.subr.mxu0 0.0
        %2534 = vmatpush2.msra.mxu0 0.0
        %2535 = vmatprep.subr.mxu0 0.0
        %2536 = vmatpush2.msra.mxu0 0.0
        %2537 = vmatprep.subr.mxu0 0.0
        %2538 = vmatpush2.msra.mxu0 0.0
        %2539 = vmatprep.subr.mxu0 0.0
        %2540 = vmatpush2.msra.mxu0 0.0
        %2541 = vmatprep.subr.mxu0 0.0
        %2542 = vmatpush2.msra.mxu0 0.0
        %2543 = vmatprep.subr.mxu0 0.0
        %2544 = vmatpush2.msra.mxu0 0.0
        %2545 = vmatprep.subr.mxu0 0.0
        %2546 = vmatpush2.msra.mxu0 0.0
        %2547 = vmatprep.mubr.f32.mxu0 0.0
        %2548 = vmatmul.mubr.f32.gmra.mxu0 %v2478
        %v2549 = vpop.f32.mrf.mxu0
        %v2550 = vadd.f32 %v2476, %v2549
        %v2551 = vpop.f32.mrf.mxu0
        %2552 = vmatprep.mubr.f32.mxu0 0.0
        %2553 = vmatmul.mubr.f32.gmra.mxu0 %v2481
        %v2554 = vpop.f32.mrf.mxu0
        %v2555 = vadd.f32 %v2476, %v2554
        %v2556 = vpop.f32.mrf.mxu0
        %2557 = vdwg.mxu0
        %v2558 = vadd.f32 %v598, %v2550
        %v2559 = vadd.f32 %v599, %v2555
        %2560 = vst.msk [vmem:[#allocation2] sm:$0xff] %vm798, %v2558
        %2561 = vst.msk [vmem:[#allocation2 + $0x8] sm:$0xff] %vm798, %v2559
        %2562 = vst.msk [vmem:[#allocation3] sm:$0xff] %vm773, %v1608
        %2563 = vst.msk [vmem:[#allocation3 + $0x8] sm:$0xff] %vm773, %v1609
        %2564 = vst.msk [vmem:[#allocation7] sm:$0xff] %vm798, %v2558
        %2565 = vst.msk [vmem:[#allocation7 + $0x8] sm:$0xff] %vm798, %v2559
        // Predicated region
        $region93: #{encoder_forward.1} parent=83 // pred_check
          %p2566 = pneg %p398
        $region94: #{encoder_forward.1} parent=83 // pred_check_branch
          %2568 = sbr.rel (%p2566) target = $region96
        $region95: #{encoder_forward.1} parent=83 // pred_region
          %s2570 = ssub.s32 256, 256
          %2571 = vsyncadd [#allocation6], %s2570
          %s2572 = sshll.u32 [#allocation7], 4
          %s2573 = int_to_ptr.vmem [resolvable:$true] %s2572
          %2578 = dma.vmem_to_hbm [thread:$0]  %s2573, 256, %s16, [#allocation6], 128, 128, 8
        $region96: #{encoder_forward.1} parent=83 // pred_fallthru
          _
        // Predicated region
        $region97: #{encoder_forward.1} parent=83 // pred_check
          %p2579 = pneg %p398
        $region98: #{encoder_forward.1} parent=83 // pred_check_branch
          %2581 = sbr.rel (%p2579) target = $region100
        $region99: #{encoder_forward.1} parent=83 // pred_region
          %2582 = dma.done [#allocation6], 256
        $region100: #{encoder_forward.1} parent=83 // pred_fallthru
          _
      $region84: #{encoder_forward.1} parent=5 // pred_fallthru
        _
      %p2583 = scmp.le.s32.totalorder 2, %s24
      // Predicated region
      $region101: #{encoder_forward.1} parent=5 // pred_check
        %p2584 = pneg %p2583
      $region102: #{encoder_forward.1} parent=5 // pred_check_branch
        %2586 = sbr.rel (%p2584) target = $region104
      $region103: #{encoder_forward.1} parent=5 // pred_region
        %s2587 = ssub.s32 %s24, 2
      $region104: #{encoder_forward.1} parent=5 // pred_fallthru
        _
    $region6: #{encoder_forward.1} parent=1 // loop_footer
      %s28 = sadd.s32 1, %s24
    $region7: #{encoder_forward.1} parent=1 // loop_footer_branch
      %23 = sbr.rel target = $region3
    $region8: #{encoder_forward.1} parent=1 // loop_exit
      _
    %2588 = vsyncpa [#allocation5], 1
    %s2589 = scalar_lea.sflag [#allocation5], 1
    %2590 = vsyncpa %s2589, 1
    %2591 = vsyncpa [#allocation6], 1
    %s2592 = scalar_lea.sflag [#allocation6], 1
    %2593 = vsyncpa %s2592, 1

</llo_original>
